<compile_context>
chip_gen: v7x
topology: tpu7x:2x2x1
jax: 0.10.0
libtpu: 0.0.40
codegen_flags: <defaults>
</compile_context>

<pallas_src>
import functools

import jax
import jax.numpy as jnp
from jax import lax
from jax.experimental import pallas as pl
from jax.experimental.pallas import tpu as pltpu

EPS = 1e-5


# ----------------------------- Pallas kernel -----------------------------

def _ds_pre_block_kernel(x_ref, mask_ref, s1_ref, b1_ref, w1_ref, b2_ref,
                         w2_ref, o_ref, act_ref, patch_ref,
                         *, Wp, Spad, both_preact):
    """Fused pre-activation basic block for Bt images.

    x_ref    : (Bt, Cin, Spad)  zero-padded images, spatial flattened + lane pad
    mask_ref : (1, Bt*Spad)     1.0 on interior pixels, 0.0 on pad border/lanes
    s1/b1    : (Cin, 1)  f32    folded bn1 scale / bias
    w1_ref   : (Cout, 9*Cin)  bf16  conv1 weights * bn2 scale (pre-folded)
    b2_ref   : (Cout, 1) f32    folded bn2 bias
    w2_ref   : (Cout, 9*Cout) bf16  conv2 weights * d (pre-folded)
    o_ref    : (Bt, Cout, Spad) output (same padded layout)
    act_ref  : (Cin, Bt*Spad)   f32 scratch (bn1+relu activation / residual)
    patch_ref: (9*Cin, Bt*Spad) bf16 scratch, reused by both convs
    """
    Bt, Cin, _ = x_ref.shape
    Cout = o_ref.shape[1]
    L = Bt * Spad

    mask_full = mask_ref[...]               # (1, L)
    mask_img = mask_ref[:, 0:Spad]          # (1, Spad)

    # ---- bn1 + relu (mask re-zeroes pad border -> convs see zero padding) ---
    for b in range(Bt):
        a1_b = mask_img * jnp.maximum(
            x_ref[b] * s1_ref[...] + b1_ref[...], 0.0)
        act_ref[:, b * Spad:(b + 1) * Spad] = a1_b

    def conv3x3(a_all, w_ref):
        """a_all: (C, L) f32 -> (Cout, L) f32 via one stacked-patch matmul."""
        c = a_all.shape[0]
        for k in range(9):
            off = (k // 3 - 1) * Wp + (k % 3 - 1)   # flattened spatial shift
            if off == 0:
                shifted = a_all                      # center tap: reuse value
            else:
                # Rotation wrap-around only lands in border / lane-pad
                # columns, which are masked downstream or discarded.
                shifted = pltpu.roll(a_all, shift=(-off) % L, axis=1)
            patch_ref[k * c:(k + 1) * c, :] = shifted.astype(patch_ref.dtype)
        return jnp.dot(w_ref[...], patch_ref[...],
                       preferred_element_type=jnp.float32)

    # ---- conv1 (bn2 scale already folded into w1) ---------------------------
    y1 = conv3x3(act_ref[...], w1_ref)               # (Cout, L) f32

    # ---- bn2 bias + relu ----------------------------------------------------
    a2 = mask_full * jnp.maximum(y1 + b2_ref[...], 0.0)

    # ---- conv2 (cRate scalar d already folded into w2) ----------------------
    y2 = conv3x3(a2, w2_ref)                         # (Cout, L) f32

    # ---- out = d * conv2(...) + residual ------------------------------------
    for b in range(Bt):
        lo, hi = b * Spad, (b + 1) * Spad
        res = x_ref[b] if both_preact else act_ref[:, lo:hi]
        o_ref[b] = (y2[:, lo:hi] + res).astype(o_ref.dtype)


# ----------------------------- wrapper -----------------------------

def _fold_bn(gamma, beta, mean, var):
    s = gamma.astype(jnp.float32) / jnp.sqrt(var.astype(jnp.float32) + EPS)
    b = beta.astype(jnp.float32) - mean.astype(jnp.float32) * s
    return s[:, None], b[:, None]


def ds_pre_basic_block(x_nchw, params, block_type="both_preact",
                       max_images_per_step=8):
    """Forward pass of dsPreBasicBlock.  NCHW in, NCHW out (like PyTorch)."""
    assert block_type in ("both_preact", "half_preact")
    x = x_nchw.astype(jnp.float32)
    N, Cin, H, W = x.shape
    Cout = params["conv1_w"].shape[0]
    # Residual add requires equal channel counts (stride=1, downsample=None).
    assert Cin == Cout, "downsample / channel-expansion path not implemented"

    Hp, Wp = H + 2, W + 2
    S = Hp * Wp
    Spad = ((S + 127) // 128) * 128           # lane-dense width per image

    # Images per grid step: largest divisor of N not exceeding the cap.
    Bt = max(bt for bt in range(1, min(N, max_images_per_step) + 1)
             if N % bt == 0)
    G = N // Bt
    L = Bt * Spad

    # ---- fold BN stats / cRate into per-channel affine + conv weights -------
    s1, b1 = _fold_bn(params["bn1_gamma"], params["bn1_beta"],
                      params["bn1_mean"], params["bn1_var"])
    s2, b2 = _fold_bn(params["bn2_gamma"], params["bn2_beta"],
                      params["bn2_mean"], params["bn2_var"])
    d = params["d"].reshape(()).astype(jnp.float32)

    # PyTorch (O, I, kh, kw) -> (O, 9*I), patch rows ordered k*Cin + c with
    # k = kh*3 + kw.  bn2's scale folds into w1; the scalar d folds into w2.
    w1 = jnp.transpose(params["conv1_w"].astype(jnp.float32), (0, 2, 3, 1))
    w1 = (w1.reshape(Cout, 9 * Cin) * s2).astype(jnp.bfloat16)
    w2 = jnp.transpose(params["conv2_w"].astype(jnp.float32), (0, 2, 3, 1))
    w2 = (w2.reshape(Cout, 9 * Cout) * d).astype(jnp.bfloat16)

    # ---- padded-flattened, lane-dense input layout ---------------------------
    xp = jnp.pad(x, ((0, 0), (0, 0), (1, 1), (1, 1))).reshape(N, Cin, S)
    xp = jnp.pad(xp, ((0, 0), (0, 0), (0, Spad - S)))

    # Interior mask: 1 inside the original HxW window, 0 on the conv pad
    # border and on the Spad - S lane padding; replicated per image in a step.
    hh = jnp.arange(Hp)
    ww = jnp.arange(Wp)
    m2d = ((hh >= 1) & (hh <= H))[:, None] & ((ww >= 1) & (ww <= W))[None, :]
    m1 = jnp.zeros((Spad,), jnp.float32).at[:S].set(
        m2d.reshape(S).astype(jnp.float32))
    mask = jnp.tile(m1, (Bt,))[None, :]                 # (1, L)

    kernel = functools.partial(_ds_pre_block_kernel, Wp=Wp, Spad=Spad,
                               both_preact=(block_type == "both_preact"))

    def build_call(single_buffer_consts):
        def const_spec(shape):
            nd = len(shape)
            if single_buffer_consts:
                # These blocks never change across the grid: single-buffer.
                return pl.BlockSpec(shape, lambda *_: (0,) * nd,
                                    pipeline_mode=pl.Buffered(1))
            return pl.BlockSpec(shape, lambda *_: (0,) * nd)

        return pl.pallas_call(
            kernel,
            out_shape=jax.ShapeDtypeStruct((N, Cout, Spad), jnp.float32),
            grid=(G,),
            in_specs=[
                pl.BlockSpec((Bt, Cin, Spad), lambda i: (i, 0, 0)),  # x
                const_spec((1, L)),                                  # mask
                const_spec((Cin, 1)),                                # bn1 scale
                const_spec((Cin, 1)),                                # bn1 bias
                const_spec((Cout, 9 * Cin)),                         # w1 (bf16)
                const_spec((Cout, 1)),                               # bn2 bias
                const_spec((Cout, 9 * Cout)),                        # w2 (bf16)
            ],
            out_specs=pl.BlockSpec((Bt, Cout, Spad), lambda i: (i, 0, 0)),
            scratch_shapes=[
                pltpu.VMEM((Cin, L), jnp.float32),        # bn1+relu / residual
                pltpu.VMEM((9 * Cin, L), jnp.bfloat16),   # shared conv patch
            ],
            compiler_params=pltpu.CompilerParams(
                dimension_semantics=("parallel",),        # shards across TCs
                # 32 MiB is safe on every generation (v5e scoped default is
                # 16 MiB; v7x physical is 64 MiB).  Raise toward ~96 MiB on
                # v5e/v6e only when using much larger batch/spatial tiles.
                vmem_limit_bytes=32 * 1024 * 1024,
            ),
        )

    args = (xp, mask, s1, b1, w1, b2, w2)
    try:
        out_pad = build_call(True)(*args)
    except Exception:
        # pl.Buffered(1) single-buffering not supported by this JAX version;
        # fall back to default double-buffering (identical numerics).
        out_pad = build_call(False)(*args)

    # Drop lane padding + conv pad border (cheap XLA slice), restore NCHW.
    return out_pad[:, :, :S].reshape(N, Cout, Hp, Wp)[:, :, 1:H + 1, 1:W + 1]


# ----------------------------- pure-JAX reference -----------------------------

def reference_block(x_nchw, p, block_type="both_preact"):
    x = x_nchw.astype(jnp.float32)

    def bn(v, g, b, m, var):
        g, b, m, var = (t[None, :, None, None] for t in (g, b, m, var))
        return (v - m) / jnp.sqrt(var + EPS) * g + b

    def conv(v, w):
        return lax.conv_general_dilated(
            v, w, (1, 1), "SAME",
            dimension_numbers=("NCHW", "OIHW", "NCHW"),
            precision=lax.Precision.HIGHEST)

    v = jax.nn.relu(bn(x, p["bn1_gamma"], p["bn1_beta"],
                       p["bn1_mean"], p["bn1_var"]))
    residual = x if block_type == "both_preact" else v
    v = conv(v, p["conv1_w"])
    v = jax.nn.relu(bn(v, p["bn2_gamma"], p["bn2_beta"],
                       p["bn2_mean"], p["bn2_var"]))
    v = conv(v, p["conv2_w"])
    return p["d"] * v + residual


# ----------------------------- main -----------------------------

if __name__ == "__main__":
    N, C, H, W = 2, 4, 16, 16          # in_plane = out_plane = 4
    ks = jax.random.split(jax.random.PRNGKey(0), 11)
    params = {
        "bn1_gamma": jax.random.uniform(ks[0], (C,), jnp.float32, 0.5, 1.5),
        "bn1_beta":  0.1 * jax.random.normal(ks[1], (C,), jnp.float32),
        "bn1_mean":  0.1 * jax.random.normal(ks[2], (C,), jnp.float32),
        "bn1_var":   jax.random.uniform(ks[3], (C,), jnp.float32, 0.5, 1.5),
        "conv1_w":   0.2 * jax.random.normal(ks[4], (C, C, 3, 3), jnp.float32),
        "bn2_gamma": jax.random.uniform(ks[5], (C,), jnp.float32, 0.5, 1.5),
        "bn2_beta":  0.1 * jax.random.normal(ks[6], (C,), jnp.float32),
        "bn2_mean":  0.1 * jax.random.normal(ks[7], (C,), jnp.float32),
        "bn2_var":   jax.random.uniform(ks[8], (C,), jnp.float32, 0.5, 1.5),
        "conv2_w":   0.2 * jax.random.normal(ks[9], (C, C, 3, 3), jnp.float32),
        "d":         jnp.full((1,), 0.7, jnp.float32),   # cRate
    }
    x = jax.random.normal(ks[10], (N, C, H, W), jnp.float32)

    for bt in ("both_preact", "half_preact"):
        out = jax.block_until_ready(ds_pre_basic_block(x, params, bt))
        ref = jax.block_until_ready(reference_block(x, params, bt))
        assert out.shape == (N, C, H, W), out.shape
        max_err = float(jnp.max(jnp.abs(out - ref)))
        assert jnp.allclose(out, ref, rtol=1e-2, atol=1e-2), \
            f"{bt}: max abs err = {max_err}"

    print("KERNEL_OK")
</pallas_src>

<mosaic_0001>
module attributes {stable_mosaic.version = 11 : i64} {
  func.func @_ds_pre_block_kernel(%arg0: i32, %arg1: memref<2x4x384xf32, #tpu.memory_space<vmem>>, %arg2: memref<1x768xf32, #tpu.memory_space<vmem>>, %arg3: memref<4x1xf32, #tpu.memory_space<vmem>>, %arg4: memref<4x1xf32, #tpu.memory_space<vmem>>, %arg5: memref<4x36xbf16, #tpu.memory_space<vmem>>, %arg6: memref<4x1xf32, #tpu.memory_space<vmem>>, %arg7: memref<4x36xbf16, #tpu.memory_space<vmem>>, %arg8: memref<2x4x384xf32, #tpu.memory_space<vmem>>, %arg9: memref<4x768xf32, #tpu.memory_space<vmem>>, %arg10: memref<36x768xbf16, #tpu.memory_space<vmem>>) attributes {dimension_semantics = [#tpu.dimension_semantics<parallel>], iteration_bounds = array<i64: 1>, scalar_prefetch = 0 : i64, scratch_operands = 2 : i64, tpu.core_type = #tpu.core_type<tc>, window_params = [{transform_indices = @transform_0, window_bounds = array<i64: 2, 4, 384>}, {pipeline_mode = #tpu.pipeline_mode<synchronous>, transform_indices = @transform_1, window_bounds = array<i64: 1, 768>}, {pipeline_mode = #tpu.pipeline_mode<synchronous>, transform_indices = @transform_2, window_bounds = array<i64: 4, 1>}, {pipeline_mode = #tpu.pipeline_mode<synchronous>, transform_indices = @transform_3, window_bounds = array<i64: 4, 1>}, {pipeline_mode = #tpu.pipeline_mode<synchronous>, transform_indices = @transform_4, window_bounds = array<i64: 4, 36>}, {pipeline_mode = #tpu.pipeline_mode<synchronous>, transform_indices = @transform_5, window_bounds = array<i64: 4, 1>}, {pipeline_mode = #tpu.pipeline_mode<synchronous>, transform_indices = @transform_6, window_bounds = array<i64: 4, 36>}, {transform_indices = @transform_7, window_bounds = array<i64: 2, 4, 384>}]} {
    %c0 = arith.constant 0 : index
    %c0_0 = arith.constant 0 : index
    %0 = vector.load %arg2[%c0, %c0_0] : memref<1x768xf32, #tpu.memory_space<vmem>>, vector<1x768xf32>
    %c0_1 = arith.constant 0 : index
    %c0_2 = arith.constant 0 : index
    %1 = vector.load %arg2[%c0_1, %c0_2] : memref<1x768xf32, #tpu.memory_space<vmem>>, vector<1x384xf32>
    %c0_3 = arith.constant 0 : index
    %c0_4 = arith.constant 0 : index
    %c0_5 = arith.constant 0 : index
    %2 = vector.load %arg1[%c0_3, %c0_4, %c0_5] : memref<2x4x384xf32, #tpu.memory_space<vmem>>, vector<1x4x384xf32>
    %3 = vector.shape_cast %2 : vector<1x4x384xf32> to vector<4x384xf32>
    %c0_6 = arith.constant 0 : index
    %c0_7 = arith.constant 0 : index
    %4 = vector.load %arg3[%c0_6, %c0_7] : memref<4x1xf32, #tpu.memory_space<vmem>>, vector<4x1xf32>
    %5 = vector.broadcast %4 : vector<4x1xf32> to vector<4x384xf32>
    %6 = arith.mulf %3, %5 : vector<4x384xf32>
    %c0_8 = arith.constant 0 : index
    %c0_9 = arith.constant 0 : index
    %7 = vector.load %arg4[%c0_8, %c0_9] : memref<4x1xf32, #tpu.memory_space<vmem>>, vector<4x1xf32>
    %8 = vector.broadcast %7 : vector<4x1xf32> to vector<4x384xf32>
    %9 = arith.addf %6, %8 : vector<4x384xf32>
    %cst = arith.constant 0.000000e+00 : f32
    %10 = vector.broadcast %cst : f32 to vector<4x384xf32>
    %11 = arith.maximumf %9, %10 : vector<4x384xf32>
    %12 = vector.broadcast %1 : vector<1x384xf32> to vector<4x384xf32>
    %13 = arith.mulf %12, %11 : vector<4x384xf32>
    %c0_10 = arith.constant 0 : index
    %c0_11 = arith.constant 0 : index
    %14 = vector.load %arg9[%c0_10, %c0_11] : memref<4x768xf32, #tpu.memory_space<vmem>>, vector<4x384xf32>
    tpu.vector_store %arg9[%c0_10, %c0_11], %13 {strides = array<i32>} : memref<4x768xf32, #tpu.memory_space<vmem>>, vector<4x384xf32>,
    %c1 = arith.constant 1 : index
    %c0_12 = arith.constant 0 : index
    %c0_13 = arith.constant 0 : index
    %15 = vector.load %arg1[%c1, %c0_12, %c0_13] : memref<2x4x384xf32, #tpu.memory_space<vmem>>, vector<1x4x384xf32>
    %16 = vector.shape_cast %15 : vector<1x4x384xf32> to vector<4x384xf32>
    %c0_14 = arith.constant 0 : index
    %c0_15 = arith.constant 0 : index
    %17 = vector.load %arg3[%c0_14, %c0_15] : memref<4x1xf32, #tpu.memory_space<vmem>>, vector<4x1xf32>
    %18 = vector.broadcast %17 : vector<4x1xf32> to vector<4x384xf32>
    %19 = arith.mulf %16, %18 : vector<4x384xf32>
    %c0_16 = arith.constant 0 : index
    %c0_17 = arith.constant 0 : index
    %20 = vector.load %arg4[%c0_16, %c0_17] : memref<4x1xf32, #tpu.memory_space<vmem>>, vector<4x1xf32>
    %21 = vector.broadcast %20 : vector<4x1xf32> to vector<4x384xf32>
    %22 = arith.addf %19, %21 : vector<4x384xf32>
    %cst_18 = arith.constant 0.000000e+00 : f32
    %23 = vector.broadcast %cst_18 : f32 to vector<4x384xf32>
    %24 = arith.maximumf %22, %23 : vector<4x384xf32>
    %25 = vector.broadcast %1 : vector<1x384xf32> to vector<4x384xf32>
    %26 = arith.mulf %25, %24 : vector<4x384xf32>
    %c0_19 = arith.constant 0 : index
    %c384 = arith.constant 384 : index
    %27 = vector.load %arg9[%c0_19, %c384] : memref<4x768xf32, #tpu.memory_space<vmem>>, vector<4x384xf32>
    tpu.vector_store %arg9[%c0_19, %c384], %26 {strides = array<i32>} : memref<4x768xf32, #tpu.memory_space<vmem>>, vector<4x384xf32>,
    %c0_20 = arith.constant 0 : index
    %c0_21 = arith.constant 0 : index
    %28 = vector.load %arg9[%c0_20, %c0_21] : memref<4x768xf32, #tpu.memory_space<vmem>>, vector<4x768xf32>
    %c19_i32 = arith.constant 19 : i32
    %29 = tpu.dynamic_rotate %28 by %c19_i32 dim 1 : vector<4x768xf32>, i32 -> vector<4x768xf32>
    %30 = arith.truncf %29 : vector<4x768xf32> to vector<4x768xbf16>
    %c0_22 = arith.constant 0 : index
    %c0_23 = arith.constant 0 : index
    %31 = vector.load %arg10[%c0_22, %c0_23] : memref<36x768xbf16, #tpu.memory_space<vmem>>, vector<4x768xbf16>
    tpu.vector_store %arg10[%c0_22, %c0_23], %30 {strides = array<i32>} : memref<36x768xbf16, #tpu.memory_space<vmem>>, vector<4x768xbf16>,
    %c18_i32 = arith.constant 18 : i32
    %32 = tpu.dynamic_rotate %28 by %c18_i32 dim 1 : vector<4x768xf32>, i32 -> vector<4x768xf32>
    %33 = arith.truncf %32 : vector<4x768xf32> to vector<4x768xbf16>
    %c4 = arith.constant 4 : index
    %c0_24 = arith.constant 0 : index
    %34 = vector.load %arg10[%c4, %c0_24] : memref<36x768xbf16, #tpu.memory_space<vmem>>, vector<4x768xbf16>
    tpu.vector_store %arg10[%c4, %c0_24], %33 {strides = array<i32>} : memref<36x768xbf16, #tpu.memory_space<vmem>>, vector<4x768xbf16>,
    %c17_i32 = arith.constant 17 : i32
    %35 = tpu.dynamic_rotate %28 by %c17_i32 dim 1 : vector<4x768xf32>, i32 -> vector<4x768xf32>
    %36 = arith.truncf %35 : vector<4x768xf32> to vector<4x768xbf16>
    %c8 = arith.constant 8 : index
    %c0_25 = arith.constant 0 : index
    %37 = vector.load %arg10[%c8, %c0_25] : memref<36x768xbf16, #tpu.memory_space<vmem>>, vector<4x768xbf16>
    tpu.vector_store %arg10[%c8, %c0_25], %36 {strides = array<i32>} : memref<36x768xbf16, #tpu.memory_space<vmem>>, vector<4x768xbf16>,
    %c1_i32 = arith.constant 1 : i32
    %38 = tpu.dynamic_rotate %28 by %c1_i32 dim 1 : vector<4x768xf32>, i32 -> vector<4x768xf32>
    %39 = arith.truncf %38 : vector<4x768xf32> to vector<4x768xbf16>
    %c12 = arith.constant 12 : index
    %c0_26 = arith.constant 0 : index
    %40 = vector.load %arg10[%c12, %c0_26] : memref<36x768xbf16, #tpu.memory_space<vmem>>, vector<4x768xbf16>
    tpu.vector_store %arg10[%c12, %c0_26], %39 {strides = array<i32>} : memref<36x768xbf16, #tpu.memory_space<vmem>>, vector<4x768xbf16>,
    %41 = arith.truncf %28 : vector<4x768xf32> to vector<4x768xbf16>
    %c16 = arith.constant 16 : index
    %c0_27 = arith.constant 0 : index
    %42 = vector.load %arg10[%c16, %c0_27] : memref<36x768xbf16, #tpu.memory_space<vmem>>, vector<4x768xbf16>
    tpu.vector_store %arg10[%c16, %c0_27], %41 {strides = array<i32>} : memref<36x768xbf16, #tpu.memory_space<vmem>>, vector<4x768xbf16>,
    %c767_i32 = arith.constant 767 : i32
    %43 = tpu.dynamic_rotate %28 by %c767_i32 dim 1 : vector<4x768xf32>, i32 -> vector<4x768xf32>
    %44 = arith.truncf %43 : vector<4x768xf32> to vector<4x768xbf16>
    %c20 = arith.constant 20 : index
    %c0_28 = arith.constant 0 : index
    %45 = vector.load %arg10[%c20, %c0_28] : memref<36x768xbf16, #tpu.memory_space<vmem>>, vector<4x768xbf16>
    tpu.vector_store %arg10[%c20, %c0_28], %44 {strides = array<i32>} : memref<36x768xbf16, #tpu.memory_space<vmem>>, vector<4x768xbf16>,
    %c751_i32 = arith.constant 751 : i32
    %46 = tpu.dynamic_rotate %28 by %c751_i32 dim 1 : vector<4x768xf32>, i32 -> vector<4x768xf32>
    %47 = arith.truncf %46 : vector<4x768xf32> to vector<4x768xbf16>
    %c24 = arith.constant 24 : index
    %c0_29 = arith.constant 0 : index
    %48 = vector.load %arg10[%c24, %c0_29] : memref<36x768xbf16, #tpu.memory_space<vmem>>, vector<4x768xbf16>
    tpu.vector_store %arg10[%c24, %c0_29], %47 {strides = array<i32>} : memref<36x768xbf16, #tpu.memory_space<vmem>>, vector<4x768xbf16>,
    %c750_i32 = arith.constant 750 : i32
    %49 = tpu.dynamic_rotate %28 by %c750_i32 dim 1 : vector<4x768xf32>, i32 -> vector<4x768xf32>
    %50 = arith.truncf %49 : vector<4x768xf32> to vector<4x768xbf16>
    %c28 = arith.constant 28 : index
    %c0_30 = arith.constant 0 : index
    %51 = vector.load %arg10[%c28, %c0_30] : memref<36x768xbf16, #tpu.memory_space<vmem>>, vector<4x768xbf16>
    tpu.vector_store %arg10[%c28, %c0_30], %50 {strides = array<i32>} : memref<36x768xbf16, #tpu.memory_space<vmem>>, vector<4x768xbf16>,
    %c749_i32 = arith.constant 749 : i32
    %52 = tpu.dynamic_rotate %28 by %c749_i32 dim 1 : vector<4x768xf32>, i32 -> vector<4x768xf32>
    %53 = arith.truncf %52 : vector<4x768xf32> to vector<4x768xbf16>
    %c32 = arith.constant 32 : index
    %c0_31 = arith.constant 0 : index
    %54 = vector.load %arg10[%c32, %c0_31] : memref<36x768xbf16, #tpu.memory_space<vmem>>, vector<4x768xbf16>
    tpu.vector_store %arg10[%c32, %c0_31], %53 {strides = array<i32>} : memref<36x768xbf16, #tpu.memory_space<vmem>>, vector<4x768xbf16>,
    %c0_32 = arith.constant 0 : index
    %c0_33 = arith.constant 0 : index
    %55 = vector.load %arg5[%c0_32, %c0_33] : memref<4x36xbf16, #tpu.memory_space<vmem>>, vector<4x36xbf16>
    %c0_34 = arith.constant 0 : index
    %c0_35 = arith.constant 0 : index
    %56 = vector.load %arg10[%c0_34, %c0_35] : memref<36x768xbf16, #tpu.memory_space<vmem>>, vector<36x768xbf16>
    %cst_36 = arith.constant dense<0.000000e+00> : vector<4x768xf32>
    %57 = tpu.matmul %55, %56, %cst_36 {dimension_numbers = #tpu.dot_dimension_numbers<[1], [0], [0], [1], [0, 0, 1, 1], [], []>} : vector<4x36xbf16>, vector<36x768xbf16>, vector<4x768xf32> -> vector<4x768xf32>
    %c0_37 = arith.constant 0 : index
    %c0_38 = arith.constant 0 : index
    %58 = vector.load %arg6[%c0_37, %c0_38] : memref<4x1xf32, #tpu.memory_space<vmem>>, vector<4x1xf32>
    %59 = vector.broadcast %58 : vector<4x1xf32> to vector<4x768xf32>
    %60 = arith.addf %57, %59 : vector<4x768xf32>
    %cst_39 = arith.constant 0.000000e+00 : f32
    %61 = vector.broadcast %cst_39 : f32 to vector<4x768xf32>
    %62 = arith.maximumf %60, %61 : vector<4x768xf32>
    %63 = vector.broadcast %0 : vector<1x768xf32> to vector<4x768xf32>
    %64 = arith.mulf %63, %62 : vector<4x768xf32>
    %c19_i32_40 = arith.constant 19 : i32
    %65 = tpu.dynamic_rotate %64 by %c19_i32_40 dim 1 : vector<4x768xf32>, i32 -> vector<4x768xf32>
    %66 = arith.truncf %65 : vector<4x768xf32> to vector<4x768xbf16>
    %c0_41 = arith.constant 0 : index
    %c0_42 = arith.constant 0 : index
    %67 = vector.load %arg10[%c0_41, %c0_42] : memref<36x768xbf16, #tpu.memory_space<vmem>>, vector<4x768xbf16>
    tpu.vector_store %arg10[%c0_41, %c0_42], %66 {strides = array<i32>} : memref<36x768xbf16, #tpu.memory_space<vmem>>, vector<4x768xbf16>,
    %c18_i32_43 = arith.constant 18 : i32
    %68 = tpu.dynamic_rotate %64 by %c18_i32_43 dim 1 : vector<4x768xf32>, i32 -> vector<4x768xf32>
    %69 = arith.truncf %68 : vector<4x768xf32> to vector<4x768xbf16>
    %c4_44 = arith.constant 4 : index
    %c0_45 = arith.constant 0 : index
    %70 = vector.load %arg10[%c4_44, %c0_45] : memref<36x768xbf16, #tpu.memory_space<vmem>>, vector<4x768xbf16>
    tpu.vector_store %arg10[%c4_44, %c0_45], %69 {strides = array<i32>} : memref<36x768xbf16, #tpu.memory_space<vmem>>, vector<4x768xbf16>,
    %c17_i32_46 = arith.constant 17 : i32
    %71 = tpu.dynamic_rotate %64 by %c17_i32_46 dim 1 : vector<4x768xf32>, i32 -> vector<4x768xf32>
    %72 = arith.truncf %71 : vector<4x768xf32> to vector<4x768xbf16>
    %c8_47 = arith.constant 8 : index
    %c0_48 = arith.constant 0 : index
    %73 = vector.load %arg10[%c8_47, %c0_48] : memref<36x768xbf16, #tpu.memory_space<vmem>>, vector<4x768xbf16>
    tpu.vector_store %arg10[%c8_47, %c0_48], %72 {strides = array<i32>} : memref<36x768xbf16, #tpu.memory_space<vmem>>, vector<4x768xbf16>,
    %c1_i32_49 = arith.constant 1 : i32
    %74 = tpu.dynamic_rotate %64 by %c1_i32_49 dim 1 : vector<4x768xf32>, i32 -> vector<4x768xf32>
    %75 = arith.truncf %74 : vector<4x768xf32> to vector<4x768xbf16>
    %c12_50 = arith.constant 12 : index
    %c0_51 = arith.constant 0 : index
    %76 = vector.load %arg10[%c12_50, %c0_51] : memref<36x768xbf16, #tpu.memory_space<vmem>>, vector<4x768xbf16>
    tpu.vector_store %arg10[%c12_50, %c0_51], %75 {strides = array<i32>} : memref<36x768xbf16, #tpu.memory_space<vmem>>, vector<4x768xbf16>,
    %77 = arith.truncf %64 : vector<4x768xf32> to vector<4x768xbf16>
    %c16_52 = arith.constant 16 : index
    %c0_53 = arith.constant 0 : index
    %78 = vector.load %arg10[%c16_52, %c0_53] : memref<36x768xbf16, #tpu.memory_space<vmem>>, vector<4x768xbf16>
    tpu.vector_store %arg10[%c16_52, %c0_53], %77 {strides = array<i32>} : memref<36x768xbf16, #tpu.memory_space<vmem>>, vector<4x768xbf16>,
    %c767_i32_54 = arith.constant 767 : i32
    %79 = tpu.dynamic_rotate %64 by %c767_i32_54 dim 1 : vector<4x768xf32>, i32 -> vector<4x768xf32>
    %80 = arith.truncf %79 : vector<4x768xf32> to vector<4x768xbf16>
    %c20_55 = arith.constant 20 : index
    %c0_56 = arith.constant 0 : index
    %81 = vector.load %arg10[%c20_55, %c0_56] : memref<36x768xbf16, #tpu.memory_space<vmem>>, vector<4x768xbf16>
    tpu.vector_store %arg10[%c20_55, %c0_56], %80 {strides = array<i32>} : memref<36x768xbf16, #tpu.memory_space<vmem>>, vector<4x768xbf16>,
    %c751_i32_57 = arith.constant 751 : i32
    %82 = tpu.dynamic_rotate %64 by %c751_i32_57 dim 1 : vector<4x768xf32>, i32 -> vector<4x768xf32>
    %83 = arith.truncf %82 : vector<4x768xf32> to vector<4x768xbf16>
    %c24_58 = arith.constant 24 : index
    %c0_59 = arith.constant 0 : index
    %84 = vector.load %arg10[%c24_58, %c0_59] : memref<36x768xbf16, #tpu.memory_space<vmem>>, vector<4x768xbf16>
    tpu.vector_store %arg10[%c24_58, %c0_59], %83 {strides = array<i32>} : memref<36x768xbf16, #tpu.memory_space<vmem>>, vector<4x768xbf16>,
    %c750_i32_60 = arith.constant 750 : i32
    %85 = tpu.dynamic_rotate %64 by %c750_i32_60 dim 1 : vector<4x768xf32>, i32 -> vector<4x768xf32>
    %86 = arith.truncf %85 : vector<4x768xf32> to vector<4x768xbf16>
    %c28_61 = arith.constant 28 : index
    %c0_62 = arith.constant 0 : index
    %87 = vector.load %arg10[%c28_61, %c0_62] : memref<36x768xbf16, #tpu.memory_space<vmem>>, vector<4x768xbf16>
    tpu.vector_store %arg10[%c28_61, %c0_62], %86 {strides = array<i32>} : memref<36x768xbf16, #tpu.memory_space<vmem>>, vector<4x768xbf16>,
    %c749_i32_63 = arith.constant 749 : i32
    %88 = tpu.dynamic_rotate %64 by %c749_i32_63 dim 1 : vector<4x768xf32>, i32 -> vector<4x768xf32>
    %89 = arith.truncf %88 : vector<4x768xf32> to vector<4x768xbf16>
    %c32_64 = arith.constant 32 : index
    %c0_65 = arith.constant 0 : index
    %90 = vector.load %arg10[%c32_64, %c0_65] : memref<36x768xbf16, #tpu.memory_space<vmem>>, vector<4x768xbf16>
    tpu.vector_store %arg10[%c32_64, %c0_65], %89 {strides = array<i32>} : memref<36x768xbf16, #tpu.memory_space<vmem>>, vector<4x768xbf16>,
    %c0_66 = arith.constant 0 : index
    %c0_67 = arith.constant 0 : index
    %91 = vector.load %arg7[%c0_66, %c0_67] : memref<4x36xbf16, #tpu.memory_space<vmem>>, vector<4x36xbf16>
    %c0_68 = arith.constant 0 : index
    %c0_69 = arith.constant 0 : index
    %92 = vector.load %arg10[%c0_68, %c0_69] : memref<36x768xbf16, #tpu.memory_space<vmem>>, vector<36x768xbf16>
    %cst_70 = arith.constant dense<0.000000e+00> : vector<4x768xf32>
    %93 = tpu.matmul %91, %92, %cst_70 {dimension_numbers = #tpu.dot_dimension_numbers<[1], [0], [0], [1], [0, 0, 1, 1], [], []>} : vector<4x36xbf16>, vector<36x768xbf16>, vector<4x768xf32> -> vector<4x768xf32>
    %c0_71 = arith.constant 0 : index
    %c0_72 = arith.constant 0 : index
    %c0_73 = arith.constant 0 : index
    %94 = vector.load %arg1[%c0_71, %c0_72, %c0_73] : memref<2x4x384xf32, #tpu.memory_space<vmem>>, vector<1x4x384xf32>
    %95 = vector.shape_cast %94 : vector<1x4x384xf32> to vector<4x384xf32>
    %96 = vector.extract_strided_slice %93 {offsets = [0, 0], sizes = [4, 384], strides = [1, 1]} : vector<4x768xf32> to vector<4x384xf32>
    %97 = arith.addf %96, %95 : vector<4x384xf32>
    %c0_74 = arith.constant 0 : index
    %c0_75 = arith.constant 0 : index
    %c0_76 = arith.constant 0 : index
    %98 = vector.load %arg8[%c0_74, %c0_75, %c0_76] : memref<2x4x384xf32, #tpu.memory_space<vmem>>, vector<1x4x384xf32>
    %99 = vector.shape_cast %98 : vector<1x4x384xf32> to vector<4x384xf32>
    %100 = vector.shape_cast %97 : vector<4x384xf32> to vector<1x4x384xf32>
    tpu.vector_store %arg8[%c0_74, %c0_75, %c0_76], %100 {strides = array<i32>} : memref<2x4x384xf32, #tpu.memory_space<vmem>>, vector<1x4x384xf32>,
    %c1_77 = arith.constant 1 : index
    %c0_78 = arith.constant 0 : index
    %c0_79 = arith.constant 0 : index
    %101 = vector.load %arg1[%c1_77, %c0_78, %c0_79] : memref<2x4x384xf32, #tpu.memory_space<vmem>>, vector<1x4x384xf32>
    %102 = vector.shape_cast %101 : vector<1x4x384xf32> to vector<4x384xf32>
    %103 = vector.extract_strided_slice %93 {offsets = [0, 384], sizes = [4, 384], strides = [1, 1]} : vector<4x768xf32> to vector<4x384xf32>
    %104 = arith.addf %103, %102 : vector<4x384xf32>
    %c1_80 = arith.constant 1 : index
    %c0_81 = arith.constant 0 : index
    %c0_82 = arith.constant 0 : index
    %105 = vector.load %arg8[%c1_80, %c0_81, %c0_82] : memref<2x4x384xf32, #tpu.memory_space<vmem>>, vector<1x4x384xf32>
    %106 = vector.shape_cast %105 : vector<1x4x384xf32> to vector<4x384xf32>
    %107 = vector.shape_cast %104 : vector<4x384xf32> to vector<1x4x384xf32>
    tpu.vector_store %arg8[%c1_80, %c0_81, %c0_82], %107 {strides = array<i32>} : memref<2x4x384xf32, #tpu.memory_space<vmem>>, vector<1x4x384xf32>,
    return
  }
  func.func @transform_0(%arg0: i32) -> (i32, i32, i32) {
    %c0_i32 = arith.constant 0 : i32
    %c0_i32_0 = arith.constant 0 : i32
    %c0_i32_1 = arith.constant 0 : i32
    return %arg0, %c0_i32, %c0_i32_0 : i32, i32, i32
  }
  func.func @transform_1(%arg0: i32) -> (i32, i32) {
    %c0_i32 = arith.constant 0 : i32
    %c0_i32_0 = arith.constant 0 : i32
    %c0_i32_1 = arith.constant 0 : i32
    return %c0_i32, %c0_i32_0 : i32, i32
  }
  func.func @transform_2(%arg0: i32) -> (i32, i32) {
    %c0_i32 = arith.constant 0 : i32
    %c0_i32_0 = arith.constant 0 : i32
    %c0_i32_1 = arith.constant 0 : i32
    return %c0_i32, %c0_i32_0 : i32, i32
  }
  func.func @transform_3(%arg0: i32) -> (i32, i32) {
    %c0_i32 = arith.constant 0 : i32
    %c0_i32_0 = arith.constant 0 : i32
    %c0_i32_1 = arith.constant 0 : i32
    return %c0_i32, %c0_i32_0 : i32, i32
  }
  func.func @transform_4(%arg0: i32) -> (i32, i32) {
    %c0_i32 = arith.constant 0 : i32
    %c0_i32_0 = arith.constant 0 : i32
    %c0_i32_1 = arith.constant 0 : i32
    return %c0_i32, %c0_i32_0 : i32, i32
  }
  func.func @transform_5(%arg0: i32) -> (i32, i32) {
    %c0_i32 = arith.constant 0 : i32
    %c0_i32_0 = arith.constant 0 : i32
    %c0_i32_1 = arith.constant 0 : i32
    return %c0_i32, %c0_i32_0 : i32, i32
  }
  func.func @transform_6(%arg0: i32) -> (i32, i32) {
    %c0_i32 = arith.constant 0 : i32
    %c0_i32_0 = arith.constant 0 : i32
    %c0_i32_1 = arith.constant 0 : i32
    return %c0_i32, %c0_i32_0 : i32, i32
  }
  func.func @transform_7(%arg0: i32) -> (i32, i32, i32) {
    %c0_i32 = arith.constant 0 : i32
    %c0_i32_0 = arith.constant 0 : i32
    %c0_i32_1 = arith.constant 0 : i32
    return %arg0, %c0_i32, %c0_i32_0 : i32, i32, i32
  }
}

module attributes {stable_mosaic.version = 11 : i64} {
  func.func @_ds_pre_block_kernel(%arg0: i32, %arg1: memref<2x4x384xf32, #tpu.memory_space<vmem>>, %arg2: memref<1x768xf32, #tpu.memory_space<vmem>>, %arg3: memref<4x1xf32, #tpu.memory_space<vmem>>, %arg4: memref<4x1xf32, #tpu.memory_space<vmem>>, %arg5: memref<4x36xbf16, #tpu.memory_space<vmem>>, %arg6: memref<4x1xf32, #tpu.memory_space<vmem>>, %arg7: memref<4x36xbf16, #tpu.memory_space<vmem>>, %arg8: memref<2x4x384xf32, #tpu.memory_space<vmem>>, %arg9: memref<4x768xf32, #tpu.memory_space<vmem>>, %arg10: memref<36x768xbf16, #tpu.memory_space<vmem>>) attributes {dimension_semantics = [#tpu.dimension_semantics<parallel>], iteration_bounds = array<i64: 1>, scalar_prefetch = 0 : i64, scratch_operands = 2 : i64, tpu.core_type = #tpu.core_type<tc>, window_params = [{transform_indices = @transform_0, window_bounds = array<i64: 2, 4, 384>}, {pipeline_mode = #tpu.pipeline_mode<synchronous>, transform_indices = @transform_1, window_bounds = array<i64: 1, 768>}, {pipeline_mode = #tpu.pipeline_mode<synchronous>, transform_indices = @transform_2, window_bounds = array<i64: 4, 1>}, {pipeline_mode = #tpu.pipeline_mode<synchronous>, transform_indices = @transform_3, window_bounds = array<i64: 4, 1>}, {pipeline_mode = #tpu.pipeline_mode<synchronous>, transform_indices = @transform_4, window_bounds = array<i64: 4, 36>}, {pipeline_mode = #tpu.pipeline_mode<synchronous>, transform_indices = @transform_5, window_bounds = array<i64: 4, 1>}, {pipeline_mode = #tpu.pipeline_mode<synchronous>, transform_indices = @transform_6, window_bounds = array<i64: 4, 36>}, {transform_indices = @transform_7, window_bounds = array<i64: 2, 4, 384>}]} {
    %c0 = arith.constant 0 : index
    %c0_0 = arith.constant 0 : index
    %0 = vector.load %arg2[%c0, %c0_0] : memref<1x768xf32, #tpu.memory_space<vmem>>, vector<1x768xf32>
    %c0_1 = arith.constant 0 : index
    %c0_2 = arith.constant 0 : index
    %1 = vector.load %arg2[%c0_1, %c0_2] : memref<1x768xf32, #tpu.memory_space<vmem>>, vector<1x384xf32>
    %c0_3 = arith.constant 0 : index
    %c0_4 = arith.constant 0 : index
    %c0_5 = arith.constant 0 : index
    %2 = vector.load %arg1[%c0_3, %c0_4, %c0_5] : memref<2x4x384xf32, #tpu.memory_space<vmem>>, vector<1x4x384xf32>
    %3 = vector.shape_cast %2 : vector<1x4x384xf32> to vector<4x384xf32>
    %c0_6 = arith.constant 0 : index
    %c0_7 = arith.constant 0 : index
    %4 = vector.load %arg3[%c0_6, %c0_7] : memref<4x1xf32, #tpu.memory_space<vmem>>, vector<4x1xf32>
    %5 = vector.broadcast %4 : vector<4x1xf32> to vector<4x384xf32>
    %6 = arith.mulf %3, %5 : vector<4x384xf32>
    %c0_8 = arith.constant 0 : index
    %c0_9 = arith.constant 0 : index
    %7 = vector.load %arg4[%c0_8, %c0_9] : memref<4x1xf32, #tpu.memory_space<vmem>>, vector<4x1xf32>
    %8 = vector.broadcast %7 : vector<4x1xf32> to vector<4x384xf32>
    %9 = arith.addf %6, %8 : vector<4x384xf32>
    %cst = arith.constant 0.000000e+00 : f32
    %10 = vector.broadcast %cst : f32 to vector<4x384xf32>
    %11 = arith.maximumf %9, %10 : vector<4x384xf32>
    %12 = vector.broadcast %1 : vector<1x384xf32> to vector<4x384xf32>
    %13 = arith.mulf %12, %11 : vector<4x384xf32>
    %c0_10 = arith.constant 0 : index
    %c0_11 = arith.constant 0 : index
    %14 = vector.load %arg9[%c0_10, %c0_11] : memref<4x768xf32, #tpu.memory_space<vmem>>, vector<4x384xf32>
    tpu.vector_store %arg9[%c0_10, %c0_11], %13 {strides = array<i32>} : memref<4x768xf32, #tpu.memory_space<vmem>>, vector<4x384xf32>,
    %c1 = arith.constant 1 : index
    %c0_12 = arith.constant 0 : index
    %c0_13 = arith.constant 0 : index
    %15 = vector.load %arg1[%c1, %c0_12, %c0_13] : memref<2x4x384xf32, #tpu.memory_space<vmem>>, vector<1x4x384xf32>
    %16 = vector.shape_cast %15 : vector<1x4x384xf32> to vector<4x384xf32>
    %c0_14 = arith.constant 0 : index
    %c0_15 = arith.constant 0 : index
    %17 = vector.load %arg3[%c0_14, %c0_15] : memref<4x1xf32, #tpu.memory_space<vmem>>, vector<4x1xf32>
    %18 = vector.broadcast %17 : vector<4x1xf32> to vector<4x384xf32>
    %19 = arith.mulf %16, %18 : vector<4x384xf32>
    %c0_16 = arith.constant 0 : index
    %c0_17 = arith.constant 0 : index
    %20 = vector.load %arg4[%c0_16, %c0_17] : memref<4x1xf32, #tpu.memory_space<vmem>>, vector<4x1xf32>
    %21 = vector.broadcast %20 : vector<4x1xf32> to vector<4x384xf32>
    %22 = arith.addf %19, %21 : vector<4x384xf32>
    %cst_18 = arith.constant 0.000000e+00 : f32
    %23 = vector.broadcast %cst_18 : f32 to vector<4x384xf32>
    %24 = arith.maximumf %22, %23 : vector<4x384xf32>
    %25 = vector.broadcast %1 : vector<1x384xf32> to vector<4x384xf32>
    %26 = arith.mulf %25, %24 : vector<4x384xf32>
    %c0_19 = arith.constant 0 : index
    %c384 = arith.constant 384 : index
    %27 = vector.load %arg9[%c0_19, %c384] : memref<4x768xf32, #tpu.memory_space<vmem>>, vector<4x384xf32>
    tpu.vector_store %arg9[%c0_19, %c384], %26 {strides = array<i32>} : memref<4x768xf32, #tpu.memory_space<vmem>>, vector<4x384xf32>,
    %c0_20 = arith.constant 0 : index
    %c0_21 = arith.constant 0 : index
    %28 = vector.load %arg9[%c0_20, %c0_21] : memref<4x768xf32, #tpu.memory_space<vmem>>, vector<4x768xf32>
    %c19_i32 = arith.constant 19 : i32
    %29 = tpu.dynamic_rotate %28 by %c19_i32 dim 1 : vector<4x768xf32>, i32 -> vector<4x768xf32>
    %30 = arith.truncf %29 : vector<4x768xf32> to vector<4x768xbf16>
    %c0_22 = arith.constant 0 : index
    %c0_23 = arith.constant 0 : index
    %31 = vector.load %arg10[%c0_22, %c0_23] : memref<36x768xbf16, #tpu.memory_space<vmem>>, vector<4x768xbf16>
    tpu.vector_store %arg10[%c0_22, %c0_23], %30 {strides = array<i32>} : memref<36x768xbf16, #tpu.memory_space<vmem>>, vector<4x768xbf16>,
    %c18_i32 = arith.constant 18 : i32
    %32 = tpu.dynamic_rotate %28 by %c18_i32 dim 1 : vector<4x768xf32>, i32 -> vector<4x768xf32>
    %33 = arith.truncf %32 : vector<4x768xf32> to vector<4x768xbf16>
    %c4 = arith.constant 4 : index
    %c0_24 = arith.constant 0 : index
    %34 = vector.load %arg10[%c4, %c0_24] : memref<36x768xbf16, #tpu.memory_space<vmem>>, vector<4x768xbf16>
    tpu.vector_store %arg10[%c4, %c0_24], %33 {strides = array<i32>} : memref<36x768xbf16, #tpu.memory_space<vmem>>, vector<4x768xbf16>,
    %c17_i32 = arith.constant 17 : i32
    %35 = tpu.dynamic_rotate %28 by %c17_i32 dim 1 : vector<4x768xf32>, i32 -> vector<4x768xf32>
    %36 = arith.truncf %35 : vector<4x768xf32> to vector<4x768xbf16>
    %c8 = arith.constant 8 : index
    %c0_25 = arith.constant 0 : index
    %37 = vector.load %arg10[%c8, %c0_25] : memref<36x768xbf16, #tpu.memory_space<vmem>>, vector<4x768xbf16>
    tpu.vector_store %arg10[%c8, %c0_25], %36 {strides = array<i32>} : memref<36x768xbf16, #tpu.memory_space<vmem>>, vector<4x768xbf16>,
    %c1_i32 = arith.constant 1 : i32
    %38 = tpu.dynamic_rotate %28 by %c1_i32 dim 1 : vector<4x768xf32>, i32 -> vector<4x768xf32>
    %39 = arith.truncf %38 : vector<4x768xf32> to vector<4x768xbf16>
    %c12 = arith.constant 12 : index
    %c0_26 = arith.constant 0 : index
    %40 = vector.load %arg10[%c12, %c0_26] : memref<36x768xbf16, #tpu.memory_space<vmem>>, vector<4x768xbf16>
    tpu.vector_store %arg10[%c12, %c0_26], %39 {strides = array<i32>} : memref<36x768xbf16, #tpu.memory_space<vmem>>, vector<4x768xbf16>,
    %41 = arith.truncf %28 : vector<4x768xf32> to vector<4x768xbf16>
    %c16 = arith.constant 16 : index
    %c0_27 = arith.constant 0 : index
    %42 = vector.load %arg10[%c16, %c0_27] : memref<36x768xbf16, #tpu.memory_space<vmem>>, vector<4x768xbf16>
    tpu.vector_store %arg10[%c16, %c0_27], %41 {strides = array<i32>} : memref<36x768xbf16, #tpu.memory_space<vmem>>, vector<4x768xbf16>,
    %c767_i32 = arith.constant 767 : i32
    %43 = tpu.dynamic_rotate %28 by %c767_i32 dim 1 : vector<4x768xf32>, i32 -> vector<4x768xf32>
    %44 = arith.truncf %43 : vector<4x768xf32> to vector<4x768xbf16>
    %c20 = arith.constant 20 : index
    %c0_28 = arith.constant 0 : index
    %45 = vector.load %arg10[%c20, %c0_28] : memref<36x768xbf16, #tpu.memory_space<vmem>>, vector<4x768xbf16>
    tpu.vector_store %arg10[%c20, %c0_28], %44 {strides = array<i32>} : memref<36x768xbf16, #tpu.memory_space<vmem>>, vector<4x768xbf16>,
    %c751_i32 = arith.constant 751 : i32
    %46 = tpu.dynamic_rotate %28 by %c751_i32 dim 1 : vector<4x768xf32>, i32 -> vector<4x768xf32>
    %47 = arith.truncf %46 : vector<4x768xf32> to vector<4x768xbf16>
    %c24 = arith.constant 24 : index
    %c0_29 = arith.constant 0 : index
    %48 = vector.load %arg10[%c24, %c0_29] : memref<36x768xbf16, #tpu.memory_space<vmem>>, vector<4x768xbf16>
    tpu.vector_store %arg10[%c24, %c0_29], %47 {strides = array<i32>} : memref<36x768xbf16, #tpu.memory_space<vmem>>, vector<4x768xbf16>,
    %c750_i32 = arith.constant 750 : i32
    %49 = tpu.dynamic_rotate %28 by %c750_i32 dim 1 : vector<4x768xf32>, i32 -> vector<4x768xf32>
    %50 = arith.truncf %49 : vector<4x768xf32> to vector<4x768xbf16>
    %c28 = arith.constant 28 : index
    %c0_30 = arith.constant 0 : index
    %51 = vector.load %arg10[%c28, %c0_30] : memref<36x768xbf16, #tpu.memory_space<vmem>>, vector<4x768xbf16>
    tpu.vector_store %arg10[%c28, %c0_30], %50 {strides = array<i32>} : memref<36x768xbf16, #tpu.memory_space<vmem>>, vector<4x768xbf16>,
    %c749_i32 = arith.constant 749 : i32
    %52 = tpu.dynamic_rotate %28 by %c749_i32 dim 1 : vector<4x768xf32>, i32 -> vector<4x768xf32>
    %53 = arith.truncf %52 : vector<4x768xf32> to vector<4x768xbf16>
    %c32 = arith.constant 32 : index
    %c0_31 = arith.constant 0 : index
    %54 = vector.load %arg10[%c32, %c0_31] : memref<36x768xbf16, #tpu.memory_space<vmem>>, vector<4x768xbf16>
    tpu.vector_store %arg10[%c32, %c0_31], %53 {strides = array<i32>} : memref<36x768xbf16, #tpu.memory_space<vmem>>, vector<4x768xbf16>,
    %c0_32 = arith.constant 0 : index
    %c0_33 = arith.constant 0 : index
    %55 = vector.load %arg5[%c0_32, %c0_33] : memref<4x36xbf16, #tpu.memory_space<vmem>>, vector<4x36xbf16>
    %c0_34 = arith.constant 0 : index
    %c0_35 = arith.constant 0 : index
    %56 = vector.load %arg10[%c0_34, %c0_35] : memref<36x768xbf16, #tpu.memory_space<vmem>>, vector<36x768xbf16>
    %cst_36 = arith.constant dense<0.000000e+00> : vector<4x768xf32>
    %57 = tpu.matmul %55, %56, %cst_36 {dimension_numbers = #tpu.dot_dimension_numbers<[1], [0], [0], [1], [0, 0, 1, 1], [], []>} : vector<4x36xbf16>, vector<36x768xbf16>, vector<4x768xf32> -> vector<4x768xf32>
    %c0_37 = arith.constant 0 : index
    %c0_38 = arith.constant 0 : index
    %58 = vector.load %arg6[%c0_37, %c0_38] : memref<4x1xf32, #tpu.memory_space<vmem>>, vector<4x1xf32>
    %59 = vector.broadcast %58 : vector<4x1xf32> to vector<4x768xf32>
    %60 = arith.addf %57, %59 : vector<4x768xf32>
    %cst_39 = arith.constant 0.000000e+00 : f32
    %61 = vector.broadcast %cst_39 : f32 to vector<4x768xf32>
    %62 = arith.maximumf %60, %61 : vector<4x768xf32>
    %63 = vector.broadcast %0 : vector<1x768xf32> to vector<4x768xf32>
    %64 = arith.mulf %63, %62 : vector<4x768xf32>
    %c19_i32_40 = arith.constant 19 : i32
    %65 = tpu.dynamic_rotate %64 by %c19_i32_40 dim 1 : vector<4x768xf32>, i32 -> vector<4x768xf32>
    %66 = arith.truncf %65 : vector<4x768xf32> to vector<4x768xbf16>
    %c0_41 = arith.constant 0 : index
    %c0_42 = arith.constant 0 : index
    %67 = vector.load %arg10[%c0_41, %c0_42] : memref<36x768xbf16, #tpu.memory_space<vmem>>, vector<4x768xbf16>
    tpu.vector_store %arg10[%c0_41, %c0_42], %66 {strides = array<i32>} : memref<36x768xbf16, #tpu.memory_space<vmem>>, vector<4x768xbf16>,
    %c18_i32_43 = arith.constant 18 : i32
    %68 = tpu.dynamic_rotate %64 by %c18_i32_43 dim 1 : vector<4x768xf32>, i32 -> vector<4x768xf32>
    %69 = arith.truncf %68 : vector<4x768xf32> to vector<4x768xbf16>
    %c4_44 = arith.constant 4 : index
    %c0_45 = arith.constant 0 : index
    %70 = vector.load %arg10[%c4_44, %c0_45] : memref<36x768xbf16, #tpu.memory_space<vmem>>, vector<4x768xbf16>
    tpu.vector_store %arg10[%c4_44, %c0_45], %69 {strides = array<i32>} : memref<36x768xbf16, #tpu.memory_space<vmem>>, vector<4x768xbf16>,
    %c17_i32_46 = arith.constant 17 : i32
    %71 = tpu.dynamic_rotate %64 by %c17_i32_46 dim 1 : vector<4x768xf32>, i32 -> vector<4x768xf32>
    %72 = arith.truncf %71 : vector<4x768xf32> to vector<4x768xbf16>
    %c8_47 = arith.constant 8 : index
    %c0_48 = arith.constant 0 : index
    %73 = vector.load %arg10[%c8_47, %c0_48] : memref<36x768xbf16, #tpu.memory_space<vmem>>, vector<4x768xbf16>
    tpu.vector_store %arg10[%c8_47, %c0_48], %72 {strides = array<i32>} : memref<36x768xbf16, #tpu.memory_space<vmem>>, vector<4x768xbf16>,
    %c1_i32_49 = arith.constant 1 : i32
    %74 = tpu.dynamic_rotate %64 by %c1_i32_49 dim 1 : vector<4x768xf32>, i32 -> vector<4x768xf32>
    %75 = arith.truncf %74 : vector<4x768xf32> to vector<4x768xbf16>
    %c12_50 = arith.constant 12 : index
    %c0_51 = arith.constant 0 : index
    %76 = vector.load %arg10[%c12_50, %c0_51] : memref<36x768xbf16, #tpu.memory_space<vmem>>, vector<4x768xbf16>
    tpu.vector_store %arg10[%c12_50, %c0_51], %75 {strides = array<i32>} : memref<36x768xbf16, #tpu.memory_space<vmem>>, vector<4x768xbf16>,
    %77 = arith.truncf %64 : vector<4x768xf32> to vector<4x768xbf16>
    %c16_52 = arith.constant 16 : index
    %c0_53 = arith.constant 0 : index
    %78 = vector.load %arg10[%c16_52, %c0_53] : memref<36x768xbf16, #tpu.memory_space<vmem>>, vector<4x768xbf16>
    tpu.vector_store %arg10[%c16_52, %c0_53], %77 {strides = array<i32>} : memref<36x768xbf16, #tpu.memory_space<vmem>>, vector<4x768xbf16>,
    %c767_i32_54 = arith.constant 767 : i32
    %79 = tpu.dynamic_rotate %64 by %c767_i32_54 dim 1 : vector<4x768xf32>, i32 -> vector<4x768xf32>
    %80 = arith.truncf %79 : vector<4x768xf32> to vector<4x768xbf16>
    %c20_55 = arith.constant 20 : index
    %c0_56 = arith.constant 0 : index
    %81 = vector.load %arg10[%c20_55, %c0_56] : memref<36x768xbf16, #tpu.memory_space<vmem>>, vector<4x768xbf16>
    tpu.vector_store %arg10[%c20_55, %c0_56], %80 {strides = array<i32>} : memref<36x768xbf16, #tpu.memory_space<vmem>>, vector<4x768xbf16>,
    %c751_i32_57 = arith.constant 751 : i32
    %82 = tpu.dynamic_rotate %64 by %c751_i32_57 dim 1 : vector<4x768xf32>, i32 -> vector<4x768xf32>
    %83 = arith.truncf %82 : vector<4x768xf32> to vector<4x768xbf16>
    %c24_58 = arith.constant 24 : index
    %c0_59 = arith.constant 0 : index
    %84 = vector.load %arg10[%c24_58, %c0_59] : memref<36x768xbf16, #tpu.memory_space<vmem>>, vector<4x768xbf16>
    tpu.vector_store %arg10[%c24_58, %c0_59], %83 {strides = array<i32>} : memref<36x768xbf16, #tpu.memory_space<vmem>>, vector<4x768xbf16>,
    %c750_i32_60 = arith.constant 750 : i32
    %85 = tpu.dynamic_rotate %64 by %c750_i32_60 dim 1 : vector<4x768xf32>, i32 -> vector<4x768xf32>
    %86 = arith.truncf %85 : vector<4x768xf32> to vector<4x768xbf16>
    %c28_61 = arith.constant 28 : index
    %c0_62 = arith.constant 0 : index
    %87 = vector.load %arg10[%c28_61, %c0_62] : memref<36x768xbf16, #tpu.memory_space<vmem>>, vector<4x768xbf16>
    tpu.vector_store %arg10[%c28_61, %c0_62], %86 {strides = array<i32>} : memref<36x768xbf16, #tpu.memory_space<vmem>>, vector<4x768xbf16>,
    %c749_i32_63 = arith.constant 749 : i32
    %88 = tpu.dynamic_rotate %64 by %c749_i32_63 dim 1 : vector<4x768xf32>, i32 -> vector<4x768xf32>
    %89 = arith.truncf %88 : vector<4x768xf32> to vector<4x768xbf16>
    %c32_64 = arith.constant 32 : index
    %c0_65 = arith.constant 0 : index
    %90 = vector.load %arg10[%c32_64, %c0_65] : memref<36x768xbf16, #tpu.memory_space<vmem>>, vector<4x768xbf16>
    tpu.vector_store %arg10[%c32_64, %c0_65], %89 {strides = array<i32>} : memref<36x768xbf16, #tpu.memory_space<vmem>>, vector<4x768xbf16>,
    %c0_66 = arith.constant 0 : index
    %c0_67 = arith.constant 0 : index
    %91 = vector.load %arg7[%c0_66, %c0_67] : memref<4x36xbf16, #tpu.memory_space<vmem>>, vector<4x36xbf16>
    %c0_68 = arith.constant 0 : index
    %c0_69 = arith.constant 0 : index
    %92 = vector.load %arg10[%c0_68, %c0_69] : memref<36x768xbf16, #tpu.memory_space<vmem>>, vector<36x768xbf16>
    %cst_70 = arith.constant dense<0.000000e+00> : vector<4x768xf32>
    %93 = tpu.matmul %91, %92, %cst_70 {dimension_numbers = #tpu.dot_dimension_numbers<[1], [0], [0], [1], [0, 0, 1, 1], [], []>} : vector<4x36xbf16>, vector<36x768xbf16>, vector<4x768xf32> -> vector<4x768xf32>
    %c0_71 = arith.constant 0 : index
    %c0_72 = arith.constant 0 : index
    %c0_73 = arith.constant 0 : index
    %94 = vector.load %arg1[%c0_71, %c0_72, %c0_73] : memref<2x4x384xf32, #tpu.memory_space<vmem>>, vector<1x4x384xf32>
    %95 = vector.shape_cast %94 : vector<1x4x384xf32> to vector<4x384xf32>
    %96 = vector.extract_strided_slice %93 {offsets = [0, 0], sizes = [4, 384], strides = [1, 1]} : vector<4x768xf32> to vector<4x384xf32>
    %97 = arith.addf %96, %95 : vector<4x384xf32>
    %c0_74 = arith.constant 0 : index
    %c0_75 = arith.constant 0 : index
    %c0_76 = arith.constant 0 : index
    %98 = vector.load %arg8[%c0_74, %c0_75, %c0_76] : memref<2x4x384xf32, #tpu.memory_space<vmem>>, vector<1x4x384xf32>
    %99 = vector.shape_cast %98 : vector<1x4x384xf32> to vector<4x384xf32>
    %100 = vector.shape_cast %97 : vector<4x384xf32> to vector<1x4x384xf32>
    tpu.vector_store %arg8[%c0_74, %c0_75, %c0_76], %100 {strides = array<i32>} : memref<2x4x384xf32, #tpu.memory_space<vmem>>, vector<1x4x384xf32>,
    %c1_77 = arith.constant 1 : index
    %c0_78 = arith.constant 0 : index
    %c0_79 = arith.constant 0 : index
    %101 = vector.load %arg1[%c1_77, %c0_78, %c0_79] : memref<2x4x384xf32, #tpu.memory_space<vmem>>, vector<1x4x384xf32>
    %102 = vector.shape_cast %101 : vector<1x4x384xf32> to vector<4x384xf32>
    %103 = vector.extract_strided_slice %93 {offsets = [0, 384], sizes = [4, 384], strides = [1, 1]} : vector<4x768xf32> to vector<4x384xf32>
    %104 = arith.addf %103, %102 : vector<4x384xf32>
    %c1_80 = arith.constant 1 : index
    %c0_81 = arith.constant 0 : index
    %c0_82 = arith.constant 0 : index
    %105 = vector.load %arg8[%c1_80, %c0_81, %c0_82] : memref<2x4x384xf32, #tpu.memory_space<vmem>>, vector<1x4x384xf32>
    %106 = vector.shape_cast %105 : vector<1x4x384xf32> to vector<4x384xf32>
    %107 = vector.shape_cast %104 : vector<4x384xf32> to vector<1x4x384xf32>
    tpu.vector_store %arg8[%c1_80, %c0_81, %c0_82], %107 {strides = array<i32>} : memref<2x4x384xf32, #tpu.memory_space<vmem>>, vector<1x4x384xf32>,
    return
  }
  func.func @transform_0(%arg0: i32) -> (i32, i32, i32) {
    %c0_i32 = arith.constant 0 : i32
    %c0_i32_0 = arith.constant 0 : i32
    %c0_i32_1 = arith.constant 0 : i32
    return %arg0, %c0_i32, %c0_i32_0 : i32, i32, i32
  }
  func.func @transform_1(%arg0: i32) -> (i32, i32) {
    %c0_i32 = arith.constant 0 : i32
    %c0_i32_0 = arith.constant 0 : i32
    %c0_i32_1 = arith.constant 0 : i32
    return %c0_i32, %c0_i32_0 : i32, i32
  }
  func.func @transform_2(%arg0: i32) -> (i32, i32) {
    %c0_i32 = arith.constant 0 : i32
    %c0_i32_0 = arith.constant 0 : i32
    %c0_i32_1 = arith.constant 0 : i32
    return %c0_i32, %c0_i32_0 : i32, i32
  }
  func.func @transform_3(%arg0: i32) -> (i32, i32) {
    %c0_i32 = arith.constant 0 : i32
    %c0_i32_0 = arith.constant 0 : i32
    %c0_i32_1 = arith.constant 0 : i32
    return %c0_i32, %c0_i32_0 : i32, i32
  }
  func.func @transform_4(%arg0: i32) -> (i32, i32) {
    %c0_i32 = arith.constant 0 : i32
    %c0_i32_0 = arith.constant 0 : i32
    %c0_i32_1 = arith.constant 0 : i32
    return %c0_i32, %c0_i32_0 : i32, i32
  }
  func.func @transform_5(%arg0: i32) -> (i32, i32) {
    %c0_i32 = arith.constant 0 : i32
    %c0_i32_0 = arith.constant 0 : i32
    %c0_i32_1 = arith.constant 0 : i32
    return %c0_i32, %c0_i32_0 : i32, i32
  }
  func.func @transform_6(%arg0: i32) -> (i32, i32) {
    %c0_i32 = arith.constant 0 : i32
    %c0_i32_0 = arith.constant 0 : i32
    %c0_i32_1 = arith.constant 0 : i32
    return %c0_i32, %c0_i32_0 : i32, i32
  }
  func.func @transform_7(%arg0: i32) -> (i32, i32, i32) {
    %c0_i32 = arith.constant 0 : i32
    %c0_i32_0 = arith.constant 0 : i32
    %c0_i32_1 = arith.constant 0 : i32
    return %arg0, %c0_i32, %c0_i32_0 : i32, i32, i32
  }
}

</mosaic_0001>

<llo_original>
// kernel: tpu_custom_call.1
$region0: #{tpu_custom_call.1}
  #allocation0 [shape = 'u32[]', space=smem, size = 0x4, offset = 0x4, fixed_abs, tag = 'smem constant byte address 0x4 - core index']
  #allocation1 [shape = 'u32[144,128]{1,0:T(1,128)}', space=vmem, size = 0x12000, scoped, tag = 'internal scratch']
  #allocation2 [shape = 'f32[4,768]{1,0:T(4,128)}', space=vmem, size = 0x3000, scoped, tag = 'scratch operand']
  #allocation3 [shape = 'bf16[36,768]{1,0:T(8,128)(2,1)}', space=vmem, size = 0xf000, scoped, tag = 'scratch operand']
  %s0 = inlined_call_operand.hbm [shape: f32[2,4,384], index: 0, kind: input, shape index: {}]
  %s1 = inlined_call_operand.vmem [shape: f32[1,768], index: 1, kind: input, shape index: {}]
  %s2 = inlined_call_operand.vmem [shape: f32[4,1], index: 2, kind: input, shape index: {}]
  %s3 = inlined_call_operand.vmem [shape: f32[4,1], index: 3, kind: input, shape index: {}]
  %s4 = inlined_call_operand.vmem [shape: bf16[4,36], index: 4, kind: input, shape index: {}]
  %s5 = inlined_call_operand.vmem [shape: f32[4,1], index: 5, kind: input, shape index: {}]
  %s6 = inlined_call_operand.vmem [shape: bf16[4,36], index: 6, kind: input, shape index: {}]
  %s7 = inlined_call_operand.hbm [shape: f32[2,4,384], index: 7, kind: output, shape index: {}]
  %s8 = sld [smem:[#allocation0]]
  $region42: #{tpu_custom_call.1} parent=0
    _
  %s10 = ssub.s32 1, %s8
  %s11 = scalar_select 0, %s10, %s8
  $region1: #{tpu_custom_call.1} parent=0
    #allocation4 [shape = 'u8[12288]{0}', space=vmem, size = 0x3000, scoped, tag = 'input window, operand 0, single buffered']
    #allocation5 [shape = 's32[1]{0}', space=sflag, size = 0x4, scoped, tag = 'scoped memory for tpu_custom_call.1']
    #allocation6 [shape = 's32[1]{0}', space=sflag, size = 0x4, scoped, tag = 'scoped memory for tpu_custom_call.1']
    #allocation7 [shape = 'u8[12288]{0}', space=vmem, size = 0x3000, scoped, tag = 'output window, operand 0, single buffered']
    %12 = vsyncpa [#allocation5], 0
    %13 = vsyncpa [#allocation6], 0
    // Predicated region
    $region2: #{tpu_custom_call.1} parent=1 // pred_check
      _
    $region3: #{tpu_custom_call.1} parent=1 // pred_check_branch
      %15 = sbr.rel (0) target = $region5
    $region4: #{tpu_custom_call.1} parent=1 // pred_region
      %s17 = ssub.s32 384, 384
      %18 = vsyncadd [#allocation5], %s17
      %s19 = sshll.u32 [#allocation4], 4
      %s20 = int_to_ptr.vmem [resolvable:$true] %s19
      %25 = dma.hbm_to_vmem [thread:$0]  %s0, 384, %s20, [#allocation5], 192, 192, 12
    $region5: #{tpu_custom_call.1} parent=1 // pred_fallthru
      _
    // Predicated region
    $region6: #{tpu_custom_call.1} parent=1 // pred_check
      _
    $region7: #{tpu_custom_call.1} parent=1 // pred_check_branch
      %27 = sbr.rel (0) target = $region9
    $region8: #{tpu_custom_call.1} parent=1 // pred_region
      _
    $region9: #{tpu_custom_call.1} parent=1 // pred_fallthru
      _
    // Predicated region
    $region10: #{tpu_custom_call.1} parent=1 // pred_check
      _
    $region11: #{tpu_custom_call.1} parent=1 // pred_check_branch
      %29 = sbr.rel (0) target = $region13
    $region12: #{tpu_custom_call.1} parent=1 // pred_region
      _
    $region13: #{tpu_custom_call.1} parent=1 // pred_fallthru
      _
    // Predicated region
    $region14: #{tpu_custom_call.1} parent=1 // pred_check
      _
    $region15: #{tpu_custom_call.1} parent=1 // pred_check_branch
      %31 = sbr.rel (0) target = $region17
    $region16: #{tpu_custom_call.1} parent=1 // pred_region
      _
    $region17: #{tpu_custom_call.1} parent=1 // pred_fallthru
      _
    // Predicated region
    $region18: #{tpu_custom_call.1} parent=1 // pred_check
      _
    $region19: #{tpu_custom_call.1} parent=1 // pred_check_branch
      %33 = sbr.rel (0) target = $region21
    $region20: #{tpu_custom_call.1} parent=1 // pred_region
      _
    $region21: #{tpu_custom_call.1} parent=1 // pred_fallthru
      _
    // Predicated region
    $region22: #{tpu_custom_call.1} parent=1 // pred_check
      _
    $region23: #{tpu_custom_call.1} parent=1 // pred_check_branch
      %35 = sbr.rel (0) target = $region25
    $region24: #{tpu_custom_call.1} parent=1 // pred_region
      _
    $region25: #{tpu_custom_call.1} parent=1 // pred_fallthru
      _
    // Predicated region
    $region26: #{tpu_custom_call.1} parent=1 // pred_check
      _
    $region27: #{tpu_custom_call.1} parent=1 // pred_check_branch
      %37 = sbr.rel (0) target = $region29
    $region28: #{tpu_custom_call.1} parent=1 // pred_region
      _
    $region29: #{tpu_custom_call.1} parent=1 // pred_fallthru
      _
    // Predicated region
    $region30: #{tpu_custom_call.1} parent=1 // pred_check
      _
    $region31: #{tpu_custom_call.1} parent=1 // pred_check_branch
      %39 = sbr.rel (0) target = $region33
    $region32: #{tpu_custom_call.1} parent=1 // pred_region
      %40 = dma.done [#allocation5], 384
    $region33: #{tpu_custom_call.1} parent=1 // pred_fallthru
      _
    %v42 = vld [vmem:[%s1] sm:$0x3f]
    %v43 = vld [vmem:[%s1] sm:$0x7]
    %v44 = vld [vmem:[#allocation4] sm:$0xff]
    %v45 = vld [vmem:[#allocation4 + $0x8] sm:$0xf]
    %v46 = vld [vmem:[%s2] sm:$0xf]
    %48 = vset.pattern.permute.xlu0 0
    %49 = vperm.xlu0 %48, %v46
    %v50 = vpop.permute.xlu0 %49
    %v52 = vunpack.c.l.s4 839922192
    %v53 = vunpack.c.0.s8 %v52
    %v54 = vlaneseq
    %v55 = vshrl.u32 %v54, 7
    %v56 = vsub.s32 %v53, %v55
    %v57 = vrot.slane %v50, %v56
    %v59 = vmul.f32 %v44, %v57
    %v60 = vmul.f32 %v45, %v57
    %v61 = vld [vmem:[%s3] sm:$0xf]
    %63 = vset.pattern.permute.xlu0 0
    %64 = vperm.xlu0 %63, %v61
    %v65 = vpop.permute.xlu0 %64
    %v67 = vunpack.c.l.s4 839922192
    %v68 = vunpack.c.0.s8 %v67
    %v69 = vlaneseq
    %v70 = vshrl.u32 %v69, 7
    %v71 = vsub.s32 %v68, %v70
    %v72 = vrot.slane %v65, %v71
    %v74 = vadd.f32 %v59, %v72
    %v75 = vadd.f32 %v60, %v72
    %v76 = vmax.f32 %v74, 0.0
    %v77 = vmax.f32 %v75, 0.0
    %v79 = vlaneseq
    %v80 = vshrl.u32 %v79, 7
    %v81 = vsub.s32 0, %v80
    %v82 = vrot.slane %v43, %v81
    %v83 = vlaneseq
    %v84 = vshrl.u32 %v83, 7
    %v85 = vsub.s32 1, %v84
    %v86 = vrot.slane %v43, %v85
    %v87 = vlaneseq
    %v88 = vshrl.u32 %v87, 7
    %v89 = vsub.s32 2, %v88
    %v90 = vrot.slane %v43, %v89
    %v95 = vcombine.high %v76, %v76
    %v97 = vmul.f32 %v82, %v76
    %v98 = vmul.f32 %v86, %v95
    %v99 = vmul.f32 %v90, %v77
    %v102 = vcombine.low %v97, %v98
    %104 = vst [vmem:[#allocation2] sm:$0xff] %v102
    %105 = vst [vmem:[#allocation2 + $0x8] sm:$0xf] %v99
    %s106 = scalar_lea.vmem [#allocation4], 12
    %v107 = vld [vmem:[%s106] sm:$0xff]
    %v108 = vld [vmem:[%s106 + $0x8] sm:$0xf]
    %v109 = vld [vmem:[%s2] sm:$0xf]
    %111 = vset.pattern.permute.xlu0 0
    %112 = vperm.xlu0 %111, %v109
    %v113 = vpop.permute.xlu0 %112
    %v115 = vunpack.c.l.s4 839922192
    %v116 = vunpack.c.0.s8 %v115
    %v117 = vlaneseq
    %v118 = vshrl.u32 %v117, 7
    %v119 = vsub.s32 %v116, %v118
    %v120 = vrot.slane %v113, %v119
    %v122 = vmul.f32 %v107, %v120
    %v123 = vmul.f32 %v108, %v120
    %v124 = vld [vmem:[%s3] sm:$0xf]
    %126 = vset.pattern.permute.xlu0 0
    %127 = vperm.xlu0 %126, %v124
    %v128 = vpop.permute.xlu0 %127
    %v130 = vunpack.c.l.s4 839922192
    %v131 = vunpack.c.0.s8 %v130
    %v132 = vlaneseq
    %v133 = vshrl.u32 %v132, 7
    %v134 = vsub.s32 %v131, %v133
    %v135 = vrot.slane %v128, %v134
    %v137 = vadd.f32 %v122, %v135
    %v138 = vadd.f32 %v123, %v135
    %v139 = vmax.f32 %v137, 0.0
    %v140 = vmax.f32 %v138, 0.0
    %v142 = vcombine.high %v139, %v139
    %v144 = vmul.f32 %v82, %v139
    %v145 = vmul.f32 %v86, %v142
    %v146 = vmul.f32 %v90, %v140
    %v149 = vcombine.low %v144, %v145
    %151 = vst [vmem:[#allocation2 + $0xc] sm:$0xff] %v149
    %152 = vst [vmem:[#allocation2 + $0x14] sm:$0xf] %v146
    %v153 = vld [vmem:[#allocation2] sm:$0xff]
    %v154 = vld [vmem:[#allocation2 + $0x8] sm:$0xff]
    %v155 = vld [vmem:[#allocation2 + $0x10] sm:$0xff]
    %v159 = vcombine.high %v153, %v153
    %v160 = vcombine.high %v154, %v154
    %v161 = vcombine.high %v155, %v155
    %165 = vrot.lane.b32.xlu0 %v153, 19
    %v166 = vpop.permute.xlu0 %165
    %167 = vrot.lane.b32.xlu0 %v159, 19
    %v168 = vpop.permute.xlu0 %167
    %169 = vrot.lane.b32.xlu0 %v154, 19
    %v170 = vpop.permute.xlu0 %169
    %171 = vrot.lane.b32.xlu0 %v160, 19
    %v172 = vpop.permute.xlu0 %171
    %173 = vrot.lane.b32.xlu0 %v155, 19
    %v174 = vpop.permute.xlu0 %173
    %175 = vrot.lane.b32.xlu0 %v161, 19
    %v176 = vpop.permute.xlu0 %175
    %v177 = vlaneseq
    %v178 = vand.u32 %v177, 127
    %vm179 = vcmp.lt.s32.totalorder %v178, 19
    %v180 = vsel %vm179, %v174, %v176
    %v181 = vsel %vm179, %v172, %v174
    %v182 = vsel %vm179, %v170, %v172
    %v183 = vsel %vm179, %v168, %v170
    %v184 = vsel %vm179, %v166, %v168
    %v185 = vsel %vm179, %v176, %v166
    %v186 = vpack.c.bf16 %v185, %v185
    %v187 = vpack.c.bf16 %v184, %v184
    %v188 = vpack.c.bf16 %v183, %v183
    %v189 = vpack.c.bf16 %v182, %v182
    %v190 = vpack.c.bf16 %v181, %v181
    %v191 = vpack.c.bf16 %v180, %v180
    %v198 = vunpack.c.l.b16 %v186
    %v199 = vunpack.c.l.b16 %v187
    %v200 = vunpack.c.l.b16 %v188
    %v201 = vunpack.c.l.b16 %v189
    %v202 = vunpack.c.l.b16 %v190
    %v203 = vunpack.c.l.b16 %v191
    %v204 = vpack.c.b16 %v199, %v198
    %v205 = vpack.c.b16 %v201, %v200
    %v206 = vpack.c.b16 %v203, %v202
    %210 = vst [vmem:[#allocation3] sm:$0x33] %v204
    %211 = vst [vmem:[#allocation3 + $0x8] sm:$0x33] %v205
    %212 = vst [vmem:[#allocation3 + $0x10] sm:$0x33] %v206
    %213 = vrot.lane.b32.xlu0 %v153, 18
    %v214 = vpop.permute.xlu0 %213
    %215 = vrot.lane.b32.xlu0 %v159, 18
    %v216 = vpop.permute.xlu0 %215
    %217 = vrot.lane.b32.xlu0 %v154, 18
    %v218 = vpop.permute.xlu0 %217
    %219 = vrot.lane.b32.xlu0 %v160, 18
    %v220 = vpop.permute.xlu0 %219
    %221 = vrot.lane.b32.xlu0 %v155, 18
    %v222 = vpop.permute.xlu0 %221
    %223 = vrot.lane.b32.xlu0 %v161, 18
    %v224 = vpop.permute.xlu0 %223
    %vm225 = vcmp.lt.s32.totalorder %v178, 18
    %v226 = vsel %vm225, %v222, %v224
    %v227 = vsel %vm225, %v220, %v222
    %v228 = vsel %vm225, %v218, %v220
    %v229 = vsel %vm225, %v216, %v218
    %v230 = vsel %vm225, %v214, %v216
    %v231 = vsel %vm225, %v224, %v214
    %v232 = vpack.c.bf16 %v231, %v231
    %v233 = vpack.c.bf16 %v230, %v230
    %v234 = vpack.c.bf16 %v229, %v229
    %v235 = vpack.c.bf16 %v228, %v228
    %v236 = vpack.c.bf16 %v227, %v227
    %v237 = vpack.c.bf16 %v226, %v226
    %v244 = vunpack.c.l.b16 %v232
    %v245 = vunpack.c.l.b16 %v233
    %v246 = vunpack.c.l.b16 %v234
    %v247 = vunpack.c.l.b16 %v235
    %v248 = vunpack.c.l.b16 %v236
    %v249 = vunpack.c.l.b16 %v237
    %v250 = vpack.c.b16 %v245, %v244
    %v251 = vpack.c.b16 %v247, %v246
    %v252 = vpack.c.b16 %v249, %v248
    %v253 = vrot.slane %v250, 6
    %v254 = vrot.slane %v251, 6
    %v255 = vrot.slane %v252, 6
    %259 = vst [vmem:[#allocation3] sm:$0xcc] %v253
    %260 = vst [vmem:[#allocation3 + $0x8] sm:$0xcc] %v254
    %261 = vst [vmem:[#allocation3 + $0x10] sm:$0xcc] %v255
    %262 = vrot.lane.b32.xlu0 %v153, 17
    %v263 = vpop.permute.xlu0 %262
    %264 = vrot.lane.b32.xlu0 %v159, 17
    %v265 = vpop.permute.xlu0 %264
    %266 = vrot.lane.b32.xlu0 %v154, 17
    %v267 = vpop.permute.xlu0 %266
    %268 = vrot.lane.b32.xlu0 %v160, 17
    %v269 = vpop.permute.xlu0 %268
    %270 = vrot.lane.b32.xlu0 %v155, 17
    %v271 = vpop.permute.xlu0 %270
    %272 = vrot.lane.b32.xlu0 %v161, 17
    %v273 = vpop.permute.xlu0 %272
    %vm274 = vcmp.lt.s32.totalorder %v178, 17
    %v275 = vsel %vm274, %v271, %v273
    %v276 = vsel %vm274, %v269, %v271
    %v277 = vsel %vm274, %v267, %v269
    %v278 = vsel %vm274, %v265, %v267
    %v279 = vsel %vm274, %v263, %v265
    %v280 = vsel %vm274, %v273, %v263
    %v281 = vpack.c.bf16 %v280, %v280
    %v282 = vpack.c.bf16 %v279, %v279
    %v283 = vpack.c.bf16 %v278, %v278
    %v284 = vpack.c.bf16 %v277, %v277
    %v285 = vpack.c.bf16 %v276, %v276
    %v286 = vpack.c.bf16 %v275, %v275
    %v293 = vunpack.c.l.b16 %v281
    %v294 = vunpack.c.l.b16 %v282
    %v295 = vunpack.c.l.b16 %v283
    %v296 = vunpack.c.l.b16 %v284
    %v297 = vunpack.c.l.b16 %v285
    %v298 = vunpack.c.l.b16 %v286
    %v299 = vpack.c.b16 %v294, %v293
    %v300 = vpack.c.b16 %v296, %v295
    %v301 = vpack.c.b16 %v298, %v297
    %305 = vst [vmem:[#allocation3 + $0x18] sm:$0x33] %v299
    %306 = vst [vmem:[#allocation3 + $0x20] sm:$0x33] %v300
    %307 = vst [vmem:[#allocation3 + $0x28] sm:$0x33] %v301
    %308 = vrot.lane.b32.xlu0 %v153, 1
    %v309 = vpop.permute.xlu0 %308
    %310 = vrot.lane.b32.xlu0 %v159, 1
    %v311 = vpop.permute.xlu0 %310
    %312 = vrot.lane.b32.xlu0 %v154, 1
    %v313 = vpop.permute.xlu0 %312
    %314 = vrot.lane.b32.xlu0 %v160, 1
    %v315 = vpop.permute.xlu0 %314
    %316 = vrot.lane.b32.xlu0 %v155, 1
    %v317 = vpop.permute.xlu0 %316
    %318 = vrot.lane.b32.xlu0 %v161, 1
    %v319 = vpop.permute.xlu0 %318
    %vm320 = vcmp.lt.s32.totalorder %v178, 1
    %v321 = vsel %vm320, %v317, %v319
    %v322 = vsel %vm320, %v315, %v317
    %v323 = vsel %vm320, %v313, %v315
    %v324 = vsel %vm320, %v311, %v313
    %v325 = vsel %vm320, %v309, %v311
    %v326 = vsel %vm320, %v319, %v309
    %v327 = vpack.c.bf16 %v326, %v326
    %v328 = vpack.c.bf16 %v325, %v325
    %v329 = vpack.c.bf16 %v324, %v324
    %v330 = vpack.c.bf16 %v323, %v323
    %v331 = vpack.c.bf16 %v322, %v322
    %v332 = vpack.c.bf16 %v321, %v321
    %v339 = vunpack.c.l.b16 %v327
    %v340 = vunpack.c.l.b16 %v328
    %v341 = vunpack.c.l.b16 %v329
    %v342 = vunpack.c.l.b16 %v330
    %v343 = vunpack.c.l.b16 %v331
    %v344 = vunpack.c.l.b16 %v332
    %v345 = vpack.c.b16 %v340, %v339
    %v346 = vpack.c.b16 %v342, %v341
    %v347 = vpack.c.b16 %v344, %v343
    %v348 = vrot.slane %v345, 6
    %v349 = vrot.slane %v346, 6
    %v350 = vrot.slane %v347, 6
    %354 = vst [vmem:[#allocation3 + $0x18] sm:$0xcc] %v348
    %355 = vst [vmem:[#allocation3 + $0x20] sm:$0xcc] %v349
    %356 = vst [vmem:[#allocation3 + $0x28] sm:$0xcc] %v350
    %v357 = vpack.c.bf16 %v153, %v153
    %v358 = vpack.c.bf16 %v159, %v159
    %v359 = vpack.c.bf16 %v154, %v154
    %v360 = vpack.c.bf16 %v160, %v160
    %v361 = vpack.c.bf16 %v155, %v155
    %v362 = vpack.c.bf16 %v161, %v161
    %v369 = vunpack.c.l.b16 %v357
    %v370 = vunpack.c.l.b16 %v358
    %v371 = vunpack.c.l.b16 %v359
    %v372 = vunpack.c.l.b16 %v360
    %v373 = vunpack.c.l.b16 %v361
    %v374 = vunpack.c.l.b16 %v362
    %v375 = vpack.c.b16 %v370, %v369
    %v376 = vpack.c.b16 %v372, %v371
    %v377 = vpack.c.b16 %v374, %v373
    %381 = vst [vmem:[#allocation3 + $0x30] sm:$0x33] %v375
    %382 = vst [vmem:[#allocation3 + $0x38] sm:$0x33] %v376
    %383 = vst [vmem:[#allocation3 + $0x40] sm:$0x33] %v377
    %384 = vrot.lane.b32.xlu0 %v153, 127
    %v385 = vpop.permute.xlu0 %384
    %386 = vrot.lane.b32.xlu0 %v159, 127
    %v387 = vpop.permute.xlu0 %386
    %388 = vrot.lane.b32.xlu0 %v154, 127
    %v389 = vpop.permute.xlu0 %388
    %390 = vrot.lane.b32.xlu0 %v160, 127
    %v391 = vpop.permute.xlu0 %390
    %392 = vrot.lane.b32.xlu0 %v155, 127
    %v393 = vpop.permute.xlu0 %392
    %394 = vrot.lane.b32.xlu0 %v161, 127
    %v395 = vpop.permute.xlu0 %394
    %vm396 = vcmp.lt.s32.totalorder %v178, 127
    %v397 = vsel %vm396, %v393, %v395
    %v398 = vsel %vm396, %v391, %v393
    %v399 = vsel %vm396, %v389, %v391
    %v400 = vsel %vm396, %v387, %v389
    %v401 = vsel %vm396, %v385, %v387
    %v402 = vsel %vm396, %v395, %v385
    %v403 = vpack.c.bf16 %v401, %v401
    %v404 = vpack.c.bf16 %v400, %v400
    %v405 = vpack.c.bf16 %v399, %v399
    %v406 = vpack.c.bf16 %v398, %v398
    %v407 = vpack.c.bf16 %v397, %v397
    %v408 = vpack.c.bf16 %v402, %v402
    %v415 = vunpack.c.l.b16 %v403
    %v416 = vunpack.c.l.b16 %v404
    %v417 = vunpack.c.l.b16 %v405
    %v418 = vunpack.c.l.b16 %v406
    %v419 = vunpack.c.l.b16 %v407
    %v420 = vunpack.c.l.b16 %v408
    %v421 = vpack.c.b16 %v416, %v415
    %v422 = vpack.c.b16 %v418, %v417
    %v423 = vpack.c.b16 %v420, %v419
    %v424 = vrot.slane %v421, 6
    %v425 = vrot.slane %v422, 6
    %v426 = vrot.slane %v423, 6
    %430 = vst [vmem:[#allocation3 + $0x30] sm:$0xcc] %v424
    %431 = vst [vmem:[#allocation3 + $0x38] sm:$0xcc] %v425
    %432 = vst [vmem:[#allocation3 + $0x40] sm:$0xcc] %v426
    %433 = vrot.lane.b32.xlu0 %v153, 111
    %v434 = vpop.permute.xlu0 %433
    %435 = vrot.lane.b32.xlu0 %v159, 111
    %v436 = vpop.permute.xlu0 %435
    %437 = vrot.lane.b32.xlu0 %v154, 111
    %v438 = vpop.permute.xlu0 %437
    %439 = vrot.lane.b32.xlu0 %v160, 111
    %v440 = vpop.permute.xlu0 %439
    %441 = vrot.lane.b32.xlu0 %v155, 111
    %v442 = vpop.permute.xlu0 %441
    %443 = vrot.lane.b32.xlu0 %v161, 111
    %v444 = vpop.permute.xlu0 %443
    %vm445 = vcmp.lt.s32.totalorder %v178, 111
    %v446 = vsel %vm445, %v442, %v444
    %v447 = vsel %vm445, %v440, %v442
    %v448 = vsel %vm445, %v438, %v440
    %v449 = vsel %vm445, %v436, %v438
    %v450 = vsel %vm445, %v434, %v436
    %v451 = vsel %vm445, %v444, %v434
    %v452 = vpack.c.bf16 %v450, %v450
    %v453 = vpack.c.bf16 %v449, %v449
    %v454 = vpack.c.bf16 %v448, %v448
    %v455 = vpack.c.bf16 %v447, %v447
    %v456 = vpack.c.bf16 %v446, %v446
    %v457 = vpack.c.bf16 %v451, %v451
    %v464 = vunpack.c.l.b16 %v452
    %v465 = vunpack.c.l.b16 %v453
    %v466 = vunpack.c.l.b16 %v454
    %v467 = vunpack.c.l.b16 %v455
    %v468 = vunpack.c.l.b16 %v456
    %v469 = vunpack.c.l.b16 %v457
    %v470 = vpack.c.b16 %v465, %v464
    %v471 = vpack.c.b16 %v467, %v466
    %v472 = vpack.c.b16 %v469, %v468
    %476 = vst [vmem:[#allocation3 + $0x48] sm:$0x33] %v470
    %477 = vst [vmem:[#allocation3 + $0x50] sm:$0x33] %v471
    %478 = vst [vmem:[#allocation3 + $0x58] sm:$0x33] %v472
    %479 = vrot.lane.b32.xlu0 %v153, 110
    %v480 = vpop.permute.xlu0 %479
    %481 = vrot.lane.b32.xlu0 %v159, 110
    %v482 = vpop.permute.xlu0 %481
    %483 = vrot.lane.b32.xlu0 %v154, 110
    %v484 = vpop.permute.xlu0 %483
    %485 = vrot.lane.b32.xlu0 %v160, 110
    %v486 = vpop.permute.xlu0 %485
    %487 = vrot.lane.b32.xlu0 %v155, 110
    %v488 = vpop.permute.xlu0 %487
    %489 = vrot.lane.b32.xlu0 %v161, 110
    %v490 = vpop.permute.xlu0 %489
    %vm491 = vcmp.lt.s32.totalorder %v178, 110
    %v492 = vsel %vm491, %v488, %v490
    %v493 = vsel %vm491, %v486, %v488
    %v494 = vsel %vm491, %v484, %v486
    %v495 = vsel %vm491, %v482, %v484
    %v496 = vsel %vm491, %v480, %v482
    %v497 = vsel %vm491, %v490, %v480
    %v498 = vpack.c.bf16 %v496, %v496
    %v499 = vpack.c.bf16 %v495, %v495
    %v500 = vpack.c.bf16 %v494, %v494
    %v501 = vpack.c.bf16 %v493, %v493
    %v502 = vpack.c.bf16 %v492, %v492
    %v503 = vpack.c.bf16 %v497, %v497
    %v510 = vunpack.c.l.b16 %v498
    %v511 = vunpack.c.l.b16 %v499
    %v512 = vunpack.c.l.b16 %v500
    %v513 = vunpack.c.l.b16 %v501
    %v514 = vunpack.c.l.b16 %v502
    %v515 = vunpack.c.l.b16 %v503
    %v516 = vpack.c.b16 %v511, %v510
    %v517 = vpack.c.b16 %v513, %v512
    %v518 = vpack.c.b16 %v515, %v514
    %v519 = vrot.slane %v516, 6
    %v520 = vrot.slane %v517, 6
    %v521 = vrot.slane %v518, 6
    %525 = vst [vmem:[#allocation3 + $0x48] sm:$0xcc] %v519
    %526 = vst [vmem:[#allocation3 + $0x50] sm:$0xcc] %v520
    %527 = vst [vmem:[#allocation3 + $0x58] sm:$0xcc] %v521
    %528 = vrot.lane.b32.xlu0 %v153, 109
    %v529 = vpop.permute.xlu0 %528
    %530 = vrot.lane.b32.xlu0 %v159, 109
    %v531 = vpop.permute.xlu0 %530
    %532 = vrot.lane.b32.xlu0 %v154, 109
    %v533 = vpop.permute.xlu0 %532
    %534 = vrot.lane.b32.xlu0 %v160, 109
    %v535 = vpop.permute.xlu0 %534
    %536 = vrot.lane.b32.xlu0 %v155, 109
    %v537 = vpop.permute.xlu0 %536
    %538 = vrot.lane.b32.xlu0 %v161, 109
    %v539 = vpop.permute.xlu0 %538
    %vm540 = vcmp.lt.s32.totalorder %v178, 109
    %v541 = vsel %vm540, %v537, %v539
    %v542 = vsel %vm540, %v535, %v537
    %v543 = vsel %vm540, %v533, %v535
    %v544 = vsel %vm540, %v531, %v533
    %v545 = vsel %vm540, %v529, %v531
    %v546 = vsel %vm540, %v539, %v529
    %v547 = vpack.c.bf16 %v545, %v545
    %v548 = vpack.c.bf16 %v544, %v544
    %v549 = vpack.c.bf16 %v543, %v543
    %v550 = vpack.c.bf16 %v542, %v542
    %v551 = vpack.c.bf16 %v541, %v541
    %v552 = vpack.c.bf16 %v546, %v546
    %v559 = vunpack.c.l.b16 %v547
    %v560 = vunpack.c.l.b16 %v548
    %v561 = vunpack.c.l.b16 %v549
    %v562 = vunpack.c.l.b16 %v550
    %v563 = vunpack.c.l.b16 %v551
    %v564 = vunpack.c.l.b16 %v552
    %v565 = vpack.c.b16 %v560, %v559
    %v566 = vpack.c.b16 %v562, %v561
    %v567 = vpack.c.b16 %v564, %v563
    %571 = vst [vmem:[#allocation3 + $0x60] sm:$0x33] %v565
    %572 = vst [vmem:[#allocation3 + $0x68] sm:$0x33] %v566
    %573 = vst [vmem:[#allocation3 + $0x70] sm:$0x33] %v567
    %v574 = vld [vmem:[%s4] sm:$0x3]
    %v575 = vld [vmem:[#allocation3] sm:$0xff]
    %v576 = vld [vmem:[#allocation3 + $0x8] sm:$0xff]
    %v577 = vld [vmem:[#allocation3 + $0x10] sm:$0xff]
    %v578 = vld [vmem:[#allocation3 + $0x18] sm:$0xff]
    %v579 = vld [vmem:[#allocation3 + $0x20] sm:$0xff]
    %v580 = vld [vmem:[#allocation3 + $0x28] sm:$0xff]
    %v581 = vld [vmem:[#allocation3 + $0x30] sm:$0xff]
    %v582 = vld [vmem:[#allocation3 + $0x38] sm:$0xff]
    %v583 = vld [vmem:[#allocation3 + $0x40] sm:$0xff]
    %v584 = vld [vmem:[#allocation3 + $0x48] sm:$0xff]
    %v585 = vld [vmem:[#allocation3 + $0x50] sm:$0xff]
    %v586 = vld [vmem:[#allocation3 + $0x58] sm:$0xff]
    %v587 = vld [vmem:[#allocation3 + $0x60] sm:$0x33]
    %v588 = vld [vmem:[#allocation3 + $0x68] sm:$0x33]
    %v589 = vld [vmem:[#allocation3 + $0x70] sm:$0x33]
    %v590 = vld [vmem:[%s5] sm:$0xf]
    %592 = vset.pattern.permute.xlu0 0
    %593 = vperm.xlu0 %592, %v590
    %v594 = vpop.permute.xlu0 %593
    %v611 = vunpack.c.l.b16 %v575
    %v612 = vunpack.c.h.b16 %v575
    %v613 = vunpack.c.l.b16 %v576
    %v614 = vunpack.c.h.b16 %v576
    %v615 = vunpack.c.l.b16 %v577
    %v616 = vunpack.c.h.b16 %v577
    %v617 = vunpack.c.l.b16 %v578
    %v618 = vunpack.c.h.b16 %v578
    %v619 = vunpack.c.l.b16 %v579
    %v620 = vunpack.c.h.b16 %v579
    %v621 = vunpack.c.l.b16 %v580
    %v622 = vunpack.c.h.b16 %v580
    %v623 = vunpack.c.l.b16 %v581
    %v624 = vunpack.c.h.b16 %v581
    %v625 = vunpack.c.l.b16 %v582
    %v626 = vunpack.c.h.b16 %v582
    %v627 = vunpack.c.l.b16 %v583
    %v628 = vunpack.c.h.b16 %v583
    %v629 = vunpack.c.l.b16 %v584
    %v630 = vunpack.c.h.b16 %v584
    %v631 = vunpack.c.l.b16 %v585
    %v632 = vunpack.c.h.b16 %v585
    %v633 = vunpack.c.l.b16 %v586
    %v634 = vunpack.c.h.b16 %v586
    %v635 = vunpack.c.l.b16 %v587
    %v636 = vunpack.c.h.b16 %v587
    %v637 = vunpack.c.l.b16 %v588
    %v638 = vunpack.c.h.b16 %v588
    %v639 = vunpack.c.l.b16 %v589
    %v640 = vunpack.c.h.b16 %v589
    %v641 = vpack.c.b16 %v617, %v611
    %v642 = vpack.c.b16 %v618, %v612
    %v643 = vpack.c.b16 %v619, %v613
    %v644 = vpack.c.b16 %v620, %v614
    %v645 = vpack.c.b16 %v621, %v615
    %v646 = vpack.c.b16 %v622, %v616
    %v647 = vpack.c.b16 %v629, %v623
    %v648 = vpack.c.b16 %v630, %v624
    %v649 = vpack.c.b16 %v631, %v625
    %v650 = vpack.c.b16 %v632, %v626
    %v651 = vpack.c.b16 %v633, %v627
    %v652 = vpack.c.b16 %v634, %v628
    %v653 = vpack.c.b16 %v635, %v635
    %v654 = vpack.c.b16 %v636, %v636
    %v655 = vpack.c.b16 %v637, %v637
    %v656 = vpack.c.b16 %v638, %v638
    %v657 = vpack.c.b16 %v639, %v639
    %v658 = vpack.c.b16 %v640, %v640
    %vm671 = vcmask 293888
    %v673 = vsel %vm671, %v574, 0
    %vm675 = vcmask 1041408
    %v677 = vsel %vm675, %v653, 0
    %v680 = vsel %vm675, %v654, 0
    %v683 = vsel %vm675, %v655, 0
    %v686 = vsel %vm675, %v656, 0
    %v689 = vsel %vm675, %v657, 0
    %v692 = vsel %vm675, %v658, 0
    %694 = vmatprep.subr.bf16.mxu0 %v642
    %695 = vmatpush1.bf16.msra.mxu0 %v641
    %696 = vmatprep.subr.bf16.mxu0 %v648
    %697 = vmatpush1.bf16.msra.mxu0 %v647
    %698 = vmatprep.subr.bf16.mxu0 %v680
    %699 = vmatpush1.bf16.msra.mxu0 %v677
    %700 = vmatprep.subr.bf16.mxu0 0
    %701 = vmatpush1.bf16.msra.mxu0 0
    %702 = vmatprep.subr.bf16.mxu0 0
    %703 = vmatpush1.bf16.msra.mxu0 0
    %704 = vmatprep.subr.bf16.mxu0 0
    %705 = vmatpush1.bf16.msra.mxu0 0
    %706 = vmatprep.subr.bf16.mxu0 0
    %707 = vmatpush1.bf16.msra.mxu0 0
    %708 = vmatprep.subr.bf16.mxu0 0
    %709 = vmatpush1.bf16.msra.mxu0 0
    %710 = vmatprep.subr.bf16.mxu0 0
    %711 = vmatpush1.bf16.msra.mxu0 0
    %712 = vmatprep.subr.bf16.mxu0 0
    %713 = vmatpush1.bf16.msra.mxu0 0
    %714 = vmatprep.subr.bf16.mxu0 0
    %715 = vmatpush1.bf16.msra.mxu0 0
    %716 = vmatprep.subr.bf16.mxu0 0
    %717 = vmatpush1.bf16.msra.mxu0 0
    %718 = vmatprep.subr.bf16.mxu0 0
    %719 = vmatpush1.bf16.msra.mxu0 0
    %720 = vmatprep.subr.bf16.mxu0 0
    %721 = vmatpush1.bf16.msra.mxu0 0
    %722 = vmatprep.subr.bf16.mxu0 0
    %723 = vmatpush1.bf16.msra.mxu0 0
    %724 = vmatprep.subr.bf16.mxu0 0
    %725 = vmatpush1.bf16.msra.mxu0 0
    %726 = vmatprep.mubr.bf16.mxu0 0
    %727 = vmatmul.mubr.bf16.gmra.mrb[0].mxu0 %v673
    %v728 = vpop.f32.mrb[0].mxu0
    %v729 = vadd.f32 %v594, %v728
    %v730 = vpop.f32.mrb[0].mxu0
    %v731 = vadd.f32 %v594, %v730
    %v732 = vpop.f32.mrb[0].mxu0
    %v733 = vpop.f32.mrb[0].mxu0
    %734 = vdwg.mxu0
    %735 = vmatprep.subr.bf16.mxu0 %v644
    %736 = vmatpush1.bf16.msra.mxu0 %v643
    %737 = vmatprep.subr.bf16.mxu0 %v650
    %738 = vmatpush1.bf16.msra.mxu0 %v649
    %739 = vmatprep.subr.bf16.mxu0 %v686
    %740 = vmatpush1.bf16.msra.mxu0 %v683
    %741 = vmatprep.subr.bf16.mxu0 0
    %742 = vmatpush1.bf16.msra.mxu0 0
    %743 = vmatprep.subr.bf16.mxu0 0
    %744 = vmatpush1.bf16.msra.mxu0 0
    %745 = vmatprep.subr.bf16.mxu0 0
    %746 = vmatpush1.bf16.msra.mxu0 0
    %747 = vmatprep.subr.bf16.mxu0 0
    %748 = vmatpush1.bf16.msra.mxu0 0
    %749 = vmatprep.subr.bf16.mxu0 0
    %750 = vmatpush1.bf16.msra.mxu0 0
    %751 = vmatprep.subr.bf16.mxu0 0
    %752 = vmatpush1.bf16.msra.mxu0 0
    %753 = vmatprep.subr.bf16.mxu0 0
    %754 = vmatpush1.bf16.msra.mxu0 0
    %755 = vmatprep.subr.bf16.mxu0 0
    %756 = vmatpush1.bf16.msra.mxu0 0
    %757 = vmatprep.subr.bf16.mxu0 0
    %758 = vmatpush1.bf16.msra.mxu0 0
    %759 = vmatprep.subr.bf16.mxu0 0
    %760 = vmatpush1.bf16.msra.mxu0 0
    %761 = vmatprep.subr.bf16.mxu0 0
    %762 = vmatpush1.bf16.msra.mxu0 0
    %763 = vmatprep.subr.bf16.mxu0 0
    %764 = vmatpush1.bf16.msra.mxu0 0
    %765 = vmatprep.subr.bf16.mxu0 0
    %766 = vmatpush1.bf16.msra.mxu0 0
    %767 = vmatprep.mubr.bf16.mxu0 0
    %768 = vmatmul.mubr.bf16.gmra.mrb[0].mxu0 %v673
    %v769 = vpop.f32.mrb[0].mxu0
    %v770 = vadd.f32 %v594, %v769
    %v771 = vpop.f32.mrb[0].mxu0
    %v772 = vadd.f32 %v594, %v771
    %v773 = vpop.f32.mrb[0].mxu0
    %v774 = vpop.f32.mrb[0].mxu0
    %775 = vdwg.mxu0
    %776 = vmatprep.subr.bf16.mxu0 %v646
    %777 = vmatpush1.bf16.msra.mxu0 %v645
    %778 = vmatprep.subr.bf16.mxu0 %v652
    %779 = vmatpush1.bf16.msra.mxu0 %v651
    %780 = vmatprep.subr.bf16.mxu0 %v692
    %781 = vmatpush1.bf16.msra.mxu0 %v689
    %782 = vmatprep.subr.bf16.mxu0 0
    %783 = vmatpush1.bf16.msra.mxu0 0
    %784 = vmatprep.subr.bf16.mxu0 0
    %785 = vmatpush1.bf16.msra.mxu0 0
    %786 = vmatprep.subr.bf16.mxu0 0
    %787 = vmatpush1.bf16.msra.mxu0 0
    %788 = vmatprep.subr.bf16.mxu0 0
    %789 = vmatpush1.bf16.msra.mxu0 0
    %790 = vmatprep.subr.bf16.mxu0 0
    %791 = vmatpush1.bf16.msra.mxu0 0
    %792 = vmatprep.subr.bf16.mxu0 0
    %793 = vmatpush1.bf16.msra.mxu0 0
    %794 = vmatprep.subr.bf16.mxu0 0
    %795 = vmatpush1.bf16.msra.mxu0 0
    %796 = vmatprep.subr.bf16.mxu0 0
    %797 = vmatpush1.bf16.msra.mxu0 0
    %798 = vmatprep.subr.bf16.mxu0 0
    %799 = vmatpush1.bf16.msra.mxu0 0
    %800 = vmatprep.subr.bf16.mxu0 0
    %801 = vmatpush1.bf16.msra.mxu0 0
    %802 = vmatprep.subr.bf16.mxu0 0
    %803 = vmatpush1.bf16.msra.mxu0 0
    %804 = vmatprep.subr.bf16.mxu0 0
    %805 = vmatpush1.bf16.msra.mxu0 0
    %806 = vmatprep.subr.bf16.mxu0 0
    %807 = vmatpush1.bf16.msra.mxu0 0
    %808 = vmatprep.mubr.bf16.mxu0 0
    %809 = vmatmul.mubr.bf16.gmra.mrb[0].mxu0 %v673
    %v810 = vpop.f32.mrb[0].mxu0
    %v811 = vadd.f32 %v594, %v810
    %v812 = vpop.f32.mrb[0].mxu0
    %v813 = vadd.f32 %v594, %v812
    %v814 = vpop.f32.mrb[0].mxu0
    %v815 = vpop.f32.mrb[0].mxu0
    %816 = vdwg.mxu0
    %v817 = vmax.f32 %v729, 0.0
    %v818 = vmax.f32 %v731, 0.0
    %v819 = vmax.f32 %v770, 0.0
    %v820 = vmax.f32 %v772, 0.0
    %v821 = vmax.f32 %v811, 0.0
    %v822 = vmax.f32 %v813, 0.0
    %v824 = vlaneseq
    %v825 = vshrl.u32 %v824, 7
    %v826 = vsub.s32 0, %v825
    %v827 = vrot.slane %v42, %v826
    %v828 = vlaneseq
    %v829 = vshrl.u32 %v828, 7
    %v830 = vsub.s32 1, %v829
    %v831 = vrot.slane %v42, %v830
    %v832 = vlaneseq
    %v833 = vshrl.u32 %v832, 7
    %v834 = vsub.s32 2, %v833
    %v835 = vrot.slane %v42, %v834
    %v836 = vlaneseq
    %v837 = vshrl.u32 %v836, 7
    %v838 = vsub.s32 3, %v837
    %v839 = vrot.slane %v42, %v838
    %v840 = vlaneseq
    %v841 = vshrl.u32 %v840, 7
    %v842 = vsub.s32 4, %v841
    %v843 = vrot.slane %v42, %v842
    %v844 = vlaneseq
    %v845 = vshrl.u32 %v844, 7
    %v846 = vsub.s32 5, %v845
    %v847 = vrot.slane %v42, %v846
    %v854 = vmul.f32 %v827, %v817
    %v855 = vmul.f32 %v831, %v818
    %v856 = vmul.f32 %v835, %v819
    %v857 = vmul.f32 %v839, %v820
    %v858 = vmul.f32 %v843, %v821
    %v859 = vmul.f32 %v847, %v822
    %860 = vrot.lane.b32.xlu0 %v854, 19
    %v861 = vpop.permute.xlu0 %860
    %862 = vrot.lane.b32.xlu0 %v855, 19
    %v863 = vpop.permute.xlu0 %862
    %864 = vrot.lane.b32.xlu0 %v856, 19
    %v865 = vpop.permute.xlu0 %864
    %866 = vrot.lane.b32.xlu0 %v857, 19
    %v867 = vpop.permute.xlu0 %866
    %868 = vrot.lane.b32.xlu0 %v858, 19
    %v869 = vpop.permute.xlu0 %868
    %870 = vrot.lane.b32.xlu0 %v859, 19
    %v871 = vpop.permute.xlu0 %870
    %v872 = vsel %vm179, %v869, %v871
    %v873 = vsel %vm179, %v867, %v869
    %v874 = vsel %vm179, %v865, %v867
    %v875 = vsel %vm179, %v863, %v865
    %v876 = vsel %vm179, %v861, %v863
    %v877 = vsel %vm179, %v871, %v861
    %v878 = vpack.c.bf16 %v877, %v877
    %v879 = vpack.c.bf16 %v876, %v876
    %v880 = vpack.c.bf16 %v875, %v875
    %v881 = vpack.c.bf16 %v874, %v874
    %v882 = vpack.c.bf16 %v873, %v873
    %v883 = vpack.c.bf16 %v872, %v872
    %v890 = vunpack.c.l.b16 %v878
    %v891 = vunpack.c.l.b16 %v879
    %v892 = vunpack.c.l.b16 %v880
    %v893 = vunpack.c.l.b16 %v881
    %v894 = vunpack.c.l.b16 %v882
    %v895 = vunpack.c.l.b16 %v883
    %v896 = vpack.c.b16 %v891, %v890
    %v897 = vpack.c.b16 %v893, %v892
    %v898 = vpack.c.b16 %v895, %v894
    %902 = vst [vmem:[#allocation3] sm:$0x33] %v896
    %903 = vst [vmem:[#allocation3 + $0x8] sm:$0x33] %v897
    %904 = vst [vmem:[#allocation3 + $0x10] sm:$0x33] %v898
    %905 = vrot.lane.b32.xlu0 %v854, 18
    %v906 = vpop.permute.xlu0 %905
    %907 = vrot.lane.b32.xlu0 %v855, 18
    %v908 = vpop.permute.xlu0 %907
    %909 = vrot.lane.b32.xlu0 %v856, 18
    %v910 = vpop.permute.xlu0 %909
    %911 = vrot.lane.b32.xlu0 %v857, 18
    %v912 = vpop.permute.xlu0 %911
    %913 = vrot.lane.b32.xlu0 %v858, 18
    %v914 = vpop.permute.xlu0 %913
    %915 = vrot.lane.b32.xlu0 %v859, 18
    %v916 = vpop.permute.xlu0 %915
    %v917 = vsel %vm225, %v914, %v916
    %v918 = vsel %vm225, %v912, %v914
    %v919 = vsel %vm225, %v910, %v912
    %v920 = vsel %vm225, %v908, %v910
    %v921 = vsel %vm225, %v906, %v908
    %v922 = vsel %vm225, %v916, %v906
    %v923 = vpack.c.bf16 %v922, %v922
    %v924 = vpack.c.bf16 %v921, %v921
    %v925 = vpack.c.bf16 %v920, %v920
    %v926 = vpack.c.bf16 %v919, %v919
    %v927 = vpack.c.bf16 %v918, %v918
    %v928 = vpack.c.bf16 %v917, %v917
    %v935 = vunpack.c.l.b16 %v923
    %v936 = vunpack.c.l.b16 %v924
    %v937 = vunpack.c.l.b16 %v925
    %v938 = vunpack.c.l.b16 %v926
    %v939 = vunpack.c.l.b16 %v927
    %v940 = vunpack.c.l.b16 %v928
    %v941 = vpack.c.b16 %v936, %v935
    %v942 = vpack.c.b16 %v938, %v937
    %v943 = vpack.c.b16 %v940, %v939
    %v944 = vrot.slane %v941, 6
    %v945 = vrot.slane %v942, 6
    %v946 = vrot.slane %v943, 6
    %950 = vst [vmem:[#allocation3] sm:$0xcc] %v944
    %951 = vst [vmem:[#allocation3 + $0x8] sm:$0xcc] %v945
    %952 = vst [vmem:[#allocation3 + $0x10] sm:$0xcc] %v946
    %953 = vrot.lane.b32.xlu0 %v854, 17
    %v954 = vpop.permute.xlu0 %953
    %955 = vrot.lane.b32.xlu0 %v855, 17
    %v956 = vpop.permute.xlu0 %955
    %957 = vrot.lane.b32.xlu0 %v856, 17
    %v958 = vpop.permute.xlu0 %957
    %959 = vrot.lane.b32.xlu0 %v857, 17
    %v960 = vpop.permute.xlu0 %959
    %961 = vrot.lane.b32.xlu0 %v858, 17
    %v962 = vpop.permute.xlu0 %961
    %963 = vrot.lane.b32.xlu0 %v859, 17
    %v964 = vpop.permute.xlu0 %963
    %v965 = vsel %vm274, %v962, %v964
    %v966 = vsel %vm274, %v960, %v962
    %v967 = vsel %vm274, %v958, %v960
    %v968 = vsel %vm274, %v956, %v958
    %v969 = vsel %vm274, %v954, %v956
    %v970 = vsel %vm274, %v964, %v954
    %v971 = vpack.c.bf16 %v970, %v970
    %v972 = vpack.c.bf16 %v969, %v969
    %v973 = vpack.c.bf16 %v968, %v968
    %v974 = vpack.c.bf16 %v967, %v967
    %v975 = vpack.c.bf16 %v966, %v966
    %v976 = vpack.c.bf16 %v965, %v965
    %v983 = vunpack.c.l.b16 %v971
    %v984 = vunpack.c.l.b16 %v972
    %v985 = vunpack.c.l.b16 %v973
    %v986 = vunpack.c.l.b16 %v974
    %v987 = vunpack.c.l.b16 %v975
    %v988 = vunpack.c.l.b16 %v976
    %v989 = vpack.c.b16 %v984, %v983
    %v990 = vpack.c.b16 %v986, %v985
    %v991 = vpack.c.b16 %v988, %v987
    %995 = vst [vmem:[#allocation3 + $0x18] sm:$0x33] %v989
    %996 = vst [vmem:[#allocation3 + $0x20] sm:$0x33] %v990
    %997 = vst [vmem:[#allocation3 + $0x28] sm:$0x33] %v991
    %998 = vrot.lane.b32.xlu0 %v854, 1
    %v999 = vpop.permute.xlu0 %998
    %1000 = vrot.lane.b32.xlu0 %v855, 1
    %v1001 = vpop.permute.xlu0 %1000
    %1002 = vrot.lane.b32.xlu0 %v856, 1
    %v1003 = vpop.permute.xlu0 %1002
    %1004 = vrot.lane.b32.xlu0 %v857, 1
    %v1005 = vpop.permute.xlu0 %1004
    %1006 = vrot.lane.b32.xlu0 %v858, 1
    %v1007 = vpop.permute.xlu0 %1006
    %1008 = vrot.lane.b32.xlu0 %v859, 1
    %v1009 = vpop.permute.xlu0 %1008
    %v1010 = vsel %vm320, %v1007, %v1009
    %v1011 = vsel %vm320, %v1005, %v1007
    %v1012 = vsel %vm320, %v1003, %v1005
    %v1013 = vsel %vm320, %v1001, %v1003
    %v1014 = vsel %vm320, %v999, %v1001
    %v1015 = vsel %vm320, %v1009, %v999
    %v1016 = vpack.c.bf16 %v1015, %v1015
    %v1017 = vpack.c.bf16 %v1014, %v1014
    %v1018 = vpack.c.bf16 %v1013, %v1013
    %v1019 = vpack.c.bf16 %v1012, %v1012
    %v1020 = vpack.c.bf16 %v1011, %v1011
    %v1021 = vpack.c.bf16 %v1010, %v1010
    %v1028 = vunpack.c.l.b16 %v1016
    %v1029 = vunpack.c.l.b16 %v1017
    %v1030 = vunpack.c.l.b16 %v1018
    %v1031 = vunpack.c.l.b16 %v1019
    %v1032 = vunpack.c.l.b16 %v1020
    %v1033 = vunpack.c.l.b16 %v1021
    %v1034 = vpack.c.b16 %v1029, %v1028
    %v1035 = vpack.c.b16 %v1031, %v1030
    %v1036 = vpack.c.b16 %v1033, %v1032
    %v1037 = vrot.slane %v1034, 6
    %v1038 = vrot.slane %v1035, 6
    %v1039 = vrot.slane %v1036, 6
    %1043 = vst [vmem:[#allocation3 + $0x18] sm:$0xcc] %v1037
    %1044 = vst [vmem:[#allocation3 + $0x20] sm:$0xcc] %v1038
    %1045 = vst [vmem:[#allocation3 + $0x28] sm:$0xcc] %v1039
    %v1046 = vpack.c.bf16 %v854, %v854
    %v1047 = vpack.c.bf16 %v855, %v855
    %v1048 = vpack.c.bf16 %v856, %v856
    %v1049 = vpack.c.bf16 %v857, %v857
    %v1050 = vpack.c.bf16 %v858, %v858
    %v1051 = vpack.c.bf16 %v859, %v859
    %v1058 = vunpack.c.l.b16 %v1046
    %v1059 = vunpack.c.l.b16 %v1047
    %v1060 = vunpack.c.l.b16 %v1048
    %v1061 = vunpack.c.l.b16 %v1049
    %v1062 = vunpack.c.l.b16 %v1050
    %v1063 = vunpack.c.l.b16 %v1051
    %v1064 = vpack.c.b16 %v1059, %v1058
    %v1065 = vpack.c.b16 %v1061, %v1060
    %v1066 = vpack.c.b16 %v1063, %v1062
    %1070 = vst [vmem:[#allocation3 + $0x30] sm:$0x33] %v1064
    %1071 = vst [vmem:[#allocation3 + $0x38] sm:$0x33] %v1065
    %1072 = vst [vmem:[#allocation3 + $0x40] sm:$0x33] %v1066
    %1073 = vrot.lane.b32.xlu0 %v854, 127
    %v1074 = vpop.permute.xlu0 %1073
    %1075 = vrot.lane.b32.xlu0 %v855, 127
    %v1076 = vpop.permute.xlu0 %1075
    %1077 = vrot.lane.b32.xlu0 %v856, 127
    %v1078 = vpop.permute.xlu0 %1077
    %1079 = vrot.lane.b32.xlu0 %v857, 127
    %v1080 = vpop.permute.xlu0 %1079
    %1081 = vrot.lane.b32.xlu0 %v858, 127
    %v1082 = vpop.permute.xlu0 %1081
    %1083 = vrot.lane.b32.xlu0 %v859, 127
    %v1084 = vpop.permute.xlu0 %1083
    %v1085 = vsel %vm396, %v1082, %v1084
    %v1086 = vsel %vm396, %v1080, %v1082
    %v1087 = vsel %vm396, %v1078, %v1080
    %v1088 = vsel %vm396, %v1076, %v1078
    %v1089 = vsel %vm396, %v1074, %v1076
    %v1090 = vsel %vm396, %v1084, %v1074
    %v1091 = vpack.c.bf16 %v1089, %v1089
    %v1092 = vpack.c.bf16 %v1088, %v1088
    %v1093 = vpack.c.bf16 %v1087, %v1087
    %v1094 = vpack.c.bf16 %v1086, %v1086
    %v1095 = vpack.c.bf16 %v1085, %v1085
    %v1096 = vpack.c.bf16 %v1090, %v1090
    %v1103 = vunpack.c.l.b16 %v1091
    %v1104 = vunpack.c.l.b16 %v1092
    %v1105 = vunpack.c.l.b16 %v1093
    %v1106 = vunpack.c.l.b16 %v1094
    %v1107 = vunpack.c.l.b16 %v1095
    %v1108 = vunpack.c.l.b16 %v1096
    %v1109 = vpack.c.b16 %v1104, %v1103
    %v1110 = vpack.c.b16 %v1106, %v1105
    %v1111 = vpack.c.b16 %v1108, %v1107
    %v1112 = vrot.slane %v1109, 6
    %v1113 = vrot.slane %v1110, 6
    %v1114 = vrot.slane %v1111, 6
    %1118 = vst [vmem:[#allocation3 + $0x30] sm:$0xcc] %v1112
    %1119 = vst [vmem:[#allocation3 + $0x38] sm:$0xcc] %v1113
    %1120 = vst [vmem:[#allocation3 + $0x40] sm:$0xcc] %v1114
    %1121 = vrot.lane.b32.xlu0 %v854, 111
    %v1122 = vpop.permute.xlu0 %1121
    %1123 = vrot.lane.b32.xlu0 %v855, 111
    %v1124 = vpop.permute.xlu0 %1123
    %1125 = vrot.lane.b32.xlu0 %v856, 111
    %v1126 = vpop.permute.xlu0 %1125
    %1127 = vrot.lane.b32.xlu0 %v857, 111
    %v1128 = vpop.permute.xlu0 %1127
    %1129 = vrot.lane.b32.xlu0 %v858, 111
    %v1130 = vpop.permute.xlu0 %1129
    %1131 = vrot.lane.b32.xlu0 %v859, 111
    %v1132 = vpop.permute.xlu0 %1131
    %v1133 = vsel %vm445, %v1130, %v1132
    %v1134 = vsel %vm445, %v1128, %v1130
    %v1135 = vsel %vm445, %v1126, %v1128
    %v1136 = vsel %vm445, %v1124, %v1126
    %v1137 = vsel %vm445, %v1122, %v1124
    %v1138 = vsel %vm445, %v1132, %v1122
    %v1139 = vpack.c.bf16 %v1137, %v1137
    %v1140 = vpack.c.bf16 %v1136, %v1136
    %v1141 = vpack.c.bf16 %v1135, %v1135
    %v1142 = vpack.c.bf16 %v1134, %v1134
    %v1143 = vpack.c.bf16 %v1133, %v1133
    %v1144 = vpack.c.bf16 %v1138, %v1138
    %v1151 = vunpack.c.l.b16 %v1139
    %v1152 = vunpack.c.l.b16 %v1140
    %v1153 = vunpack.c.l.b16 %v1141
    %v1154 = vunpack.c.l.b16 %v1142
    %v1155 = vunpack.c.l.b16 %v1143
    %v1156 = vunpack.c.l.b16 %v1144
    %v1157 = vpack.c.b16 %v1152, %v1151
    %v1158 = vpack.c.b16 %v1154, %v1153
    %v1159 = vpack.c.b16 %v1156, %v1155
    %1163 = vst [vmem:[#allocation3 + $0x48] sm:$0x33] %v1157
    %1164 = vst [vmem:[#allocation3 + $0x50] sm:$0x33] %v1158
    %1165 = vst [vmem:[#allocation3 + $0x58] sm:$0x33] %v1159
    %1166 = vrot.lane.b32.xlu0 %v854, 110
    %v1167 = vpop.permute.xlu0 %1166
    %1168 = vrot.lane.b32.xlu0 %v855, 110
    %v1169 = vpop.permute.xlu0 %1168
    %1170 = vrot.lane.b32.xlu0 %v856, 110
    %v1171 = vpop.permute.xlu0 %1170
    %1172 = vrot.lane.b32.xlu0 %v857, 110
    %v1173 = vpop.permute.xlu0 %1172
    %1174 = vrot.lane.b32.xlu0 %v858, 110
    %v1175 = vpop.permute.xlu0 %1174
    %1176 = vrot.lane.b32.xlu0 %v859, 110
    %v1177 = vpop.permute.xlu0 %1176
    %v1178 = vsel %vm491, %v1175, %v1177
    %v1179 = vsel %vm491, %v1173, %v1175
    %v1180 = vsel %vm491, %v1171, %v1173
    %v1181 = vsel %vm491, %v1169, %v1171
    %v1182 = vsel %vm491, %v1167, %v1169
    %v1183 = vsel %vm491, %v1177, %v1167
    %v1184 = vpack.c.bf16 %v1182, %v1182
    %v1185 = vpack.c.bf16 %v1181, %v1181
    %v1186 = vpack.c.bf16 %v1180, %v1180
    %v1187 = vpack.c.bf16 %v1179, %v1179
    %v1188 = vpack.c.bf16 %v1178, %v1178
    %v1189 = vpack.c.bf16 %v1183, %v1183
    %v1196 = vunpack.c.l.b16 %v1184
    %v1197 = vunpack.c.l.b16 %v1185
    %v1198 = vunpack.c.l.b16 %v1186
    %v1199 = vunpack.c.l.b16 %v1187
    %v1200 = vunpack.c.l.b16 %v1188
    %v1201 = vunpack.c.l.b16 %v1189
    %v1202 = vpack.c.b16 %v1197, %v1196
    %v1203 = vpack.c.b16 %v1199, %v1198
    %v1204 = vpack.c.b16 %v1201, %v1200
    %v1205 = vrot.slane %v1202, 6
    %v1206 = vrot.slane %v1203, 6
    %v1207 = vrot.slane %v1204, 6
    %1211 = vst [vmem:[#allocation3 + $0x48] sm:$0xcc] %v1205
    %1212 = vst [vmem:[#allocation3 + $0x50] sm:$0xcc] %v1206
    %1213 = vst [vmem:[#allocation3 + $0x58] sm:$0xcc] %v1207
    %1214 = vrot.lane.b32.xlu0 %v854, 109
    %v1215 = vpop.permute.xlu0 %1214
    %1216 = vrot.lane.b32.xlu0 %v855, 109
    %v1217 = vpop.permute.xlu0 %1216
    %1218 = vrot.lane.b32.xlu0 %v856, 109
    %v1219 = vpop.permute.xlu0 %1218
    %1220 = vrot.lane.b32.xlu0 %v857, 109
    %v1221 = vpop.permute.xlu0 %1220
    %1222 = vrot.lane.b32.xlu0 %v858, 109
    %v1223 = vpop.permute.xlu0 %1222
    %1224 = vrot.lane.b32.xlu0 %v859, 109
    %v1225 = vpop.permute.xlu0 %1224
    %v1226 = vsel %vm540, %v1223, %v1225
    %v1227 = vsel %vm540, %v1221, %v1223
    %v1228 = vsel %vm540, %v1219, %v1221
    %v1229 = vsel %vm540, %v1217, %v1219
    %v1230 = vsel %vm540, %v1215, %v1217
    %v1231 = vsel %vm540, %v1225, %v1215
    %v1232 = vpack.c.bf16 %v1230, %v1230
    %v1233 = vpack.c.bf16 %v1229, %v1229
    %v1234 = vpack.c.bf16 %v1228, %v1228
    %v1235 = vpack.c.bf16 %v1227, %v1227
    %v1236 = vpack.c.bf16 %v1226, %v1226
    %v1237 = vpack.c.bf16 %v1231, %v1231
    %v1244 = vunpack.c.l.b16 %v1232
    %v1245 = vunpack.c.l.b16 %v1233
    %v1246 = vunpack.c.l.b16 %v1234
    %v1247 = vunpack.c.l.b16 %v1235
    %v1248 = vunpack.c.l.b16 %v1236
    %v1249 = vunpack.c.l.b16 %v1237
    %v1250 = vpack.c.b16 %v1245, %v1244
    %v1251 = vpack.c.b16 %v1247, %v1246
    %v1252 = vpack.c.b16 %v1249, %v1248
    %1256 = vst [vmem:[#allocation3 + $0x60] sm:$0x33] %v1250
    %1257 = vst [vmem:[#allocation3 + $0x68] sm:$0x33] %v1251
    %1258 = vst [vmem:[#allocation3 + $0x70] sm:$0x33] %v1252
    %v1259 = vld [vmem:[%s6] sm:$0x3]
    %v1260 = vld [vmem:[#allocation3] sm:$0xff]
    %v1261 = vld [vmem:[#allocation3 + $0x8] sm:$0xff]
    %v1262 = vld [vmem:[#allocation3 + $0x10] sm:$0xff]
    %v1263 = vld [vmem:[#allocation3 + $0x18] sm:$0xff]
    %v1264 = vld [vmem:[#allocation3 + $0x20] sm:$0xff]
    %v1265 = vld [vmem:[#allocation3 + $0x28] sm:$0xff]
    %v1266 = vld [vmem:[#allocation3 + $0x30] sm:$0xff]
    %v1267 = vld [vmem:[#allocation3 + $0x38] sm:$0xff]
    %v1268 = vld [vmem:[#allocation3 + $0x40] sm:$0xff]
    %v1269 = vld [vmem:[#allocation3 + $0x48] sm:$0xff]
    %v1270 = vld [vmem:[#allocation3 + $0x50] sm:$0xff]
    %v1271 = vld [vmem:[#allocation3 + $0x58] sm:$0xff]
    %v1272 = vld [vmem:[#allocation3 + $0x60] sm:$0x33]
    %v1273 = vld [vmem:[#allocation3 + $0x68] sm:$0x33]
    %v1274 = vld [vmem:[#allocation3 + $0x70] sm:$0x33]
    %v1290 = vunpack.c.l.b16 %v1260
    %v1291 = vunpack.c.h.b16 %v1260
    %v1292 = vunpack.c.l.b16 %v1261
    %v1293 = vunpack.c.h.b16 %v1261
    %v1294 = vunpack.c.l.b16 %v1262
    %v1295 = vunpack.c.h.b16 %v1262
    %v1296 = vunpack.c.l.b16 %v1263
    %v1297 = vunpack.c.h.b16 %v1263
    %v1298 = vunpack.c.l.b16 %v1264
    %v1299 = vunpack.c.h.b16 %v1264
    %v1300 = vunpack.c.l.b16 %v1265
    %v1301 = vunpack.c.h.b16 %v1265
    %v1302 = vunpack.c.l.b16 %v1266
    %v1303 = vunpack.c.h.b16 %v1266
    %v1304 = vunpack.c.l.b16 %v1267
    %v1305 = vunpack.c.h.b16 %v1267
    %v1306 = vunpack.c.l.b16 %v1268
    %v1307 = vunpack.c.h.b16 %v1268
    %v1308 = vunpack.c.l.b16 %v1269
    %v1309 = vunpack.c.h.b16 %v1269
    %v1310 = vunpack.c.l.b16 %v1270
    %v1311 = vunpack.c.h.b16 %v1270
    %v1312 = vunpack.c.l.b16 %v1271
    %v1313 = vunpack.c.h.b16 %v1271
    %v1314 = vunpack.c.l.b16 %v1272
    %v1315 = vunpack.c.h.b16 %v1272
    %v1316 = vunpack.c.l.b16 %v1273
    %v1317 = vunpack.c.h.b16 %v1273
    %v1318 = vunpack.c.l.b16 %v1274
    %v1319 = vunpack.c.h.b16 %v1274
    %v1320 = vpack.c.b16 %v1296, %v1290
    %v1321 = vpack.c.b16 %v1297, %v1291
    %v1322 = vpack.c.b16 %v1298, %v1292
    %v1323 = vpack.c.b16 %v1299, %v1293
    %v1324 = vpack.c.b16 %v1300, %v1294
    %v1325 = vpack.c.b16 %v1301, %v1295
    %v1326 = vpack.c.b16 %v1308, %v1302
    %v1327 = vpack.c.b16 %v1309, %v1303
    %v1328 = vpack.c.b16 %v1310, %v1304
    %v1329 = vpack.c.b16 %v1311, %v1305
    %v1330 = vpack.c.b16 %v1312, %v1306
    %v1331 = vpack.c.b16 %v1313, %v1307
    %v1332 = vpack.c.b16 %v1314, %v1314
    %v1333 = vpack.c.b16 %v1315, %v1315
    %v1334 = vpack.c.b16 %v1316, %v1316
    %v1335 = vpack.c.b16 %v1317, %v1317
    %v1336 = vpack.c.b16 %v1318, %v1318
    %v1337 = vpack.c.b16 %v1319, %v1319
    %v1351 = vsel %vm671, %v1259, 0
    %v1354 = vsel %vm675, %v1332, 0
    %v1357 = vsel %vm675, %v1333, 0
    %v1360 = vsel %vm675, %v1334, 0
    %v1363 = vsel %vm675, %v1335, 0
    %v1366 = vsel %vm675, %v1336, 0
    %v1369 = vsel %vm675, %v1337, 0
    %1371 = vmatprep.subr.bf16.mxu0 %v1321
    %1372 = vmatpush1.bf16.msra.mxu0 %v1320
    %1373 = vmatprep.subr.bf16.mxu0 %v1327
    %1374 = vmatpush1.bf16.msra.mxu0 %v1326
    %1375 = vmatprep.subr.bf16.mxu0 %v1357
    %1376 = vmatpush1.bf16.msra.mxu0 %v1354
    %1377 = vmatprep.subr.bf16.mxu0 0
    %1378 = vmatpush1.bf16.msra.mxu0 0
    %1379 = vmatprep.subr.bf16.mxu0 0
    %1380 = vmatpush1.bf16.msra.mxu0 0
    %1381 = vmatprep.subr.bf16.mxu0 0
    %1382 = vmatpush1.bf16.msra.mxu0 0
    %1383 = vmatprep.subr.bf16.mxu0 0
    %1384 = vmatpush1.bf16.msra.mxu0 0
    %1385 = vmatprep.subr.bf16.mxu0 0
    %1386 = vmatpush1.bf16.msra.mxu0 0
    %1387 = vmatprep.subr.bf16.mxu0 0
    %1388 = vmatpush1.bf16.msra.mxu0 0
    %1389 = vmatprep.subr.bf16.mxu0 0
    %1390 = vmatpush1.bf16.msra.mxu0 0
    %1391 = vmatprep.subr.bf16.mxu0 0
    %1392 = vmatpush1.bf16.msra.mxu0 0
    %1393 = vmatprep.subr.bf16.mxu0 0
    %1394 = vmatpush1.bf16.msra.mxu0 0
    %1395 = vmatprep.subr.bf16.mxu0 0
    %1396 = vmatpush1.bf16.msra.mxu0 0
    %1397 = vmatprep.subr.bf16.mxu0 0
    %1398 = vmatpush1.bf16.msra.mxu0 0
    %1399 = vmatprep.subr.bf16.mxu0 0
    %1400 = vmatpush1.bf16.msra.mxu0 0
    %1401 = vmatprep.subr.bf16.mxu0 0
    %1402 = vmatpush1.bf16.msra.mxu0 0
    %1403 = vmatprep.mubr.bf16.mxu0 0
    %1404 = vmatmul.mubr.bf16.gmra.mrb[0].mxu0 %v1351
    %v1405 = vpop.f32.mrb[0].mxu0
    %v1406 = vadd.f32 0.0, %v1405
    %v1407 = vpop.f32.mrb[0].mxu0
    %v1408 = vadd.f32 0.0, %v1407
    %v1409 = vpop.f32.mrb[0].mxu0
    %v1410 = vpop.f32.mrb[0].mxu0
    %1411 = vdwg.mxu0
    %1412 = vmatprep.subr.bf16.mxu0 %v1323
    %1413 = vmatpush1.bf16.msra.mxu0 %v1322
    %1414 = vmatprep.subr.bf16.mxu0 %v1329
    %1415 = vmatpush1.bf16.msra.mxu0 %v1328
    %1416 = vmatprep.subr.bf16.mxu0 %v1363
    %1417 = vmatpush1.bf16.msra.mxu0 %v1360
    %1418 = vmatprep.subr.bf16.mxu0 0
    %1419 = vmatpush1.bf16.msra.mxu0 0
    %1420 = vmatprep.subr.bf16.mxu0 0
    %1421 = vmatpush1.bf16.msra.mxu0 0
    %1422 = vmatprep.subr.bf16.mxu0 0
    %1423 = vmatpush1.bf16.msra.mxu0 0
    %1424 = vmatprep.subr.bf16.mxu0 0
    %1425 = vmatpush1.bf16.msra.mxu0 0
    %1426 = vmatprep.subr.bf16.mxu0 0
    %1427 = vmatpush1.bf16.msra.mxu0 0
    %1428 = vmatprep.subr.bf16.mxu0 0
    %1429 = vmatpush1.bf16.msra.mxu0 0
    %1430 = vmatprep.subr.bf16.mxu0 0
    %1431 = vmatpush1.bf16.msra.mxu0 0
    %1432 = vmatprep.subr.bf16.mxu0 0
    %1433 = vmatpush1.bf16.msra.mxu0 0
    %1434 = vmatprep.subr.bf16.mxu0 0
    %1435 = vmatpush1.bf16.msra.mxu0 0
    %1436 = vmatprep.subr.bf16.mxu0 0
    %1437 = vmatpush1.bf16.msra.mxu0 0
    %1438 = vmatprep.subr.bf16.mxu0 0
    %1439 = vmatpush1.bf16.msra.mxu0 0
    %1440 = vmatprep.subr.bf16.mxu0 0
    %1441 = vmatpush1.bf16.msra.mxu0 0
    %1442 = vmatprep.subr.bf16.mxu0 0
    %1443 = vmatpush1.bf16.msra.mxu0 0
    %1444 = vmatprep.mubr.bf16.mxu0 0
    %1445 = vmatmul.mubr.bf16.gmra.mrb[0].mxu0 %v1351
    %v1446 = vpop.f32.mrb[0].mxu0
    %v1447 = vadd.f32 0.0, %v1446
    %v1448 = vpop.f32.mrb[0].mxu0
    %v1449 = vadd.f32 0.0, %v1448
    %v1450 = vpop.f32.mrb[0].mxu0
    %v1451 = vpop.f32.mrb[0].mxu0
    %1452 = vdwg.mxu0
    %1453 = vmatprep.subr.bf16.mxu0 %v1325
    %1454 = vmatpush1.bf16.msra.mxu0 %v1324
    %1455 = vmatprep.subr.bf16.mxu0 %v1331
    %1456 = vmatpush1.bf16.msra.mxu0 %v1330
    %1457 = vmatprep.subr.bf16.mxu0 %v1369
    %1458 = vmatpush1.bf16.msra.mxu0 %v1366
    %1459 = vmatprep.subr.bf16.mxu0 0
    %1460 = vmatpush1.bf16.msra.mxu0 0
    %1461 = vmatprep.subr.bf16.mxu0 0
    %1462 = vmatpush1.bf16.msra.mxu0 0
    %1463 = vmatprep.subr.bf16.mxu0 0
    %1464 = vmatpush1.bf16.msra.mxu0 0
    %1465 = vmatprep.subr.bf16.mxu0 0
    %1466 = vmatpush1.bf16.msra.mxu0 0
    %1467 = vmatprep.subr.bf16.mxu0 0
    %1468 = vmatpush1.bf16.msra.mxu0 0
    %1469 = vmatprep.subr.bf16.mxu0 0
    %1470 = vmatpush1.bf16.msra.mxu0 0
    %1471 = vmatprep.subr.bf16.mxu0 0
    %1472 = vmatpush1.bf16.msra.mxu0 0
    %1473 = vmatprep.subr.bf16.mxu0 0
    %1474 = vmatpush1.bf16.msra.mxu0 0
    %1475 = vmatprep.subr.bf16.mxu0 0
    %1476 = vmatpush1.bf16.msra.mxu0 0
    %1477 = vmatprep.subr.bf16.mxu0 0
    %1478 = vmatpush1.bf16.msra.mxu0 0
    %1479 = vmatprep.subr.bf16.mxu0 0
    %1480 = vmatpush1.bf16.msra.mxu0 0
    %1481 = vmatprep.subr.bf16.mxu0 0
    %1482 = vmatpush1.bf16.msra.mxu0 0
    %1483 = vmatprep.subr.bf16.mxu0 0
    %1484 = vmatpush1.bf16.msra.mxu0 0
    %1485 = vmatprep.mubr.bf16.mxu0 0
    %1486 = vmatmul.mubr.bf16.gmra.mrb[0].mxu0 %v1351
    %v1487 = vpop.f32.mrb[0].mxu0
    %v1488 = vadd.f32 0.0, %v1487
    %v1489 = vpop.f32.mrb[0].mxu0
    %v1490 = vadd.f32 0.0, %v1489
    %v1491 = vpop.f32.mrb[0].mxu0
    %v1492 = vpop.f32.mrb[0].mxu0
    %1493 = vdwg.mxu0
    %v1494 = vld [vmem:[#allocation4] sm:$0xff]
    %v1495 = vld [vmem:[#allocation4 + $0x8] sm:$0xf]
    %v1497 = vcombine.high %v1494, %v1494
    %v1499 = vadd.f32 %v1406, %v1494
    %v1500 = vadd.f32 %v1408, %v1497
    %v1501 = vadd.f32 %v1447, %v1495
    %v1504 = vcombine.low %v1499, %v1500
    %1506 = vst [vmem:[#allocation7] sm:$0xff] %v1504
    %1507 = vst [vmem:[#allocation7 + $0x8] sm:$0xf] %v1501
    %v1508 = vld [vmem:[%s106] sm:$0xff]
    %v1509 = vld [vmem:[%s106 + $0x8] sm:$0xf]
    %v1511 = vcombine.high %v1508, %v1508
    %v1513 = vadd.f32 %v1449, %v1508
    %v1514 = vadd.f32 %v1488, %v1511
    %v1515 = vadd.f32 %v1490, %v1509
    %v1518 = vcombine.low %v1513, %v1514
    %s1520 = scalar_lea.vmem [#allocation7], 12
    %1521 = vst [vmem:[%s1520] sm:$0xff] %v1518
    %1522 = vst [vmem:[%s1520 + $0x8] sm:$0xf] %v1515
    // Predicated region
    $region34: #{tpu_custom_call.1} parent=1 // pred_check
      _
    $region35: #{tpu_custom_call.1} parent=1 // pred_check_branch
      %1524 = sbr.rel (0) target = $region37
    $region36: #{tpu_custom_call.1} parent=1 // pred_region
      %s1526 = ssub.s32 384, 384
      %1527 = vsyncadd [#allocation6], %s1526
      %s1528 = sshll.u32 [#allocation7], 4
      %s1529 = int_to_ptr.vmem [resolvable:$true] %s1528
      %1534 = dma.vmem_to_hbm [thread:$0]  %s1529, 384, %s7, [#allocation6], 192, 192, 12
    $region37: #{tpu_custom_call.1} parent=1 // pred_fallthru
      _
    // Predicated region
    $region38: #{tpu_custom_call.1} parent=1 // pred_check
      _
    $region39: #{tpu_custom_call.1} parent=1 // pred_check_branch
      %1536 = sbr.rel (0) target = $region41
    $region40: #{tpu_custom_call.1} parent=1 // pred_region
      %1537 = dma.done [#allocation6], 384
    $region41: #{tpu_custom_call.1} parent=1 // pred_fallthru
      _
    %1538 = vsyncpa [#allocation5], 1
    %1539 = vsyncpa [#allocation6], 1

// kernel: tpu_custom_call.1
$region0: #{tpu_custom_call.1}
  #allocation0 [shape = 'u32[]', space=smem, size = 0x4, offset = 0x4, fixed_abs, tag = 'smem constant byte address 0x4 - core index']
  #allocation1 [shape = 'u32[144,128]{1,0:T(1,128)}', space=vmem, size = 0x12000, scoped, tag = 'internal scratch']
  #allocation2 [shape = 'f32[4,768]{1,0:T(4,128)}', space=vmem, size = 0x3000, scoped, tag = 'scratch operand']
  #allocation3 [shape = 'bf16[36,768]{1,0:T(8,128)(2,1)}', space=vmem, size = 0xf000, scoped, tag = 'scratch operand']
  %s0 = inlined_call_operand.hbm [shape: f32[2,4,384], index: 0, kind: input, shape index: {}]
  %s1 = inlined_call_operand.vmem [shape: f32[1,768], index: 1, kind: input, shape index: {}]
  %s2 = inlined_call_operand.vmem [shape: f32[4,1], index: 2, kind: input, shape index: {}]
  %s3 = inlined_call_operand.vmem [shape: f32[4,1], index: 3, kind: input, shape index: {}]
  %s4 = inlined_call_operand.vmem [shape: bf16[4,36], index: 4, kind: input, shape index: {}]
  %s5 = inlined_call_operand.vmem [shape: f32[4,1], index: 5, kind: input, shape index: {}]
  %s6 = inlined_call_operand.vmem [shape: bf16[4,36], index: 6, kind: input, shape index: {}]
  %s7 = inlined_call_operand.hbm [shape: f32[2,4,384], index: 7, kind: output, shape index: {}]
  %s8 = sld [smem:[#allocation0]]
  $region42: #{tpu_custom_call.1} parent=0
    _
  %s10 = ssub.s32 1, %s8
  %s11 = scalar_select 0, %s10, %s8
  $region1: #{tpu_custom_call.1} parent=0
    #allocation4 [shape = 'u8[12288]{0}', space=vmem, size = 0x3000, scoped, tag = 'input window, operand 0, single buffered']
    #allocation5 [shape = 's32[1]{0}', space=sflag, size = 0x4, scoped, tag = 'scoped memory for tpu_custom_call.1']
    #allocation6 [shape = 's32[1]{0}', space=sflag, size = 0x4, scoped, tag = 'scoped memory for tpu_custom_call.1']
    #allocation7 [shape = 'u8[12288]{0}', space=vmem, size = 0x3000, scoped, tag = 'output window, operand 0, single buffered']
    %12 = vsyncpa [#allocation5], 0
    %13 = vsyncpa [#allocation6], 0
    // Predicated region
    $region2: #{tpu_custom_call.1} parent=1 // pred_check
      _
    $region3: #{tpu_custom_call.1} parent=1 // pred_check_branch
      %15 = sbr.rel (0) target = $region5
    $region4: #{tpu_custom_call.1} parent=1 // pred_region
      %s17 = ssub.s32 384, 384
      %18 = vsyncadd [#allocation5], %s17
      %s19 = sshll.u32 [#allocation4], 4
      %s20 = int_to_ptr.vmem [resolvable:$true] %s19
      %25 = dma.hbm_to_vmem [thread:$0]  %s0, 384, %s20, [#allocation5], 192, 192, 12
    $region5: #{tpu_custom_call.1} parent=1 // pred_fallthru
      _
    // Predicated region
    $region6: #{tpu_custom_call.1} parent=1 // pred_check
      _
    $region7: #{tpu_custom_call.1} parent=1 // pred_check_branch
      %27 = sbr.rel (0) target = $region9
    $region8: #{tpu_custom_call.1} parent=1 // pred_region
      _
    $region9: #{tpu_custom_call.1} parent=1 // pred_fallthru
      _
    // Predicated region
    $region10: #{tpu_custom_call.1} parent=1 // pred_check
      _
    $region11: #{tpu_custom_call.1} parent=1 // pred_check_branch
      %29 = sbr.rel (0) target = $region13
    $region12: #{tpu_custom_call.1} parent=1 // pred_region
      _
    $region13: #{tpu_custom_call.1} parent=1 // pred_fallthru
      _
    // Predicated region
    $region14: #{tpu_custom_call.1} parent=1 // pred_check
      _
    $region15: #{tpu_custom_call.1} parent=1 // pred_check_branch
      %31 = sbr.rel (0) target = $region17
    $region16: #{tpu_custom_call.1} parent=1 // pred_region
      _
    $region17: #{tpu_custom_call.1} parent=1 // pred_fallthru
      _
    // Predicated region
    $region18: #{tpu_custom_call.1} parent=1 // pred_check
      _
    $region19: #{tpu_custom_call.1} parent=1 // pred_check_branch
      %33 = sbr.rel (0) target = $region21
    $region20: #{tpu_custom_call.1} parent=1 // pred_region
      _
    $region21: #{tpu_custom_call.1} parent=1 // pred_fallthru
      _
    // Predicated region
    $region22: #{tpu_custom_call.1} parent=1 // pred_check
      _
    $region23: #{tpu_custom_call.1} parent=1 // pred_check_branch
      %35 = sbr.rel (0) target = $region25
    $region24: #{tpu_custom_call.1} parent=1 // pred_region
      _
    $region25: #{tpu_custom_call.1} parent=1 // pred_fallthru
      _
    // Predicated region
    $region26: #{tpu_custom_call.1} parent=1 // pred_check
      _
    $region27: #{tpu_custom_call.1} parent=1 // pred_check_branch
      %37 = sbr.rel (0) target = $region29
    $region28: #{tpu_custom_call.1} parent=1 // pred_region
      _
    $region29: #{tpu_custom_call.1} parent=1 // pred_fallthru
      _
    // Predicated region
    $region30: #{tpu_custom_call.1} parent=1 // pred_check
      _
    $region31: #{tpu_custom_call.1} parent=1 // pred_check_branch
      %39 = sbr.rel (0) target = $region33
    $region32: #{tpu_custom_call.1} parent=1 // pred_region
      %40 = dma.done [#allocation5], 384
    $region33: #{tpu_custom_call.1} parent=1 // pred_fallthru
      _
    %v42 = vld [vmem:[%s1] sm:$0x3f]
    %v43 = vld [vmem:[%s1] sm:$0x7]
    %v44 = vld [vmem:[#allocation4] sm:$0xff]
    %v45 = vld [vmem:[#allocation4 + $0x8] sm:$0xf]
    %v46 = vld [vmem:[%s2] sm:$0xf]
    %48 = vset.pattern.permute.xlu0 0
    %49 = vperm.xlu0 %48, %v46
    %v50 = vpop.permute.xlu0 %49
    %v52 = vunpack.c.l.s4 839922192
    %v53 = vunpack.c.0.s8 %v52
    %v54 = vlaneseq
    %v55 = vshrl.u32 %v54, 7
    %v56 = vsub.s32 %v53, %v55
    %v57 = vrot.slane %v50, %v56
    %v59 = vmul.f32 %v44, %v57
    %v60 = vmul.f32 %v45, %v57
    %v61 = vld [vmem:[%s3] sm:$0xf]
    %63 = vset.pattern.permute.xlu0 0
    %64 = vperm.xlu0 %63, %v61
    %v65 = vpop.permute.xlu0 %64
    %v67 = vunpack.c.l.s4 839922192
    %v68 = vunpack.c.0.s8 %v67
    %v69 = vlaneseq
    %v70 = vshrl.u32 %v69, 7
    %v71 = vsub.s32 %v68, %v70
    %v72 = vrot.slane %v65, %v71
    %v74 = vadd.f32 %v59, %v72
    %v75 = vadd.f32 %v60, %v72
    %v76 = vmax.f32 %v74, 0.0
    %v77 = vmax.f32 %v75, 0.0
    %v79 = vlaneseq
    %v80 = vshrl.u32 %v79, 7
    %v81 = vsub.s32 0, %v80
    %v82 = vrot.slane %v43, %v81
    %v83 = vlaneseq
    %v84 = vshrl.u32 %v83, 7
    %v85 = vsub.s32 1, %v84
    %v86 = vrot.slane %v43, %v85
    %v87 = vlaneseq
    %v88 = vshrl.u32 %v87, 7
    %v89 = vsub.s32 2, %v88
    %v90 = vrot.slane %v43, %v89
    %v95 = vcombine.high %v76, %v76
    %v97 = vmul.f32 %v82, %v76
    %v98 = vmul.f32 %v86, %v95
    %v99 = vmul.f32 %v90, %v77
    %v102 = vcombine.low %v97, %v98
    %104 = vst [vmem:[#allocation2] sm:$0xff] %v102
    %105 = vst [vmem:[#allocation2 + $0x8] sm:$0xf] %v99
    %s106 = scalar_lea.vmem [#allocation4], 12
    %v107 = vld [vmem:[%s106] sm:$0xff]
    %v108 = vld [vmem:[%s106 + $0x8] sm:$0xf]
    %v109 = vld [vmem:[%s2] sm:$0xf]
    %111 = vset.pattern.permute.xlu0 0
    %112 = vperm.xlu0 %111, %v109
    %v113 = vpop.permute.xlu0 %112
    %v115 = vunpack.c.l.s4 839922192
    %v116 = vunpack.c.0.s8 %v115
    %v117 = vlaneseq
    %v118 = vshrl.u32 %v117, 7
    %v119 = vsub.s32 %v116, %v118
    %v120 = vrot.slane %v113, %v119
    %v122 = vmul.f32 %v107, %v120
    %v123 = vmul.f32 %v108, %v120
    %v124 = vld [vmem:[%s3] sm:$0xf]
    %126 = vset.pattern.permute.xlu0 0
    %127 = vperm.xlu0 %126, %v124
    %v128 = vpop.permute.xlu0 %127
    %v130 = vunpack.c.l.s4 839922192
    %v131 = vunpack.c.0.s8 %v130
    %v132 = vlaneseq
    %v133 = vshrl.u32 %v132, 7
    %v134 = vsub.s32 %v131, %v133
    %v135 = vrot.slane %v128, %v134
    %v137 = vadd.f32 %v122, %v135
    %v138 = vadd.f32 %v123, %v135
    %v139 = vmax.f32 %v137, 0.0
    %v140 = vmax.f32 %v138, 0.0
    %v142 = vcombine.high %v139, %v139
    %v144 = vmul.f32 %v82, %v139
    %v145 = vmul.f32 %v86, %v142
    %v146 = vmul.f32 %v90, %v140
    %v149 = vcombine.low %v144, %v145
    %151 = vst [vmem:[#allocation2 + $0xc] sm:$0xff] %v149
    %152 = vst [vmem:[#allocation2 + $0x14] sm:$0xf] %v146
    %v153 = vld [vmem:[#allocation2] sm:$0xff]
    %v154 = vld [vmem:[#allocation2 + $0x8] sm:$0xff]
    %v155 = vld [vmem:[#allocation2 + $0x10] sm:$0xff]
    %v159 = vcombine.high %v153, %v153
    %v160 = vcombine.high %v154, %v154
    %v161 = vcombine.high %v155, %v155
    %165 = vrot.lane.b32.xlu0 %v153, 19
    %v166 = vpop.permute.xlu0 %165
    %167 = vrot.lane.b32.xlu0 %v159, 19
    %v168 = vpop.permute.xlu0 %167
    %169 = vrot.lane.b32.xlu0 %v154, 19
    %v170 = vpop.permute.xlu0 %169
    %171 = vrot.lane.b32.xlu0 %v160, 19
    %v172 = vpop.permute.xlu0 %171
    %173 = vrot.lane.b32.xlu0 %v155, 19
    %v174 = vpop.permute.xlu0 %173
    %175 = vrot.lane.b32.xlu0 %v161, 19
    %v176 = vpop.permute.xlu0 %175
    %v177 = vlaneseq
    %v178 = vand.u32 %v177, 127
    %vm179 = vcmp.lt.s32.totalorder %v178, 19
    %v180 = vsel %vm179, %v174, %v176
    %v181 = vsel %vm179, %v172, %v174
    %v182 = vsel %vm179, %v170, %v172
    %v183 = vsel %vm179, %v168, %v170
    %v184 = vsel %vm179, %v166, %v168
    %v185 = vsel %vm179, %v176, %v166
    %v186 = vpack.c.bf16 %v185, %v185
    %v187 = vpack.c.bf16 %v184, %v184
    %v188 = vpack.c.bf16 %v183, %v183
    %v189 = vpack.c.bf16 %v182, %v182
    %v190 = vpack.c.bf16 %v181, %v181
    %v191 = vpack.c.bf16 %v180, %v180
    %v198 = vunpack.c.l.b16 %v186
    %v199 = vunpack.c.l.b16 %v187
    %v200 = vunpack.c.l.b16 %v188
    %v201 = vunpack.c.l.b16 %v189
    %v202 = vunpack.c.l.b16 %v190
    %v203 = vunpack.c.l.b16 %v191
    %v204 = vpack.c.b16 %v199, %v198
    %v205 = vpack.c.b16 %v201, %v200
    %v206 = vpack.c.b16 %v203, %v202
    %210 = vst [vmem:[#allocation3] sm:$0x33] %v204
    %211 = vst [vmem:[#allocation3 + $0x8] sm:$0x33] %v205
    %212 = vst [vmem:[#allocation3 + $0x10] sm:$0x33] %v206
    %213 = vrot.lane.b32.xlu0 %v153, 18
    %v214 = vpop.permute.xlu0 %213
    %215 = vrot.lane.b32.xlu0 %v159, 18
    %v216 = vpop.permute.xlu0 %215
    %217 = vrot.lane.b32.xlu0 %v154, 18
    %v218 = vpop.permute.xlu0 %217
    %219 = vrot.lane.b32.xlu0 %v160, 18
    %v220 = vpop.permute.xlu0 %219
    %221 = vrot.lane.b32.xlu0 %v155, 18
    %v222 = vpop.permute.xlu0 %221
    %223 = vrot.lane.b32.xlu0 %v161, 18
    %v224 = vpop.permute.xlu0 %223
    %vm225 = vcmp.lt.s32.totalorder %v178, 18
    %v226 = vsel %vm225, %v222, %v224
    %v227 = vsel %vm225, %v220, %v222
    %v228 = vsel %vm225, %v218, %v220
    %v229 = vsel %vm225, %v216, %v218
    %v230 = vsel %vm225, %v214, %v216
    %v231 = vsel %vm225, %v224, %v214
    %v232 = vpack.c.bf16 %v231, %v231
    %v233 = vpack.c.bf16 %v230, %v230
    %v234 = vpack.c.bf16 %v229, %v229
    %v235 = vpack.c.bf16 %v228, %v228
    %v236 = vpack.c.bf16 %v227, %v227
    %v237 = vpack.c.bf16 %v226, %v226
    %v244 = vunpack.c.l.b16 %v232
    %v245 = vunpack.c.l.b16 %v233
    %v246 = vunpack.c.l.b16 %v234
    %v247 = vunpack.c.l.b16 %v235
    %v248 = vunpack.c.l.b16 %v236
    %v249 = vunpack.c.l.b16 %v237
    %v250 = vpack.c.b16 %v245, %v244
    %v251 = vpack.c.b16 %v247, %v246
    %v252 = vpack.c.b16 %v249, %v248
    %v253 = vrot.slane %v250, 6
    %v254 = vrot.slane %v251, 6
    %v255 = vrot.slane %v252, 6
    %259 = vst [vmem:[#allocation3] sm:$0xcc] %v253
    %260 = vst [vmem:[#allocation3 + $0x8] sm:$0xcc] %v254
    %261 = vst [vmem:[#allocation3 + $0x10] sm:$0xcc] %v255
    %262 = vrot.lane.b32.xlu0 %v153, 17
    %v263 = vpop.permute.xlu0 %262
    %264 = vrot.lane.b32.xlu0 %v159, 17
    %v265 = vpop.permute.xlu0 %264
    %266 = vrot.lane.b32.xlu0 %v154, 17
    %v267 = vpop.permute.xlu0 %266
    %268 = vrot.lane.b32.xlu0 %v160, 17
    %v269 = vpop.permute.xlu0 %268
    %270 = vrot.lane.b32.xlu0 %v155, 17
    %v271 = vpop.permute.xlu0 %270
    %272 = vrot.lane.b32.xlu0 %v161, 17
    %v273 = vpop.permute.xlu0 %272
    %vm274 = vcmp.lt.s32.totalorder %v178, 17
    %v275 = vsel %vm274, %v271, %v273
    %v276 = vsel %vm274, %v269, %v271
    %v277 = vsel %vm274, %v267, %v269
    %v278 = vsel %vm274, %v265, %v267
    %v279 = vsel %vm274, %v263, %v265
    %v280 = vsel %vm274, %v273, %v263
    %v281 = vpack.c.bf16 %v280, %v280
    %v282 = vpack.c.bf16 %v279, %v279
    %v283 = vpack.c.bf16 %v278, %v278
    %v284 = vpack.c.bf16 %v277, %v277
    %v285 = vpack.c.bf16 %v276, %v276
    %v286 = vpack.c.bf16 %v275, %v275
    %v293 = vunpack.c.l.b16 %v281
    %v294 = vunpack.c.l.b16 %v282
    %v295 = vunpack.c.l.b16 %v283
    %v296 = vunpack.c.l.b16 %v284
    %v297 = vunpack.c.l.b16 %v285
    %v298 = vunpack.c.l.b16 %v286
    %v299 = vpack.c.b16 %v294, %v293
    %v300 = vpack.c.b16 %v296, %v295
    %v301 = vpack.c.b16 %v298, %v297
    %305 = vst [vmem:[#allocation3 + $0x18] sm:$0x33] %v299
    %306 = vst [vmem:[#allocation3 + $0x20] sm:$0x33] %v300
    %307 = vst [vmem:[#allocation3 + $0x28] sm:$0x33] %v301
    %308 = vrot.lane.b32.xlu0 %v153, 1
    %v309 = vpop.permute.xlu0 %308
    %310 = vrot.lane.b32.xlu0 %v159, 1
    %v311 = vpop.permute.xlu0 %310
    %312 = vrot.lane.b32.xlu0 %v154, 1
    %v313 = vpop.permute.xlu0 %312
    %314 = vrot.lane.b32.xlu0 %v160, 1
    %v315 = vpop.permute.xlu0 %314
    %316 = vrot.lane.b32.xlu0 %v155, 1
    %v317 = vpop.permute.xlu0 %316
    %318 = vrot.lane.b32.xlu0 %v161, 1
    %v319 = vpop.permute.xlu0 %318
    %vm320 = vcmp.lt.s32.totalorder %v178, 1
    %v321 = vsel %vm320, %v317, %v319
    %v322 = vsel %vm320, %v315, %v317
    %v323 = vsel %vm320, %v313, %v315
    %v324 = vsel %vm320, %v311, %v313
    %v325 = vsel %vm320, %v309, %v311
    %v326 = vsel %vm320, %v319, %v309
    %v327 = vpack.c.bf16 %v326, %v326
    %v328 = vpack.c.bf16 %v325, %v325
    %v329 = vpack.c.bf16 %v324, %v324
    %v330 = vpack.c.bf16 %v323, %v323
    %v331 = vpack.c.bf16 %v322, %v322
    %v332 = vpack.c.bf16 %v321, %v321
    %v339 = vunpack.c.l.b16 %v327
    %v340 = vunpack.c.l.b16 %v328
    %v341 = vunpack.c.l.b16 %v329
    %v342 = vunpack.c.l.b16 %v330
    %v343 = vunpack.c.l.b16 %v331
    %v344 = vunpack.c.l.b16 %v332
    %v345 = vpack.c.b16 %v340, %v339
    %v346 = vpack.c.b16 %v342, %v341
    %v347 = vpack.c.b16 %v344, %v343
    %v348 = vrot.slane %v345, 6
    %v349 = vrot.slane %v346, 6
    %v350 = vrot.slane %v347, 6
    %354 = vst [vmem:[#allocation3 + $0x18] sm:$0xcc] %v348
    %355 = vst [vmem:[#allocation3 + $0x20] sm:$0xcc] %v349
    %356 = vst [vmem:[#allocation3 + $0x28] sm:$0xcc] %v350
    %v357 = vpack.c.bf16 %v153, %v153
    %v358 = vpack.c.bf16 %v159, %v159
    %v359 = vpack.c.bf16 %v154, %v154
    %v360 = vpack.c.bf16 %v160, %v160
    %v361 = vpack.c.bf16 %v155, %v155
    %v362 = vpack.c.bf16 %v161, %v161
    %v369 = vunpack.c.l.b16 %v357
    %v370 = vunpack.c.l.b16 %v358
    %v371 = vunpack.c.l.b16 %v359
    %v372 = vunpack.c.l.b16 %v360
    %v373 = vunpack.c.l.b16 %v361
    %v374 = vunpack.c.l.b16 %v362
    %v375 = vpack.c.b16 %v370, %v369
    %v376 = vpack.c.b16 %v372, %v371
    %v377 = vpack.c.b16 %v374, %v373
    %381 = vst [vmem:[#allocation3 + $0x30] sm:$0x33] %v375
    %382 = vst [vmem:[#allocation3 + $0x38] sm:$0x33] %v376
    %383 = vst [vmem:[#allocation3 + $0x40] sm:$0x33] %v377
    %384 = vrot.lane.b32.xlu0 %v153, 127
    %v385 = vpop.permute.xlu0 %384
    %386 = vrot.lane.b32.xlu0 %v159, 127
    %v387 = vpop.permute.xlu0 %386
    %388 = vrot.lane.b32.xlu0 %v154, 127
    %v389 = vpop.permute.xlu0 %388
    %390 = vrot.lane.b32.xlu0 %v160, 127
    %v391 = vpop.permute.xlu0 %390
    %392 = vrot.lane.b32.xlu0 %v155, 127
    %v393 = vpop.permute.xlu0 %392
    %394 = vrot.lane.b32.xlu0 %v161, 127
    %v395 = vpop.permute.xlu0 %394
    %vm396 = vcmp.lt.s32.totalorder %v178, 127
    %v397 = vsel %vm396, %v393, %v395
    %v398 = vsel %vm396, %v391, %v393
    %v399 = vsel %vm396, %v389, %v391
    %v400 = vsel %vm396, %v387, %v389
    %v401 = vsel %vm396, %v385, %v387
    %v402 = vsel %vm396, %v395, %v385
    %v403 = vpack.c.bf16 %v401, %v401
    %v404 = vpack.c.bf16 %v400, %v400
    %v405 = vpack.c.bf16 %v399, %v399
    %v406 = vpack.c.bf16 %v398, %v398
    %v407 = vpack.c.bf16 %v397, %v397
    %v408 = vpack.c.bf16 %v402, %v402
    %v415 = vunpack.c.l.b16 %v403
    %v416 = vunpack.c.l.b16 %v404
    %v417 = vunpack.c.l.b16 %v405
    %v418 = vunpack.c.l.b16 %v406
    %v419 = vunpack.c.l.b16 %v407
    %v420 = vunpack.c.l.b16 %v408
    %v421 = vpack.c.b16 %v416, %v415
    %v422 = vpack.c.b16 %v418, %v417
    %v423 = vpack.c.b16 %v420, %v419
    %v424 = vrot.slane %v421, 6
    %v425 = vrot.slane %v422, 6
    %v426 = vrot.slane %v423, 6
    %430 = vst [vmem:[#allocation3 + $0x30] sm:$0xcc] %v424
    %431 = vst [vmem:[#allocation3 + $0x38] sm:$0xcc] %v425
    %432 = vst [vmem:[#allocation3 + $0x40] sm:$0xcc] %v426
    %433 = vrot.lane.b32.xlu0 %v153, 111
    %v434 = vpop.permute.xlu0 %433
    %435 = vrot.lane.b32.xlu0 %v159, 111
    %v436 = vpop.permute.xlu0 %435
    %437 = vrot.lane.b32.xlu0 %v154, 111
    %v438 = vpop.permute.xlu0 %437
    %439 = vrot.lane.b32.xlu0 %v160, 111
    %v440 = vpop.permute.xlu0 %439
    %441 = vrot.lane.b32.xlu0 %v155, 111
    %v442 = vpop.permute.xlu0 %441
    %443 = vrot.lane.b32.xlu0 %v161, 111
    %v444 = vpop.permute.xlu0 %443
    %vm445 = vcmp.lt.s32.totalorder %v178, 111
    %v446 = vsel %vm445, %v442, %v444
    %v447 = vsel %vm445, %v440, %v442
    %v448 = vsel %vm445, %v438, %v440
    %v449 = vsel %vm445, %v436, %v438
    %v450 = vsel %vm445, %v434, %v436
    %v451 = vsel %vm445, %v444, %v434
    %v452 = vpack.c.bf16 %v450, %v450
    %v453 = vpack.c.bf16 %v449, %v449
    %v454 = vpack.c.bf16 %v448, %v448
    %v455 = vpack.c.bf16 %v447, %v447
    %v456 = vpack.c.bf16 %v446, %v446
    %v457 = vpack.c.bf16 %v451, %v451
    %v464 = vunpack.c.l.b16 %v452
    %v465 = vunpack.c.l.b16 %v453
    %v466 = vunpack.c.l.b16 %v454
    %v467 = vunpack.c.l.b16 %v455
    %v468 = vunpack.c.l.b16 %v456
    %v469 = vunpack.c.l.b16 %v457
    %v470 = vpack.c.b16 %v465, %v464
    %v471 = vpack.c.b16 %v467, %v466
    %v472 = vpack.c.b16 %v469, %v468
    %476 = vst [vmem:[#allocation3 + $0x48] sm:$0x33] %v470
    %477 = vst [vmem:[#allocation3 + $0x50] sm:$0x33] %v471
    %478 = vst [vmem:[#allocation3 + $0x58] sm:$0x33] %v472
    %479 = vrot.lane.b32.xlu0 %v153, 110
    %v480 = vpop.permute.xlu0 %479
    %481 = vrot.lane.b32.xlu0 %v159, 110
    %v482 = vpop.permute.xlu0 %481
    %483 = vrot.lane.b32.xlu0 %v154, 110
    %v484 = vpop.permute.xlu0 %483
    %485 = vrot.lane.b32.xlu0 %v160, 110
    %v486 = vpop.permute.xlu0 %485
    %487 = vrot.lane.b32.xlu0 %v155, 110
    %v488 = vpop.permute.xlu0 %487
    %489 = vrot.lane.b32.xlu0 %v161, 110
    %v490 = vpop.permute.xlu0 %489
    %vm491 = vcmp.lt.s32.totalorder %v178, 110
    %v492 = vsel %vm491, %v488, %v490
    %v493 = vsel %vm491, %v486, %v488
    %v494 = vsel %vm491, %v484, %v486
    %v495 = vsel %vm491, %v482, %v484
    %v496 = vsel %vm491, %v480, %v482
    %v497 = vsel %vm491, %v490, %v480
    %v498 = vpack.c.bf16 %v496, %v496
    %v499 = vpack.c.bf16 %v495, %v495
    %v500 = vpack.c.bf16 %v494, %v494
    %v501 = vpack.c.bf16 %v493, %v493
    %v502 = vpack.c.bf16 %v492, %v492
    %v503 = vpack.c.bf16 %v497, %v497
    %v510 = vunpack.c.l.b16 %v498
    %v511 = vunpack.c.l.b16 %v499
    %v512 = vunpack.c.l.b16 %v500
    %v513 = vunpack.c.l.b16 %v501
    %v514 = vunpack.c.l.b16 %v502
    %v515 = vunpack.c.l.b16 %v503
    %v516 = vpack.c.b16 %v511, %v510
    %v517 = vpack.c.b16 %v513, %v512
    %v518 = vpack.c.b16 %v515, %v514
    %v519 = vrot.slane %v516, 6
    %v520 = vrot.slane %v517, 6
    %v521 = vrot.slane %v518, 6
    %525 = vst [vmem:[#allocation3 + $0x48] sm:$0xcc] %v519
    %526 = vst [vmem:[#allocation3 + $0x50] sm:$0xcc] %v520
    %527 = vst [vmem:[#allocation3 + $0x58] sm:$0xcc] %v521
    %528 = vrot.lane.b32.xlu0 %v153, 109
    %v529 = vpop.permute.xlu0 %528
    %530 = vrot.lane.b32.xlu0 %v159, 109
    %v531 = vpop.permute.xlu0 %530
    %532 = vrot.lane.b32.xlu0 %v154, 109
    %v533 = vpop.permute.xlu0 %532
    %534 = vrot.lane.b32.xlu0 %v160, 109
    %v535 = vpop.permute.xlu0 %534
    %536 = vrot.lane.b32.xlu0 %v155, 109
    %v537 = vpop.permute.xlu0 %536
    %538 = vrot.lane.b32.xlu0 %v161, 109
    %v539 = vpop.permute.xlu0 %538
    %vm540 = vcmp.lt.s32.totalorder %v178, 109
    %v541 = vsel %vm540, %v537, %v539
    %v542 = vsel %vm540, %v535, %v537
    %v543 = vsel %vm540, %v533, %v535
    %v544 = vsel %vm540, %v531, %v533
    %v545 = vsel %vm540, %v529, %v531
    %v546 = vsel %vm540, %v539, %v529
    %v547 = vpack.c.bf16 %v545, %v545
    %v548 = vpack.c.bf16 %v544, %v544
    %v549 = vpack.c.bf16 %v543, %v543
    %v550 = vpack.c.bf16 %v542, %v542
    %v551 = vpack.c.bf16 %v541, %v541
    %v552 = vpack.c.bf16 %v546, %v546
    %v559 = vunpack.c.l.b16 %v547
    %v560 = vunpack.c.l.b16 %v548
    %v561 = vunpack.c.l.b16 %v549
    %v562 = vunpack.c.l.b16 %v550
    %v563 = vunpack.c.l.b16 %v551
    %v564 = vunpack.c.l.b16 %v552
    %v565 = vpack.c.b16 %v560, %v559
    %v566 = vpack.c.b16 %v562, %v561
    %v567 = vpack.c.b16 %v564, %v563
    %571 = vst [vmem:[#allocation3 + $0x60] sm:$0x33] %v565
    %572 = vst [vmem:[#allocation3 + $0x68] sm:$0x33] %v566
    %573 = vst [vmem:[#allocation3 + $0x70] sm:$0x33] %v567
    %v574 = vld [vmem:[%s4] sm:$0x3]
    %v575 = vld [vmem:[#allocation3] sm:$0xff]
    %v576 = vld [vmem:[#allocation3 + $0x8] sm:$0xff]
    %v577 = vld [vmem:[#allocation3 + $0x10] sm:$0xff]
    %v578 = vld [vmem:[#allocation3 + $0x18] sm:$0xff]
    %v579 = vld [vmem:[#allocation3 + $0x20] sm:$0xff]
    %v580 = vld [vmem:[#allocation3 + $0x28] sm:$0xff]
    %v581 = vld [vmem:[#allocation3 + $0x30] sm:$0xff]
    %v582 = vld [vmem:[#allocation3 + $0x38] sm:$0xff]
    %v583 = vld [vmem:[#allocation3 + $0x40] sm:$0xff]
    %v584 = vld [vmem:[#allocation3 + $0x48] sm:$0xff]
    %v585 = vld [vmem:[#allocation3 + $0x50] sm:$0xff]
    %v586 = vld [vmem:[#allocation3 + $0x58] sm:$0xff]
    %v587 = vld [vmem:[#allocation3 + $0x60] sm:$0x33]
    %v588 = vld [vmem:[#allocation3 + $0x68] sm:$0x33]
    %v589 = vld [vmem:[#allocation3 + $0x70] sm:$0x33]
    %v590 = vld [vmem:[%s5] sm:$0xf]
    %592 = vset.pattern.permute.xlu0 0
    %593 = vperm.xlu0 %592, %v590
    %v594 = vpop.permute.xlu0 %593
    %v611 = vunpack.c.l.b16 %v575
    %v612 = vunpack.c.h.b16 %v575
    %v613 = vunpack.c.l.b16 %v576
    %v614 = vunpack.c.h.b16 %v576
    %v615 = vunpack.c.l.b16 %v577
    %v616 = vunpack.c.h.b16 %v577
    %v617 = vunpack.c.l.b16 %v578
    %v618 = vunpack.c.h.b16 %v578
    %v619 = vunpack.c.l.b16 %v579
    %v620 = vunpack.c.h.b16 %v579
    %v621 = vunpack.c.l.b16 %v580
    %v622 = vunpack.c.h.b16 %v580
    %v623 = vunpack.c.l.b16 %v581
    %v624 = vunpack.c.h.b16 %v581
    %v625 = vunpack.c.l.b16 %v582
    %v626 = vunpack.c.h.b16 %v582
    %v627 = vunpack.c.l.b16 %v583
    %v628 = vunpack.c.h.b16 %v583
    %v629 = vunpack.c.l.b16 %v584
    %v630 = vunpack.c.h.b16 %v584
    %v631 = vunpack.c.l.b16 %v585
    %v632 = vunpack.c.h.b16 %v585
    %v633 = vunpack.c.l.b16 %v586
    %v634 = vunpack.c.h.b16 %v586
    %v635 = vunpack.c.l.b16 %v587
    %v636 = vunpack.c.h.b16 %v587
    %v637 = vunpack.c.l.b16 %v588
    %v638 = vunpack.c.h.b16 %v588
    %v639 = vunpack.c.l.b16 %v589
    %v640 = vunpack.c.h.b16 %v589
    %v641 = vpack.c.b16 %v617, %v611
    %v642 = vpack.c.b16 %v618, %v612
    %v643 = vpack.c.b16 %v619, %v613
    %v644 = vpack.c.b16 %v620, %v614
    %v645 = vpack.c.b16 %v621, %v615
    %v646 = vpack.c.b16 %v622, %v616
    %v647 = vpack.c.b16 %v629, %v623
    %v648 = vpack.c.b16 %v630, %v624
    %v649 = vpack.c.b16 %v631, %v625
    %v650 = vpack.c.b16 %v632, %v626
    %v651 = vpack.c.b16 %v633, %v627
    %v652 = vpack.c.b16 %v634, %v628
    %v653 = vpack.c.b16 %v635, %v635
    %v654 = vpack.c.b16 %v636, %v636
    %v655 = vpack.c.b16 %v637, %v637
    %v656 = vpack.c.b16 %v638, %v638
    %v657 = vpack.c.b16 %v639, %v639
    %v658 = vpack.c.b16 %v640, %v640
    %vm671 = vcmask 293888
    %v673 = vsel %vm671, %v574, 0
    %vm675 = vcmask 1041408
    %v677 = vsel %vm675, %v653, 0
    %v680 = vsel %vm675, %v654, 0
    %v683 = vsel %vm675, %v655, 0
    %v686 = vsel %vm675, %v656, 0
    %v689 = vsel %vm675, %v657, 0
    %v692 = vsel %vm675, %v658, 0
    %694 = vmatprep.subr.bf16.mxu0 %v642
    %695 = vmatpush1.bf16.msra.mxu0 %v641
    %696 = vmatprep.subr.bf16.mxu0 %v648
    %697 = vmatpush1.bf16.msra.mxu0 %v647
    %698 = vmatprep.subr.bf16.mxu0 %v680
    %699 = vmatpush1.bf16.msra.mxu0 %v677
    %700 = vmatprep.subr.bf16.mxu0 0
    %701 = vmatpush1.bf16.msra.mxu0 0
    %702 = vmatprep.subr.bf16.mxu0 0
    %703 = vmatpush1.bf16.msra.mxu0 0
    %704 = vmatprep.subr.bf16.mxu0 0
    %705 = vmatpush1.bf16.msra.mxu0 0
    %706 = vmatprep.subr.bf16.mxu0 0
    %707 = vmatpush1.bf16.msra.mxu0 0
    %708 = vmatprep.subr.bf16.mxu0 0
    %709 = vmatpush1.bf16.msra.mxu0 0
    %710 = vmatprep.subr.bf16.mxu0 0
    %711 = vmatpush1.bf16.msra.mxu0 0
    %712 = vmatprep.subr.bf16.mxu0 0
    %713 = vmatpush1.bf16.msra.mxu0 0
    %714 = vmatprep.subr.bf16.mxu0 0
    %715 = vmatpush1.bf16.msra.mxu0 0
    %716 = vmatprep.subr.bf16.mxu0 0
    %717 = vmatpush1.bf16.msra.mxu0 0
    %718 = vmatprep.subr.bf16.mxu0 0
    %719 = vmatpush1.bf16.msra.mxu0 0
    %720 = vmatprep.subr.bf16.mxu0 0
    %721 = vmatpush1.bf16.msra.mxu0 0
    %722 = vmatprep.subr.bf16.mxu0 0
    %723 = vmatpush1.bf16.msra.mxu0 0
    %724 = vmatprep.subr.bf16.mxu0 0
    %725 = vmatpush1.bf16.msra.mxu0 0
    %726 = vmatprep.mubr.bf16.mxu0 0
    %727 = vmatmul.mubr.bf16.gmra.mrb[0].mxu0 %v673
    %v728 = vpop.f32.mrb[0].mxu0
    %v729 = vadd.f32 %v594, %v728
    %v730 = vpop.f32.mrb[0].mxu0
    %v731 = vadd.f32 %v594, %v730
    %v732 = vpop.f32.mrb[0].mxu0
    %v733 = vpop.f32.mrb[0].mxu0
    %734 = vdwg.mxu0
    %735 = vmatprep.subr.bf16.mxu0 %v644
    %736 = vmatpush1.bf16.msra.mxu0 %v643
    %737 = vmatprep.subr.bf16.mxu0 %v650
    %738 = vmatpush1.bf16.msra.mxu0 %v649
    %739 = vmatprep.subr.bf16.mxu0 %v686
    %740 = vmatpush1.bf16.msra.mxu0 %v683
    %741 = vmatprep.subr.bf16.mxu0 0
    %742 = vmatpush1.bf16.msra.mxu0 0
    %743 = vmatprep.subr.bf16.mxu0 0
    %744 = vmatpush1.bf16.msra.mxu0 0
    %745 = vmatprep.subr.bf16.mxu0 0
    %746 = vmatpush1.bf16.msra.mxu0 0
    %747 = vmatprep.subr.bf16.mxu0 0
    %748 = vmatpush1.bf16.msra.mxu0 0
    %749 = vmatprep.subr.bf16.mxu0 0
    %750 = vmatpush1.bf16.msra.mxu0 0
    %751 = vmatprep.subr.bf16.mxu0 0
    %752 = vmatpush1.bf16.msra.mxu0 0
    %753 = vmatprep.subr.bf16.mxu0 0
    %754 = vmatpush1.bf16.msra.mxu0 0
    %755 = vmatprep.subr.bf16.mxu0 0
    %756 = vmatpush1.bf16.msra.mxu0 0
    %757 = vmatprep.subr.bf16.mxu0 0
    %758 = vmatpush1.bf16.msra.mxu0 0
    %759 = vmatprep.subr.bf16.mxu0 0
    %760 = vmatpush1.bf16.msra.mxu0 0
    %761 = vmatprep.subr.bf16.mxu0 0
    %762 = vmatpush1.bf16.msra.mxu0 0
    %763 = vmatprep.subr.bf16.mxu0 0
    %764 = vmatpush1.bf16.msra.mxu0 0
    %765 = vmatprep.subr.bf16.mxu0 0
    %766 = vmatpush1.bf16.msra.mxu0 0
    %767 = vmatprep.mubr.bf16.mxu0 0
    %768 = vmatmul.mubr.bf16.gmra.mrb[0].mxu0 %v673
    %v769 = vpop.f32.mrb[0].mxu0
    %v770 = vadd.f32 %v594, %v769
    %v771 = vpop.f32.mrb[0].mxu0
    %v772 = vadd.f32 %v594, %v771
    %v773 = vpop.f32.mrb[0].mxu0
    %v774 = vpop.f32.mrb[0].mxu0
    %775 = vdwg.mxu0
    %776 = vmatprep.subr.bf16.mxu0 %v646
    %777 = vmatpush1.bf16.msra.mxu0 %v645
    %778 = vmatprep.subr.bf16.mxu0 %v652
    %779 = vmatpush1.bf16.msra.mxu0 %v651
    %780 = vmatprep.subr.bf16.mxu0 %v692
    %781 = vmatpush1.bf16.msra.mxu0 %v689
    %782 = vmatprep.subr.bf16.mxu0 0
    %783 = vmatpush1.bf16.msra.mxu0 0
    %784 = vmatprep.subr.bf16.mxu0 0
    %785 = vmatpush1.bf16.msra.mxu0 0
    %786 = vmatprep.subr.bf16.mxu0 0
    %787 = vmatpush1.bf16.msra.mxu0 0
    %788 = vmatprep.subr.bf16.mxu0 0
    %789 = vmatpush1.bf16.msra.mxu0 0
    %790 = vmatprep.subr.bf16.mxu0 0
    %791 = vmatpush1.bf16.msra.mxu0 0
    %792 = vmatprep.subr.bf16.mxu0 0
    %793 = vmatpush1.bf16.msra.mxu0 0
    %794 = vmatprep.subr.bf16.mxu0 0
    %795 = vmatpush1.bf16.msra.mxu0 0
    %796 = vmatprep.subr.bf16.mxu0 0
    %797 = vmatpush1.bf16.msra.mxu0 0
    %798 = vmatprep.subr.bf16.mxu0 0
    %799 = vmatpush1.bf16.msra.mxu0 0
    %800 = vmatprep.subr.bf16.mxu0 0
    %801 = vmatpush1.bf16.msra.mxu0 0
    %802 = vmatprep.subr.bf16.mxu0 0
    %803 = vmatpush1.bf16.msra.mxu0 0
    %804 = vmatprep.subr.bf16.mxu0 0
    %805 = vmatpush1.bf16.msra.mxu0 0
    %806 = vmatprep.subr.bf16.mxu0 0
    %807 = vmatpush1.bf16.msra.mxu0 0
    %808 = vmatprep.mubr.bf16.mxu0 0
    %809 = vmatmul.mubr.bf16.gmra.mrb[0].mxu0 %v673
    %v810 = vpop.f32.mrb[0].mxu0
    %v811 = vadd.f32 %v594, %v810
    %v812 = vpop.f32.mrb[0].mxu0
    %v813 = vadd.f32 %v594, %v812
    %v814 = vpop.f32.mrb[0].mxu0
    %v815 = vpop.f32.mrb[0].mxu0
    %816 = vdwg.mxu0
    %v817 = vmax.f32 %v729, 0.0
    %v818 = vmax.f32 %v731, 0.0
    %v819 = vmax.f32 %v770, 0.0
    %v820 = vmax.f32 %v772, 0.0
    %v821 = vmax.f32 %v811, 0.0
    %v822 = vmax.f32 %v813, 0.0
    %v824 = vlaneseq
    %v825 = vshrl.u32 %v824, 7
    %v826 = vsub.s32 0, %v825
    %v827 = vrot.slane %v42, %v826
    %v828 = vlaneseq
    %v829 = vshrl.u32 %v828, 7
    %v830 = vsub.s32 1, %v829
    %v831 = vrot.slane %v42, %v830
    %v832 = vlaneseq
    %v833 = vshrl.u32 %v832, 7
    %v834 = vsub.s32 2, %v833
    %v835 = vrot.slane %v42, %v834
    %v836 = vlaneseq
    %v837 = vshrl.u32 %v836, 7
    %v838 = vsub.s32 3, %v837
    %v839 = vrot.slane %v42, %v838
    %v840 = vlaneseq
    %v841 = vshrl.u32 %v840, 7
    %v842 = vsub.s32 4, %v841
    %v843 = vrot.slane %v42, %v842
    %v844 = vlaneseq
    %v845 = vshrl.u32 %v844, 7
    %v846 = vsub.s32 5, %v845
    %v847 = vrot.slane %v42, %v846
    %v854 = vmul.f32 %v827, %v817
    %v855 = vmul.f32 %v831, %v818
    %v856 = vmul.f32 %v835, %v819
    %v857 = vmul.f32 %v839, %v820
    %v858 = vmul.f32 %v843, %v821
    %v859 = vmul.f32 %v847, %v822
    %860 = vrot.lane.b32.xlu0 %v854, 19
    %v861 = vpop.permute.xlu0 %860
    %862 = vrot.lane.b32.xlu0 %v855, 19
    %v863 = vpop.permute.xlu0 %862
    %864 = vrot.lane.b32.xlu0 %v856, 19
    %v865 = vpop.permute.xlu0 %864
    %866 = vrot.lane.b32.xlu0 %v857, 19
    %v867 = vpop.permute.xlu0 %866
    %868 = vrot.lane.b32.xlu0 %v858, 19
    %v869 = vpop.permute.xlu0 %868
    %870 = vrot.lane.b32.xlu0 %v859, 19
    %v871 = vpop.permute.xlu0 %870
    %v872 = vsel %vm179, %v869, %v871
    %v873 = vsel %vm179, %v867, %v869
    %v874 = vsel %vm179, %v865, %v867
    %v875 = vsel %vm179, %v863, %v865
    %v876 = vsel %vm179, %v861, %v863
    %v877 = vsel %vm179, %v871, %v861
    %v878 = vpack.c.bf16 %v877, %v877
    %v879 = vpack.c.bf16 %v876, %v876
    %v880 = vpack.c.bf16 %v875, %v875
    %v881 = vpack.c.bf16 %v874, %v874
    %v882 = vpack.c.bf16 %v873, %v873
    %v883 = vpack.c.bf16 %v872, %v872
    %v890 = vunpack.c.l.b16 %v878
    %v891 = vunpack.c.l.b16 %v879
    %v892 = vunpack.c.l.b16 %v880
    %v893 = vunpack.c.l.b16 %v881
    %v894 = vunpack.c.l.b16 %v882
    %v895 = vunpack.c.l.b16 %v883
    %v896 = vpack.c.b16 %v891, %v890
    %v897 = vpack.c.b16 %v893, %v892
    %v898 = vpack.c.b16 %v895, %v894
    %902 = vst [vmem:[#allocation3] sm:$0x33] %v896
    %903 = vst [vmem:[#allocation3 + $0x8] sm:$0x33] %v897
    %904 = vst [vmem:[#allocation3 + $0x10] sm:$0x33] %v898
    %905 = vrot.lane.b32.xlu0 %v854, 18
    %v906 = vpop.permute.xlu0 %905
    %907 = vrot.lane.b32.xlu0 %v855, 18
    %v908 = vpop.permute.xlu0 %907
    %909 = vrot.lane.b32.xlu0 %v856, 18
    %v910 = vpop.permute.xlu0 %909
    %911 = vrot.lane.b32.xlu0 %v857, 18
    %v912 = vpop.permute.xlu0 %911
    %913 = vrot.lane.b32.xlu0 %v858, 18
    %v914 = vpop.permute.xlu0 %913
    %915 = vrot.lane.b32.xlu0 %v859, 18
    %v916 = vpop.permute.xlu0 %915
    %v917 = vsel %vm225, %v914, %v916
    %v918 = vsel %vm225, %v912, %v914
    %v919 = vsel %vm225, %v910, %v912
    %v920 = vsel %vm225, %v908, %v910
    %v921 = vsel %vm225, %v906, %v908
    %v922 = vsel %vm225, %v916, %v906
    %v923 = vpack.c.bf16 %v922, %v922
    %v924 = vpack.c.bf16 %v921, %v921
    %v925 = vpack.c.bf16 %v920, %v920
    %v926 = vpack.c.bf16 %v919, %v919
    %v927 = vpack.c.bf16 %v918, %v918
    %v928 = vpack.c.bf16 %v917, %v917
    %v935 = vunpack.c.l.b16 %v923
    %v936 = vunpack.c.l.b16 %v924
    %v937 = vunpack.c.l.b16 %v925
    %v938 = vunpack.c.l.b16 %v926
    %v939 = vunpack.c.l.b16 %v927
    %v940 = vunpack.c.l.b16 %v928
    %v941 = vpack.c.b16 %v936, %v935
    %v942 = vpack.c.b16 %v938, %v937
    %v943 = vpack.c.b16 %v940, %v939
    %v944 = vrot.slane %v941, 6
    %v945 = vrot.slane %v942, 6
    %v946 = vrot.slane %v943, 6
    %950 = vst [vmem:[#allocation3] sm:$0xcc] %v944
    %951 = vst [vmem:[#allocation3 + $0x8] sm:$0xcc] %v945
    %952 = vst [vmem:[#allocation3 + $0x10] sm:$0xcc] %v946
    %953 = vrot.lane.b32.xlu0 %v854, 17
    %v954 = vpop.permute.xlu0 %953
    %955 = vrot.lane.b32.xlu0 %v855, 17
    %v956 = vpop.permute.xlu0 %955
    %957 = vrot.lane.b32.xlu0 %v856, 17
    %v958 = vpop.permute.xlu0 %957
    %959 = vrot.lane.b32.xlu0 %v857, 17
    %v960 = vpop.permute.xlu0 %959
    %961 = vrot.lane.b32.xlu0 %v858, 17
    %v962 = vpop.permute.xlu0 %961
    %963 = vrot.lane.b32.xlu0 %v859, 17
    %v964 = vpop.permute.xlu0 %963
    %v965 = vsel %vm274, %v962, %v964
    %v966 = vsel %vm274, %v960, %v962
    %v967 = vsel %vm274, %v958, %v960
    %v968 = vsel %vm274, %v956, %v958
    %v969 = vsel %vm274, %v954, %v956
    %v970 = vsel %vm274, %v964, %v954
    %v971 = vpack.c.bf16 %v970, %v970
    %v972 = vpack.c.bf16 %v969, %v969
    %v973 = vpack.c.bf16 %v968, %v968
    %v974 = vpack.c.bf16 %v967, %v967
    %v975 = vpack.c.bf16 %v966, %v966
    %v976 = vpack.c.bf16 %v965, %v965
    %v983 = vunpack.c.l.b16 %v971
    %v984 = vunpack.c.l.b16 %v972
    %v985 = vunpack.c.l.b16 %v973
    %v986 = vunpack.c.l.b16 %v974
    %v987 = vunpack.c.l.b16 %v975
    %v988 = vunpack.c.l.b16 %v976
    %v989 = vpack.c.b16 %v984, %v983
    %v990 = vpack.c.b16 %v986, %v985
    %v991 = vpack.c.b16 %v988, %v987
    %995 = vst [vmem:[#allocation3 + $0x18] sm:$0x33] %v989
    %996 = vst [vmem:[#allocation3 + $0x20] sm:$0x33] %v990
    %997 = vst [vmem:[#allocation3 + $0x28] sm:$0x33] %v991
    %998 = vrot.lane.b32.xlu0 %v854, 1
    %v999 = vpop.permute.xlu0 %998
    %1000 = vrot.lane.b32.xlu0 %v855, 1
    %v1001 = vpop.permute.xlu0 %1000
    %1002 = vrot.lane.b32.xlu0 %v856, 1
    %v1003 = vpop.permute.xlu0 %1002
    %1004 = vrot.lane.b32.xlu0 %v857, 1
    %v1005 = vpop.permute.xlu0 %1004
    %1006 = vrot.lane.b32.xlu0 %v858, 1
    %v1007 = vpop.permute.xlu0 %1006
    %1008 = vrot.lane.b32.xlu0 %v859, 1
    %v1009 = vpop.permute.xlu0 %1008
    %v1010 = vsel %vm320, %v1007, %v1009
    %v1011 = vsel %vm320, %v1005, %v1007
    %v1012 = vsel %vm320, %v1003, %v1005
    %v1013 = vsel %vm320, %v1001, %v1003
    %v1014 = vsel %vm320, %v999, %v1001
    %v1015 = vsel %vm320, %v1009, %v999
    %v1016 = vpack.c.bf16 %v1015, %v1015
    %v1017 = vpack.c.bf16 %v1014, %v1014
    %v1018 = vpack.c.bf16 %v1013, %v1013
    %v1019 = vpack.c.bf16 %v1012, %v1012
    %v1020 = vpack.c.bf16 %v1011, %v1011
    %v1021 = vpack.c.bf16 %v1010, %v1010
    %v1028 = vunpack.c.l.b16 %v1016
    %v1029 = vunpack.c.l.b16 %v1017
    %v1030 = vunpack.c.l.b16 %v1018
    %v1031 = vunpack.c.l.b16 %v1019
    %v1032 = vunpack.c.l.b16 %v1020
    %v1033 = vunpack.c.l.b16 %v1021
    %v1034 = vpack.c.b16 %v1029, %v1028
    %v1035 = vpack.c.b16 %v1031, %v1030
    %v1036 = vpack.c.b16 %v1033, %v1032
    %v1037 = vrot.slane %v1034, 6
    %v1038 = vrot.slane %v1035, 6
    %v1039 = vrot.slane %v1036, 6
    %1043 = vst [vmem:[#allocation3 + $0x18] sm:$0xcc] %v1037
    %1044 = vst [vmem:[#allocation3 + $0x20] sm:$0xcc] %v1038
    %1045 = vst [vmem:[#allocation3 + $0x28] sm:$0xcc] %v1039
    %v1046 = vpack.c.bf16 %v854, %v854
    %v1047 = vpack.c.bf16 %v855, %v855
    %v1048 = vpack.c.bf16 %v856, %v856
    %v1049 = vpack.c.bf16 %v857, %v857
    %v1050 = vpack.c.bf16 %v858, %v858
    %v1051 = vpack.c.bf16 %v859, %v859
    %v1058 = vunpack.c.l.b16 %v1046
    %v1059 = vunpack.c.l.b16 %v1047
    %v1060 = vunpack.c.l.b16 %v1048
    %v1061 = vunpack.c.l.b16 %v1049
    %v1062 = vunpack.c.l.b16 %v1050
    %v1063 = vunpack.c.l.b16 %v1051
    %v1064 = vpack.c.b16 %v1059, %v1058
    %v1065 = vpack.c.b16 %v1061, %v1060
    %v1066 = vpack.c.b16 %v1063, %v1062
    %1070 = vst [vmem:[#allocation3 + $0x30] sm:$0x33] %v1064
    %1071 = vst [vmem:[#allocation3 + $0x38] sm:$0x33] %v1065
    %1072 = vst [vmem:[#allocation3 + $0x40] sm:$0x33] %v1066
    %1073 = vrot.lane.b32.xlu0 %v854, 127
    %v1074 = vpop.permute.xlu0 %1073
    %1075 = vrot.lane.b32.xlu0 %v855, 127
    %v1076 = vpop.permute.xlu0 %1075
    %1077 = vrot.lane.b32.xlu0 %v856, 127
    %v1078 = vpop.permute.xlu0 %1077
    %1079 = vrot.lane.b32.xlu0 %v857, 127
    %v1080 = vpop.permute.xlu0 %1079
    %1081 = vrot.lane.b32.xlu0 %v858, 127
    %v1082 = vpop.permute.xlu0 %1081
    %1083 = vrot.lane.b32.xlu0 %v859, 127
    %v1084 = vpop.permute.xlu0 %1083
    %v1085 = vsel %vm396, %v1082, %v1084
    %v1086 = vsel %vm396, %v1080, %v1082
    %v1087 = vsel %vm396, %v1078, %v1080
    %v1088 = vsel %vm396, %v1076, %v1078
    %v1089 = vsel %vm396, %v1074, %v1076
    %v1090 = vsel %vm396, %v1084, %v1074
    %v1091 = vpack.c.bf16 %v1089, %v1089
    %v1092 = vpack.c.bf16 %v1088, %v1088
    %v1093 = vpack.c.bf16 %v1087, %v1087
    %v1094 = vpack.c.bf16 %v1086, %v1086
    %v1095 = vpack.c.bf16 %v1085, %v1085
    %v1096 = vpack.c.bf16 %v1090, %v1090
    %v1103 = vunpack.c.l.b16 %v1091
    %v1104 = vunpack.c.l.b16 %v1092
    %v1105 = vunpack.c.l.b16 %v1093
    %v1106 = vunpack.c.l.b16 %v1094
    %v1107 = vunpack.c.l.b16 %v1095
    %v1108 = vunpack.c.l.b16 %v1096
    %v1109 = vpack.c.b16 %v1104, %v1103
    %v1110 = vpack.c.b16 %v1106, %v1105
    %v1111 = vpack.c.b16 %v1108, %v1107
    %v1112 = vrot.slane %v1109, 6
    %v1113 = vrot.slane %v1110, 6
    %v1114 = vrot.slane %v1111, 6
    %1118 = vst [vmem:[#allocation3 + $0x30] sm:$0xcc] %v1112
    %1119 = vst [vmem:[#allocation3 + $0x38] sm:$0xcc] %v1113
    %1120 = vst [vmem:[#allocation3 + $0x40] sm:$0xcc] %v1114
    %1121 = vrot.lane.b32.xlu0 %v854, 111
    %v1122 = vpop.permute.xlu0 %1121
    %1123 = vrot.lane.b32.xlu0 %v855, 111
    %v1124 = vpop.permute.xlu0 %1123
    %1125 = vrot.lane.b32.xlu0 %v856, 111
    %v1126 = vpop.permute.xlu0 %1125
    %1127 = vrot.lane.b32.xlu0 %v857, 111
    %v1128 = vpop.permute.xlu0 %1127
    %1129 = vrot.lane.b32.xlu0 %v858, 111
    %v1130 = vpop.permute.xlu0 %1129
    %1131 = vrot.lane.b32.xlu0 %v859, 111
    %v1132 = vpop.permute.xlu0 %1131
    %v1133 = vsel %vm445, %v1130, %v1132
    %v1134 = vsel %vm445, %v1128, %v1130
    %v1135 = vsel %vm445, %v1126, %v1128
    %v1136 = vsel %vm445, %v1124, %v1126
    %v1137 = vsel %vm445, %v1122, %v1124
    %v1138 = vsel %vm445, %v1132, %v1122
    %v1139 = vpack.c.bf16 %v1137, %v1137
    %v1140 = vpack.c.bf16 %v1136, %v1136
    %v1141 = vpack.c.bf16 %v1135, %v1135
    %v1142 = vpack.c.bf16 %v1134, %v1134
    %v1143 = vpack.c.bf16 %v1133, %v1133
    %v1144 = vpack.c.bf16 %v1138, %v1138
    %v1151 = vunpack.c.l.b16 %v1139
    %v1152 = vunpack.c.l.b16 %v1140
    %v1153 = vunpack.c.l.b16 %v1141
    %v1154 = vunpack.c.l.b16 %v1142
    %v1155 = vunpack.c.l.b16 %v1143
    %v1156 = vunpack.c.l.b16 %v1144
    %v1157 = vpack.c.b16 %v1152, %v1151
    %v1158 = vpack.c.b16 %v1154, %v1153
    %v1159 = vpack.c.b16 %v1156, %v1155
    %1163 = vst [vmem:[#allocation3 + $0x48] sm:$0x33] %v1157
    %1164 = vst [vmem:[#allocation3 + $0x50] sm:$0x33] %v1158
    %1165 = vst [vmem:[#allocation3 + $0x58] sm:$0x33] %v1159
    %1166 = vrot.lane.b32.xlu0 %v854, 110
    %v1167 = vpop.permute.xlu0 %1166
    %1168 = vrot.lane.b32.xlu0 %v855, 110
    %v1169 = vpop.permute.xlu0 %1168
    %1170 = vrot.lane.b32.xlu0 %v856, 110
    %v1171 = vpop.permute.xlu0 %1170
    %1172 = vrot.lane.b32.xlu0 %v857, 110
    %v1173 = vpop.permute.xlu0 %1172
    %1174 = vrot.lane.b32.xlu0 %v858, 110
    %v1175 = vpop.permute.xlu0 %1174
    %1176 = vrot.lane.b32.xlu0 %v859, 110
    %v1177 = vpop.permute.xlu0 %1176
    %v1178 = vsel %vm491, %v1175, %v1177
    %v1179 = vsel %vm491, %v1173, %v1175
    %v1180 = vsel %vm491, %v1171, %v1173
    %v1181 = vsel %vm491, %v1169, %v1171
    %v1182 = vsel %vm491, %v1167, %v1169
    %v1183 = vsel %vm491, %v1177, %v1167
    %v1184 = vpack.c.bf16 %v1182, %v1182
    %v1185 = vpack.c.bf16 %v1181, %v1181
    %v1186 = vpack.c.bf16 %v1180, %v1180
    %v1187 = vpack.c.bf16 %v1179, %v1179
    %v1188 = vpack.c.bf16 %v1178, %v1178
    %v1189 = vpack.c.bf16 %v1183, %v1183
    %v1196 = vunpack.c.l.b16 %v1184
    %v1197 = vunpack.c.l.b16 %v1185
    %v1198 = vunpack.c.l.b16 %v1186
    %v1199 = vunpack.c.l.b16 %v1187
    %v1200 = vunpack.c.l.b16 %v1188
    %v1201 = vunpack.c.l.b16 %v1189
    %v1202 = vpack.c.b16 %v1197, %v1196
    %v1203 = vpack.c.b16 %v1199, %v1198
    %v1204 = vpack.c.b16 %v1201, %v1200
    %v1205 = vrot.slane %v1202, 6
    %v1206 = vrot.slane %v1203, 6
    %v1207 = vrot.slane %v1204, 6
    %1211 = vst [vmem:[#allocation3 + $0x48] sm:$0xcc] %v1205
    %1212 = vst [vmem:[#allocation3 + $0x50] sm:$0xcc] %v1206
    %1213 = vst [vmem:[#allocation3 + $0x58] sm:$0xcc] %v1207
    %1214 = vrot.lane.b32.xlu0 %v854, 109
    %v1215 = vpop.permute.xlu0 %1214
    %1216 = vrot.lane.b32.xlu0 %v855, 109
    %v1217 = vpop.permute.xlu0 %1216
    %1218 = vrot.lane.b32.xlu0 %v856, 109
    %v1219 = vpop.permute.xlu0 %1218
    %1220 = vrot.lane.b32.xlu0 %v857, 109
    %v1221 = vpop.permute.xlu0 %1220
    %1222 = vrot.lane.b32.xlu0 %v858, 109
    %v1223 = vpop.permute.xlu0 %1222
    %1224 = vrot.lane.b32.xlu0 %v859, 109
    %v1225 = vpop.permute.xlu0 %1224
    %v1226 = vsel %vm540, %v1223, %v1225
    %v1227 = vsel %vm540, %v1221, %v1223
    %v1228 = vsel %vm540, %v1219, %v1221
    %v1229 = vsel %vm540, %v1217, %v1219
    %v1230 = vsel %vm540, %v1215, %v1217
    %v1231 = vsel %vm540, %v1225, %v1215
    %v1232 = vpack.c.bf16 %v1230, %v1230
    %v1233 = vpack.c.bf16 %v1229, %v1229
    %v1234 = vpack.c.bf16 %v1228, %v1228
    %v1235 = vpack.c.bf16 %v1227, %v1227
    %v1236 = vpack.c.bf16 %v1226, %v1226
    %v1237 = vpack.c.bf16 %v1231, %v1231
    %v1244 = vunpack.c.l.b16 %v1232
    %v1245 = vunpack.c.l.b16 %v1233
    %v1246 = vunpack.c.l.b16 %v1234
    %v1247 = vunpack.c.l.b16 %v1235
    %v1248 = vunpack.c.l.b16 %v1236
    %v1249 = vunpack.c.l.b16 %v1237
    %v1250 = vpack.c.b16 %v1245, %v1244
    %v1251 = vpack.c.b16 %v1247, %v1246
    %v1252 = vpack.c.b16 %v1249, %v1248
    %1256 = vst [vmem:[#allocation3 + $0x60] sm:$0x33] %v1250
    %1257 = vst [vmem:[#allocation3 + $0x68] sm:$0x33] %v1251
    %1258 = vst [vmem:[#allocation3 + $0x70] sm:$0x33] %v1252
    %v1259 = vld [vmem:[%s6] sm:$0x3]
    %v1260 = vld [vmem:[#allocation3] sm:$0xff]
    %v1261 = vld [vmem:[#allocation3 + $0x8] sm:$0xff]
    %v1262 = vld [vmem:[#allocation3 + $0x10] sm:$0xff]
    %v1263 = vld [vmem:[#allocation3 + $0x18] sm:$0xff]
    %v1264 = vld [vmem:[#allocation3 + $0x20] sm:$0xff]
    %v1265 = vld [vmem:[#allocation3 + $0x28] sm:$0xff]
    %v1266 = vld [vmem:[#allocation3 + $0x30] sm:$0xff]
    %v1267 = vld [vmem:[#allocation3 + $0x38] sm:$0xff]
    %v1268 = vld [vmem:[#allocation3 + $0x40] sm:$0xff]
    %v1269 = vld [vmem:[#allocation3 + $0x48] sm:$0xff]
    %v1270 = vld [vmem:[#allocation3 + $0x50] sm:$0xff]
    %v1271 = vld [vmem:[#allocation3 + $0x58] sm:$0xff]
    %v1272 = vld [vmem:[#allocation3 + $0x60] sm:$0x33]
    %v1273 = vld [vmem:[#allocation3 + $0x68] sm:$0x33]
    %v1274 = vld [vmem:[#allocation3 + $0x70] sm:$0x33]
    %v1290 = vunpack.c.l.b16 %v1260
    %v1291 = vunpack.c.h.b16 %v1260
    %v1292 = vunpack.c.l.b16 %v1261
    %v1293 = vunpack.c.h.b16 %v1261
    %v1294 = vunpack.c.l.b16 %v1262
    %v1295 = vunpack.c.h.b16 %v1262
    %v1296 = vunpack.c.l.b16 %v1263
    %v1297 = vunpack.c.h.b16 %v1263
    %v1298 = vunpack.c.l.b16 %v1264
    %v1299 = vunpack.c.h.b16 %v1264
    %v1300 = vunpack.c.l.b16 %v1265
    %v1301 = vunpack.c.h.b16 %v1265
    %v1302 = vunpack.c.l.b16 %v1266
    %v1303 = vunpack.c.h.b16 %v1266
    %v1304 = vunpack.c.l.b16 %v1267
    %v1305 = vunpack.c.h.b16 %v1267
    %v1306 = vunpack.c.l.b16 %v1268
    %v1307 = vunpack.c.h.b16 %v1268
    %v1308 = vunpack.c.l.b16 %v1269
    %v1309 = vunpack.c.h.b16 %v1269
    %v1310 = vunpack.c.l.b16 %v1270
    %v1311 = vunpack.c.h.b16 %v1270
    %v1312 = vunpack.c.l.b16 %v1271
    %v1313 = vunpack.c.h.b16 %v1271
    %v1314 = vunpack.c.l.b16 %v1272
    %v1315 = vunpack.c.h.b16 %v1272
    %v1316 = vunpack.c.l.b16 %v1273
    %v1317 = vunpack.c.h.b16 %v1273
    %v1318 = vunpack.c.l.b16 %v1274
    %v1319 = vunpack.c.h.b16 %v1274
    %v1320 = vpack.c.b16 %v1296, %v1290
    %v1321 = vpack.c.b16 %v1297, %v1291
    %v1322 = vpack.c.b16 %v1298, %v1292
    %v1323 = vpack.c.b16 %v1299, %v1293
    %v1324 = vpack.c.b16 %v1300, %v1294
    %v1325 = vpack.c.b16 %v1301, %v1295
    %v1326 = vpack.c.b16 %v1308, %v1302
    %v1327 = vpack.c.b16 %v1309, %v1303
    %v1328 = vpack.c.b16 %v1310, %v1304
    %v1329 = vpack.c.b16 %v1311, %v1305
    %v1330 = vpack.c.b16 %v1312, %v1306
    %v1331 = vpack.c.b16 %v1313, %v1307
    %v1332 = vpack.c.b16 %v1314, %v1314
    %v1333 = vpack.c.b16 %v1315, %v1315
    %v1334 = vpack.c.b16 %v1316, %v1316
    %v1335 = vpack.c.b16 %v1317, %v1317
    %v1336 = vpack.c.b16 %v1318, %v1318
    %v1337 = vpack.c.b16 %v1319, %v1319
    %v1351 = vsel %vm671, %v1259, 0
    %v1354 = vsel %vm675, %v1332, 0
    %v1357 = vsel %vm675, %v1333, 0
    %v1360 = vsel %vm675, %v1334, 0
    %v1363 = vsel %vm675, %v1335, 0
    %v1366 = vsel %vm675, %v1336, 0
    %v1369 = vsel %vm675, %v1337, 0
    %1371 = vmatprep.subr.bf16.mxu0 %v1321
    %1372 = vmatpush1.bf16.msra.mxu0 %v1320
    %1373 = vmatprep.subr.bf16.mxu0 %v1327
    %1374 = vmatpush1.bf16.msra.mxu0 %v1326
    %1375 = vmatprep.subr.bf16.mxu0 %v1357
    %1376 = vmatpush1.bf16.msra.mxu0 %v1354
    %1377 = vmatprep.subr.bf16.mxu0 0
    %1378 = vmatpush1.bf16.msra.mxu0 0
    %1379 = vmatprep.subr.bf16.mxu0 0
    %1380 = vmatpush1.bf16.msra.mxu0 0
    %1381 = vmatprep.subr.bf16.mxu0 0
    %1382 = vmatpush1.bf16.msra.mxu0 0
    %1383 = vmatprep.subr.bf16.mxu0 0
    %1384 = vmatpush1.bf16.msra.mxu0 0
    %1385 = vmatprep.subr.bf16.mxu0 0
    %1386 = vmatpush1.bf16.msra.mxu0 0
    %1387 = vmatprep.subr.bf16.mxu0 0
    %1388 = vmatpush1.bf16.msra.mxu0 0
    %1389 = vmatprep.subr.bf16.mxu0 0
    %1390 = vmatpush1.bf16.msra.mxu0 0
    %1391 = vmatprep.subr.bf16.mxu0 0
    %1392 = vmatpush1.bf16.msra.mxu0 0
    %1393 = vmatprep.subr.bf16.mxu0 0
    %1394 = vmatpush1.bf16.msra.mxu0 0
    %1395 = vmatprep.subr.bf16.mxu0 0
    %1396 = vmatpush1.bf16.msra.mxu0 0
    %1397 = vmatprep.subr.bf16.mxu0 0
    %1398 = vmatpush1.bf16.msra.mxu0 0
    %1399 = vmatprep.subr.bf16.mxu0 0
    %1400 = vmatpush1.bf16.msra.mxu0 0
    %1401 = vmatprep.subr.bf16.mxu0 0
    %1402 = vmatpush1.bf16.msra.mxu0 0
    %1403 = vmatprep.mubr.bf16.mxu0 0
    %1404 = vmatmul.mubr.bf16.gmra.mrb[0].mxu0 %v1351
    %v1405 = vpop.f32.mrb[0].mxu0
    %v1406 = vadd.f32 0.0, %v1405
    %v1407 = vpop.f32.mrb[0].mxu0
    %v1408 = vadd.f32 0.0, %v1407
    %v1409 = vpop.f32.mrb[0].mxu0
    %v1410 = vpop.f32.mrb[0].mxu0
    %1411 = vdwg.mxu0
    %1412 = vmatprep.subr.bf16.mxu0 %v1323
    %1413 = vmatpush1.bf16.msra.mxu0 %v1322
    %1414 = vmatprep.subr.bf16.mxu0 %v1329
    %1415 = vmatpush1.bf16.msra.mxu0 %v1328
    %1416 = vmatprep.subr.bf16.mxu0 %v1363
    %1417 = vmatpush1.bf16.msra.mxu0 %v1360
    %1418 = vmatprep.subr.bf16.mxu0 0
    %1419 = vmatpush1.bf16.msra.mxu0 0
    %1420 = vmatprep.subr.bf16.mxu0 0
    %1421 = vmatpush1.bf16.msra.mxu0 0
    %1422 = vmatprep.subr.bf16.mxu0 0
    %1423 = vmatpush1.bf16.msra.mxu0 0
    %1424 = vmatprep.subr.bf16.mxu0 0
    %1425 = vmatpush1.bf16.msra.mxu0 0
    %1426 = vmatprep.subr.bf16.mxu0 0
    %1427 = vmatpush1.bf16.msra.mxu0 0
    %1428 = vmatprep.subr.bf16.mxu0 0
    %1429 = vmatpush1.bf16.msra.mxu0 0
    %1430 = vmatprep.subr.bf16.mxu0 0
    %1431 = vmatpush1.bf16.msra.mxu0 0
    %1432 = vmatprep.subr.bf16.mxu0 0
    %1433 = vmatpush1.bf16.msra.mxu0 0
    %1434 = vmatprep.subr.bf16.mxu0 0
    %1435 = vmatpush1.bf16.msra.mxu0 0
    %1436 = vmatprep.subr.bf16.mxu0 0
    %1437 = vmatpush1.bf16.msra.mxu0 0
    %1438 = vmatprep.subr.bf16.mxu0 0
    %1439 = vmatpush1.bf16.msra.mxu0 0
    %1440 = vmatprep.subr.bf16.mxu0 0
    %1441 = vmatpush1.bf16.msra.mxu0 0
    %1442 = vmatprep.subr.bf16.mxu0 0
    %1443 = vmatpush1.bf16.msra.mxu0 0
    %1444 = vmatprep.mubr.bf16.mxu0 0
    %1445 = vmatmul.mubr.bf16.gmra.mrb[0].mxu0 %v1351
    %v1446 = vpop.f32.mrb[0].mxu0
    %v1447 = vadd.f32 0.0, %v1446
    %v1448 = vpop.f32.mrb[0].mxu0
    %v1449 = vadd.f32 0.0, %v1448
    %v1450 = vpop.f32.mrb[0].mxu0
    %v1451 = vpop.f32.mrb[0].mxu0
    %1452 = vdwg.mxu0
    %1453 = vmatprep.subr.bf16.mxu0 %v1325
    %1454 = vmatpush1.bf16.msra.mxu0 %v1324
    %1455 = vmatprep.subr.bf16.mxu0 %v1331
    %1456 = vmatpush1.bf16.msra.mxu0 %v1330
    %1457 = vmatprep.subr.bf16.mxu0 %v1369
    %1458 = vmatpush1.bf16.msra.mxu0 %v1366
    %1459 = vmatprep.subr.bf16.mxu0 0
    %1460 = vmatpush1.bf16.msra.mxu0 0
    %1461 = vmatprep.subr.bf16.mxu0 0
    %1462 = vmatpush1.bf16.msra.mxu0 0
    %1463 = vmatprep.subr.bf16.mxu0 0
    %1464 = vmatpush1.bf16.msra.mxu0 0
    %1465 = vmatprep.subr.bf16.mxu0 0
    %1466 = vmatpush1.bf16.msra.mxu0 0
    %1467 = vmatprep.subr.bf16.mxu0 0
    %1468 = vmatpush1.bf16.msra.mxu0 0
    %1469 = vmatprep.subr.bf16.mxu0 0
    %1470 = vmatpush1.bf16.msra.mxu0 0
    %1471 = vmatprep.subr.bf16.mxu0 0
    %1472 = vmatpush1.bf16.msra.mxu0 0
    %1473 = vmatprep.subr.bf16.mxu0 0
    %1474 = vmatpush1.bf16.msra.mxu0 0
    %1475 = vmatprep.subr.bf16.mxu0 0
    %1476 = vmatpush1.bf16.msra.mxu0 0
    %1477 = vmatprep.subr.bf16.mxu0 0
    %1478 = vmatpush1.bf16.msra.mxu0 0
    %1479 = vmatprep.subr.bf16.mxu0 0
    %1480 = vmatpush1.bf16.msra.mxu0 0
    %1481 = vmatprep.subr.bf16.mxu0 0
    %1482 = vmatpush1.bf16.msra.mxu0 0
    %1483 = vmatprep.subr.bf16.mxu0 0
    %1484 = vmatpush1.bf16.msra.mxu0 0
    %1485 = vmatprep.mubr.bf16.mxu0 0
    %1486 = vmatmul.mubr.bf16.gmra.mrb[0].mxu0 %v1351
    %v1487 = vpop.f32.mrb[0].mxu0
    %v1488 = vadd.f32 0.0, %v1487
    %v1489 = vpop.f32.mrb[0].mxu0
    %v1490 = vadd.f32 0.0, %v1489
    %v1491 = vpop.f32.mrb[0].mxu0
    %v1492 = vpop.f32.mrb[0].mxu0
    %1493 = vdwg.mxu0
    %v1494 = vld [vmem:[#allocation4] sm:$0xff]
    %v1495 = vld [vmem:[#allocation4 + $0x8] sm:$0xf]
    %v1497 = vcombine.high %v1494, %v1494
    %v1499 = vadd.f32 %v1406, %v1494
    %v1500 = vadd.f32 %v1408, %v1497
    %v1501 = vadd.f32 %v1447, %v1495
    %v1504 = vcombine.low %v1499, %v1500
    %1506 = vst [vmem:[#allocation7] sm:$0xff] %v1504
    %1507 = vst [vmem:[#allocation7 + $0x8] sm:$0xf] %v1501
    %v1508 = vld [vmem:[%s106] sm:$0xff]
    %v1509 = vld [vmem:[%s106 + $0x8] sm:$0xf]
    %v1511 = vcombine.high %v1508, %v1508
    %v1513 = vadd.f32 %v1449, %v1508
    %v1514 = vadd.f32 %v1488, %v1511
    %v1515 = vadd.f32 %v1490, %v1509
    %v1518 = vcombine.low %v1513, %v1514
    %s1520 = scalar_lea.vmem [#allocation7], 12
    %1521 = vst [vmem:[%s1520] sm:$0xff] %v1518
    %1522 = vst [vmem:[%s1520 + $0x8] sm:$0xf] %v1515
    // Predicated region
    $region34: #{tpu_custom_call.1} parent=1 // pred_check
      _
    $region35: #{tpu_custom_call.1} parent=1 // pred_check_branch
      %1524 = sbr.rel (0) target = $region37
    $region36: #{tpu_custom_call.1} parent=1 // pred_region
      %s1526 = ssub.s32 384, 384
      %1527 = vsyncadd [#allocation6], %s1526
      %s1528 = sshll.u32 [#allocation7], 4
      %s1529 = int_to_ptr.vmem [resolvable:$true] %s1528
      %1534 = dma.vmem_to_hbm [thread:$0]  %s1529, 384, %s7, [#allocation6], 192, 192, 12
    $region37: #{tpu_custom_call.1} parent=1 // pred_fallthru
      _
    // Predicated region
    $region38: #{tpu_custom_call.1} parent=1 // pred_check
      _
    $region39: #{tpu_custom_call.1} parent=1 // pred_check_branch
      %1536 = sbr.rel (0) target = $region41
    $region40: #{tpu_custom_call.1} parent=1 // pred_region
      %1537 = dma.done [#allocation6], 384
    $region41: #{tpu_custom_call.1} parent=1 // pred_fallthru
      _
    %1538 = vsyncpa [#allocation5], 1
    %1539 = vsyncpa [#allocation6], 1

</llo_original>
